<compile_context>
chip_gen: v7x
topology: tpu7x:2x2x1
jax: 0.10.0
libtpu: 0.0.40
codegen_flags: <defaults>
</compile_context>

<pallas_src>
import jax
import jax.numpy as jnp
from jax.experimental import pallas as pl
from jax.experimental.pallas import tpu as pltpu

EPS = 1e-5
LANE = 128
VMEM_LIMIT = 32 * 1024 * 1024   # safe on v5e/v6e (128 MiB) and v7x (64 MiB)


# --------------------------------------------------------------------------- #
# helpers
# --------------------------------------------------------------------------- #
def _round_up(n, m):
    return ((n + m - 1) // m) * m


def _pad_to(a, shape):
    pads = [(0, s - d) for d, s in zip(a.shape, shape)]
    if all(p == (0, 0) for p in pads):
        return a
    return jnp.pad(a, pads)


def _choose_tile(m, row_bytes):
    """Largest 8-aligned row tile dividing m with >= 2 grid steps, VMEM-capped.

    row_bytes: approximate bytes per row summed over the tiled operands of the
    heaviest row-tiled call (keeps double-buffered blocks well under VMEM).
    """
    budget = 8 * 1024 * 1024
    cap = max(8, budget // max(row_bytes, 1))
    for t in (2048, 1024, 512, 256, 128, 64, 32, 16, 8):
        if t <= cap and m % t == 0 and m // t >= 2:
            return t
    start = (min(m // 2, cap) // 8) * 8
    for t in range(start, 7, -8):          # 8-aligned divisors only
        if m % t == 0:
            return t
    return m                               # single full-extent block


def _stats(y):
    """Per-channel (sum, sum-of-squares) partials of an (M, C) f32 tile."""
    s = jnp.sum(y, axis=0, keepdims=True)
    q = jnp.sum(y * y, axis=0, keepdims=True)
    return jnp.concatenate([s, q], axis=0).reshape(1, 2, -1)


def _fold_bn(stats, count, gamma, beta):
    """Fold batch stats into per-channel scale/shift:  yn = y*scale + shift.

    Note: single-pass E[x^2]-E[x]^2 in f32; fine at these magnitudes, switch
    to a two-pass scheme if tolerances ever tighten.
    """
    tot = jnp.sum(stats, axis=0)                             # (2, C)
    mean = tot[0] / count
    var = jnp.maximum(tot[1] / count - mean * mean, 0.0)     # biased variance
    scale = gamma * jax.lax.rsqrt(var + EPS)                 # (1, C)
    shift = beta - mean * scale                              # (1, C)
    return scale, shift


# --------------------------------------------------------------------------- #
# kernels
# --------------------------------------------------------------------------- #
def _conv1x1_stats_kernel(x_ref, w_ref, y_ref, stats_ref):
    y = jnp.dot(x_ref[...].astype(w_ref.dtype), w_ref[...],
                preferred_element_type=jnp.float32)
    y_ref[...] = y.astype(y_ref.dtype)
    stats_ref[...] = _stats(y)


def _bn_conv1x1_stats_kernel(yin_ref, s_ref, t_ref, w_ref, y_ref, stats_ref):
    h = jnp.maximum(yin_ref[...].astype(jnp.float32) * s_ref[...] + t_ref[...],
                    0.0)
    y = jnp.dot(h.astype(w_ref.dtype), w_ref[...],
                preferred_element_type=jnp.float32)
    y_ref[...] = y.astype(y_ref.dtype)
    stats_ref[...] = _stats(y)


def _bn_conv3x3_stats_kernel(y1_ref, s_ref, t_ref, w_ref, y2_ref, stats_ref):
    """bn1-fold + relu + 3x3 'SAME' conv as 9 accumulating (C, C) matmuls.

    One image per grid step.  Taps are shifted copies of the activation slab
    (static slices + zero edges); no im2col buffer, no boundary-mask VALU
    work.  Accumulation is f32; the stored activation may be bf16.
    """
    _, H, W, C = y1_ref.shape
    HW = H * W
    f32 = jnp.float32

    h1 = jnp.maximum(y1_ref[0].astype(f32) * s_ref[...] + t_ref[...], 0.0)

    # Column-shifted copies, shared by the three row shifts:
    #   cols[dx][h, w] = h1[h, w + dx], zero outside the image.
    zcol = jnp.zeros((H, 1, C), f32)
    cols = {
        -1: jnp.concatenate([zcol, h1[:, :W - 1, :]], axis=1).reshape(HW, C),
        0: h1.reshape(HW, C),
        1: jnp.concatenate([h1[:, 1:, :], zcol], axis=1).reshape(HW, C),
    }
    zrow = jnp.zeros((W, C), f32)

    acc = jnp.zeros((HW, C), f32)
    for ky in range(3):
        dy = ky - 1
        for kx in range(3):
            dx = kx - 1
            base = cols[dx]
            if dy == 0:
                tap = base
            elif dy == 1:      # needs h1[h+1, .] -> drop the first image row
                tap = jnp.concatenate([base[W:, :], zrow], axis=0)
            else:              # dy == -1 -> zero first row, drop the last
                tap = jnp.concatenate([zrow, base[:HW - W, :]], axis=0)
            acc = acc + jnp.dot(tap.astype(w_ref.dtype), w_ref[ky * 3 + kx],
                                preferred_element_type=jnp.float32)

    y2_ref[...] = acc.reshape(1, H, W, C).astype(y2_ref.dtype)
    stats_ref[...] = _stats(acc)


def _bn_residual_relu_kernel(y3_ref, x_ref, s_ref, t_ref, out_ref):
    out_ref[...] = jnp.maximum(
        y3_ref[...].astype(jnp.float32) * s_ref[...] + t_ref[...] + x_ref[...],
        0.0)


# --------------------------------------------------------------------------- #
# wrapper
# --------------------------------------------------------------------------- #
def bottleneck_forward_nhwc(x_nhwc, params, mm_dtype=jnp.bfloat16,
                            act_dtype=jnp.bfloat16):
    """NHWC-native fused Bottleneck forward (training-mode BatchNorm).

    mm_dtype:  operand dtype fed to the MXU (accumulation is always f32).
    act_dtype: HBM storage dtype of the inter-stage activations y1/y2/y3.
    Defaults (bf16/bf16) use the native MXU path and halve inter-stage HBM
    traffic; pass jnp.float32 for bit-tight numerics.
    """
    N, H, W, Cin = x_nhwc.shape
    P = params["w1"].shape[1]
    Cout = params["w3"].shape[1]
    assert Cout == Cin, "downsample=None requires inplanes == planes*4"

    Cin_p = _round_up(Cin, LANE)
    P_p = _round_up(P, LANE)
    Co_p = _round_up(Cout, LANE)

    M = N * H * W
    TM = _choose_tile(M, 4 * (Cin_p + P_p + 3 * Co_p))
    G = M // TM

    # --- lane-dense (channel-padded) operands ------------------------------
    x2d = _pad_to(x_nhwc.reshape(M, Cin), (M, Cin_p))                   # f32
    w1 = _pad_to(params["w1"], (Cin_p, P_p)).astype(mm_dtype)
    w2 = _pad_to(params["w2"], (3, 3, P_p, P_p)).reshape(9, P_p, P_p)
    w2 = w2.astype(mm_dtype)
    w3 = _pad_to(params["w3"], (P_p, Co_p)).astype(mm_dtype)
    g1 = _pad_to(params["g1"], (1, P_p));  b1 = _pad_to(params["b1"], (1, P_p))
    g2 = _pad_to(params["g2"], (1, P_p));  b2 = _pad_to(params["b2"], (1, P_p))
    g3 = _pad_to(params["g3"], (1, Co_p)); b3 = _pad_to(params["b3"], (1, Co_p))

    cp = pltpu.CompilerParams(dimension_semantics=("parallel",),
                              vmem_limit_bytes=VMEM_LIMIT)

    # --- A: conv1 (1x1) + stats --------------------------------------------
    y1, st1 = pl.pallas_call(
        _conv1x1_stats_kernel,
        out_shape=(jax.ShapeDtypeStruct((M, P_p), act_dtype),
                   jax.ShapeDtypeStruct((G, 2, P_p), jnp.float32)),
        grid=(G,),
        in_specs=[pl.BlockSpec((TM, Cin_p), lambda i: (i, 0)),
                  pl.BlockSpec((Cin_p, P_p), lambda i: (0, 0))],
        out_specs=(pl.BlockSpec((TM, P_p), lambda i: (i, 0)),
                   pl.BlockSpec((1, 2, P_p), lambda i: (i, 0, 0))),
        compiler_params=cp,
    )(x2d, w1)
    s1, t1 = _fold_bn(st1, M, g1, b1)

    # --- B: bn1+relu -> conv2 (3x3) + stats  (one image per grid step) -----
    y1_img = y1.reshape(N, H, W, P_p)
    y2, st2 = pl.pallas_call(
        _bn_conv3x3_stats_kernel,
        out_shape=(jax.ShapeDtypeStruct((N, H, W, P_p), act_dtype),
                   jax.ShapeDtypeStruct((N, 2, P_p), jnp.float32)),
        grid=(N,),
        in_specs=[pl.BlockSpec((1, H, W, P_p), lambda n: (n, 0, 0, 0)),
                  pl.BlockSpec((1, P_p), lambda n: (0, 0)),
                  pl.BlockSpec((1, P_p), lambda n: (0, 0)),
                  pl.BlockSpec((9, P_p, P_p), lambda n: (0, 0, 0))],
        out_specs=(pl.BlockSpec((1, H, W, P_p), lambda n: (n, 0, 0, 0)),
                   pl.BlockSpec((1, 2, P_p), lambda n: (n, 0, 0))),
        compiler_params=cp,
    )(y1_img, s1, t1, w2)
    s2, t2 = _fold_bn(st2, M, g2, b2)

    # --- C: bn2+relu -> conv3 (1x1, expansion) + stats ----------------------
    y2f = y2.reshape(M, P_p)
    y3, st3 = pl.pallas_call(
        _bn_conv1x1_stats_kernel,
        out_shape=(jax.ShapeDtypeStruct((M, Co_p), act_dtype),
                   jax.ShapeDtypeStruct((G, 2, Co_p), jnp.float32)),
        grid=(G,),
        in_specs=[pl.BlockSpec((TM, P_p), lambda i: (i, 0)),
                  pl.BlockSpec((1, P_p), lambda i: (0, 0)),
                  pl.BlockSpec((1, P_p), lambda i: (0, 0)),
                  pl.BlockSpec((P_p, Co_p), lambda i: (0, 0))],
        out_specs=(pl.BlockSpec((TM, Co_p), lambda i: (i, 0)),
                   pl.BlockSpec((1, 2, Co_p), lambda i: (i, 0, 0))),
        compiler_params=cp,
    )(y2f, s2, t2, w3)
    s3, t3 = _fold_bn(st3, M, g3, b3)

    # --- D: bn3 + residual add + relu ---------------------------------------
    out2d = pl.pallas_call(
        _bn_residual_relu_kernel,
        out_shape=jax.ShapeDtypeStruct((M, Co_p), jnp.float32),
        grid=(G,),
        in_specs=[pl.BlockSpec((TM, Co_p), lambda i: (i, 0)),
                  pl.BlockSpec((TM, Co_p), lambda i: (i, 0)),
                  pl.BlockSpec((1, Co_p), lambda i: (0, 0)),
                  pl.BlockSpec((1, Co_p), lambda i: (0, 0))],
        out_specs=pl.BlockSpec((TM, Co_p), lambda i: (i, 0)),
        compiler_params=cp,
    )(y3, x2d, s3, t3)

    return out2d[:, :Cout].reshape(N, H, W, Cout)


def bottleneck_forward(x_nchw, params, mm_dtype=jnp.bfloat16,
                       act_dtype=jnp.bfloat16):
    """NCHW wrapper matching the PyTorch interface.

    Production callers should use `bottleneck_forward_nhwc` end-to-end and
    avoid these relayout transposes entirely.
    """
    x = jnp.transpose(x_nchw, (0, 2, 3, 1))          # -> NHWC
    out = bottleneck_forward_nhwc(x, params, mm_dtype, act_dtype)
    return jnp.transpose(out, (0, 3, 1, 2))          # -> NCHW


# --------------------------------------------------------------------------- #
# pure-JAX reference (mirrors the PyTorch forward, training-mode BN)
# --------------------------------------------------------------------------- #
def _reference_forward(x_nchw, params):
    x = jnp.transpose(x_nchw, (0, 2, 3, 1))

    def bn(y, g, b, relu):
        mean = jnp.mean(y, axis=(0, 1, 2), keepdims=True)
        var = jnp.mean((y - mean) ** 2, axis=(0, 1, 2), keepdims=True)
        yn = (y - mean) * jax.lax.rsqrt(var + EPS) * g + b
        return jnp.maximum(yn, 0.0) if relu else yn

    def conv(inp, w):  # w: HWIO
        return jax.lax.conv_general_dilated(
            inp, w, window_strides=(1, 1), padding="SAME",
            dimension_numbers=("NHWC", "HWIO", "NHWC"))

    h1 = bn(jnp.einsum("nhwc,cp->nhwp", x, params["w1"]),
            params["g1"][0], params["b1"][0], True)
    h2 = bn(conv(h1, params["w2"]), params["g2"][0], params["b2"][0], True)
    h3 = bn(jnp.einsum("nhwc,cp->nhwp", h2, params["w3"]),
            params["g3"][0], params["b3"][0], False)
    out = jnp.maximum(h3 + x, 0.0)
    return jnp.transpose(out, (0, 3, 1, 2))


def init_params(key, inplanes, planes):
    expansion = 4
    ks = jax.random.split(key, 9)
    return {
        # conv1x1: (Cin, P);  conv3x3: HWIO (3,3,P,P);  conv1x1: (P, 4P)
        "w1": jax.random.normal(ks[0], (inplanes, planes), jnp.float32) * 0.1,
        "w2": jax.random.normal(ks[1], (3, 3, planes, planes), jnp.float32) * 0.1,
        "w3": jax.random.normal(ks[2], (planes, planes * expansion),
                                jnp.float32) * 0.1,
        "g1": 1.0 + 0.1 * jax.random.normal(ks[3], (1, planes), jnp.float32),
        "b1": 0.1 * jax.random.normal(ks[4], (1, planes), jnp.float32),
        "g2": 1.0 + 0.1 * jax.random.normal(ks[5], (1, planes), jnp.float32),
        "b2": 0.1 * jax.random.normal(ks[6], (1, planes), jnp.float32),
        "g3": 1.0 + 0.1 * jax.random.normal(ks[7], (1, planes * expansion),
                                            jnp.float32),
        "b3": 0.1 * jax.random.normal(ks[8], (1, planes * expansion),
                                      jnp.float32),
    }


if __name__ == "__main__":
    key = jax.random.PRNGKey(0)
    k_x, k_p = jax.random.split(key)

    planes = 4
    inplanes = planes * 4          # = 16, so the residual add is well-formed
    N, H, W = 2, 16, 16

    x = jax.random.normal(k_x, (N, inplanes, H, W), jnp.float32)
    params = init_params(k_p, inplanes, planes)
    ref = _reference_forward(x, params)

    # Exact (f32 MXU + f32 intermediates) path: tight correctness check.
    fwd_exact = jax.jit(lambda xx, pp: bottleneck_forward(
        xx, pp, mm_dtype=jnp.float32, act_dtype=jnp.float32))
    out_f32 = jax.block_until_ready(fwd_exact(x, params))
    assert out_f32.shape == (N, inplanes, H, W)
    err32 = float(jnp.max(jnp.abs(out_f32 - ref)))
    assert jnp.allclose(out_f32, ref, atol=1e-4, rtol=1e-4), \
        f"f32 path mismatch vs reference (max abs err {err32})"

    # Default fast path (bf16 MXU operands + bf16 inter-stage activations):
    # loose tolerance is expected and deliberate for the reduced precision.
    fwd_fast = jax.jit(bottleneck_forward)
    out_bf = jax.block_until_ready(fwd_fast(x, params))
    errbf = float(jnp.max(jnp.abs(out_bf - ref)))
    assert out_bf.shape == (N, inplanes, H, W)
    assert bool(jnp.all(jnp.isfinite(out_bf)))
    assert jnp.allclose(out_bf, ref, atol=2e-1, rtol=1e-1), \
        f"bf16 path mismatch vs reference (max abs err {errbf})"

    print("KERNEL_OK")
</pallas_src>

<mosaic_0001>
module attributes {stable_mosaic.version = 11 : i64} {
  func.func @_bn_conv1x1_stats_kernel(%arg0: i32, %arg1: memref<256x128xf32, #tpu.memory_space<vmem>>, %arg2: memref<1x128xf32, #tpu.memory_space<vmem>>, %arg3: memref<1x128xf32, #tpu.memory_space<vmem>>, %arg4: memref<128x128xf32, #tpu.memory_space<vmem>>, %arg5: memref<256x128xf32, #tpu.memory_space<vmem>>, %arg6: memref<1x2x128xf32, #tpu.memory_space<vmem>>) attributes {dimension_semantics = [#tpu.dimension_semantics<parallel>], iteration_bounds = array<i64: 2>, scalar_prefetch = 0 : i64, scratch_operands = 0 : i64, tpu.core_type = #tpu.core_type<tc>, window_params = [{transform_indices = @transform_0, window_bounds = array<i64: 256, 128>}, {pipeline_mode = #tpu.pipeline_mode<synchronous>, transform_indices = @transform_1, window_bounds = array<i64: 1, 128>}, {pipeline_mode = #tpu.pipeline_mode<synchronous>, transform_indices = @transform_2, window_bounds = array<i64: 1, 128>}, {pipeline_mode = #tpu.pipeline_mode<synchronous>, transform_indices = @transform_3, window_bounds = array<i64: 128, 128>}, {transform_indices = @transform_4, window_bounds = array<i64: 256, 128>}, {transform_indices = @transform_5, window_bounds = array<i64: 1, 2, 128>}]} {
    %c0 = arith.constant 0 : index
    %c0_0 = arith.constant 0 : index
    %0 = vector.load %arg1[%c0, %c0_0] : memref<256x128xf32, #tpu.memory_space<vmem>>, vector<256x128xf32>
    %c0_1 = arith.constant 0 : index
    %c0_2 = arith.constant 0 : index
    %1 = vector.load %arg2[%c0_1, %c0_2] : memref<1x128xf32, #tpu.memory_space<vmem>>, vector<1x128xf32>
    %2 = vector.broadcast %1 : vector<1x128xf32> to vector<256x128xf32>
    %3 = arith.mulf %0, %2 : vector<256x128xf32>
    %c0_3 = arith.constant 0 : index
    %c0_4 = arith.constant 0 : index
    %4 = vector.load %arg3[%c0_3, %c0_4] : memref<1x128xf32, #tpu.memory_space<vmem>>, vector<1x128xf32>
    %5 = vector.broadcast %4 : vector<1x128xf32> to vector<256x128xf32>
    %6 = arith.addf %3, %5 : vector<256x128xf32>
    %cst = arith.constant 0.000000e+00 : f32
    %7 = vector.broadcast %cst : f32 to vector<256x128xf32>
    %8 = arith.maximumf %6, %7 : vector<256x128xf32>
    %c0_5 = arith.constant 0 : index
    %c0_6 = arith.constant 0 : index
    %9 = vector.load %arg4[%c0_5, %c0_6] : memref<128x128xf32, #tpu.memory_space<vmem>>, vector<128x128xf32>
    %cst_7 = arith.constant dense<0.000000e+00> : vector<256x128xf32>
    %10 = tpu.matmul %8, %9, %cst_7 {dimension_numbers = #tpu.dot_dimension_numbers<[1], [0], [0], [1], [0, 0, 1, 1], [], []>} : vector<256x128xf32>, vector<128x128xf32>, vector<256x128xf32> -> vector<256x128xf32>
    %c0_8 = arith.constant 0 : index
    %c0_9 = arith.constant 0 : index
    %11 = vector.load %arg5[%c0_8, %c0_9] : memref<256x128xf32, #tpu.memory_space<vmem>>, vector<256x128xf32>
    tpu.vector_store %arg5[%c0_8, %c0_9], %10 {strides = array<i32>} : memref<256x128xf32, #tpu.memory_space<vmem>>, vector<256x128xf32>,
    %cst_10 = arith.constant dense<0.000000e+00> : vector<128xf32>
    %12 = vector.multi_reduction <add>, %10, %cst_10 [0] : vector<256x128xf32> to vector<128xf32>
    %13 = vector.shape_cast %12 : vector<128xf32> to vector<1x128xf32>
    %14 = arith.mulf %10, %10 : vector<256x128xf32>
    %cst_11 = arith.constant dense<0.000000e+00> : vector<128xf32>
    %15 = vector.multi_reduction <add>, %14, %cst_11 [0] : vector<256x128xf32> to vector<128xf32>
    %16 = vector.shape_cast %15 : vector<128xf32> to vector<1x128xf32>
    %17 = tpu.concatenate %13, %16 in 0 : vector<1x128xf32>, vector<1x128xf32> -> vector<2x128xf32>
    %18 = vector.shape_cast %17 : vector<2x128xf32> to vector<1x2x128xf32>
    %c0_12 = arith.constant 0 : index
    %c0_13 = arith.constant 0 : index
    %c0_14 = arith.constant 0 : index
    %19 = vector.load %arg6[%c0_12, %c0_13, %c0_14] : memref<1x2x128xf32, #tpu.memory_space<vmem>>, vector<1x2x128xf32>
    tpu.vector_store %arg6[%c0_12, %c0_13, %c0_14], %18 {strides = array<i32>} : memref<1x2x128xf32, #tpu.memory_space<vmem>>, vector<1x2x128xf32>,
    return
  }
  func.func @transform_0(%arg0: i32) -> (i32, i32) {
    %c0_i32 = arith.constant 0 : i32
    %c0_i32_0 = arith.constant 0 : i32
    return %arg0, %c0_i32 : i32, i32
  }
  func.func @transform_1(%arg0: i32) -> (i32, i32) {
    %c0_i32 = arith.constant 0 : i32
    %c0_i32_0 = arith.constant 0 : i32
    %c0_i32_1 = arith.constant 0 : i32
    return %c0_i32, %c0_i32_0 : i32, i32
  }
  func.func @transform_2(%arg0: i32) -> (i32, i32) {
    %c0_i32 = arith.constant 0 : i32
    %c0_i32_0 = arith.constant 0 : i32
    %c0_i32_1 = arith.constant 0 : i32
    return %c0_i32, %c0_i32_0 : i32, i32
  }
  func.func @transform_3(%arg0: i32) -> (i32, i32) {
    %c0_i32 = arith.constant 0 : i32
    %c0_i32_0 = arith.constant 0 : i32
    %c0_i32_1 = arith.constant 0 : i32
    return %c0_i32, %c0_i32_0 : i32, i32
  }
  func.func @transform_4(%arg0: i32) -> (i32, i32) {
    %c0_i32 = arith.constant 0 : i32
    %c0_i32_0 = arith.constant 0 : i32
    return %arg0, %c0_i32 : i32, i32
  }
  func.func @transform_5(%arg0: i32) -> (i32, i32, i32) {
    %c0_i32 = arith.constant 0 : i32
    %c0_i32_0 = arith.constant 0 : i32
    %c0_i32_1 = arith.constant 0 : i32
    return %arg0, %c0_i32, %c0_i32_0 : i32, i32, i32
  }
}

module attributes {stable_mosaic.version = 11 : i64} {
  func.func @_conv1x1_stats_kernel(%arg0: i32, %arg1: memref<256x128xf32, #tpu.memory_space<vmem>>, %arg2: memref<128x128xf32, #tpu.memory_space<vmem>>, %arg3: memref<256x128xf32, #tpu.memory_space<vmem>>, %arg4: memref<1x2x128xf32, #tpu.memory_space<vmem>>) attributes {dimension_semantics = [#tpu.dimension_semantics<parallel>], iteration_bounds = array<i64: 2>, scalar_prefetch = 0 : i64, scratch_operands = 0 : i64, tpu.core_type = #tpu.core_type<tc>, window_params = [{transform_indices = @transform_0, window_bounds = array<i64: 256, 128>}, {pipeline_mode = #tpu.pipeline_mode<synchronous>, transform_indices = @transform_1, window_bounds = array<i64: 128, 128>}, {transform_indices = @transform_2, window_bounds = array<i64: 256, 128>}, {transform_indices = @transform_3, window_bounds = array<i64: 1, 2, 128>}]} {
    %c0 = arith.constant 0 : index
    %c0_0 = arith.constant 0 : index
    %0 = vector.load %arg1[%c0, %c0_0] : memref<256x128xf32, #tpu.memory_space<vmem>>, vector<256x128xf32>
    %c0_1 = arith.constant 0 : index
    %c0_2 = arith.constant 0 : index
    %1 = vector.load %arg2[%c0_1, %c0_2] : memref<128x128xf32, #tpu.memory_space<vmem>>, vector<128x128xf32>
    %cst = arith.constant dense<0.000000e+00> : vector<256x128xf32>
    %2 = tpu.matmul %0, %1, %cst {dimension_numbers = #tpu.dot_dimension_numbers<[1], [0], [0], [1], [0, 0, 1, 1], [], []>} : vector<256x128xf32>, vector<128x128xf32>, vector<256x128xf32> -> vector<256x128xf32>
    %c0_3 = arith.constant 0 : index
    %c0_4 = arith.constant 0 : index
    %3 = vector.load %arg3[%c0_3, %c0_4] : memref<256x128xf32, #tpu.memory_space<vmem>>, vector<256x128xf32>
    tpu.vector_store %arg3[%c0_3, %c0_4], %2 {strides = array<i32>} : memref<256x128xf32, #tpu.memory_space<vmem>>, vector<256x128xf32>,
    %cst_5 = arith.constant dense<0.000000e+00> : vector<128xf32>
    %4 = vector.multi_reduction <add>, %2, %cst_5 [0] : vector<256x128xf32> to vector<128xf32>
    %5 = vector.shape_cast %4 : vector<128xf32> to vector<1x128xf32>
    %6 = arith.mulf %2, %2 : vector<256x128xf32>
    %cst_6 = arith.constant dense<0.000000e+00> : vector<128xf32>
    %7 = vector.multi_reduction <add>, %6, %cst_6 [0] : vector<256x128xf32> to vector<128xf32>
    %8 = vector.shape_cast %7 : vector<128xf32> to vector<1x128xf32>
    %9 = tpu.concatenate %5, %8 in 0 : vector<1x128xf32>, vector<1x128xf32> -> vector<2x128xf32>
    %10 = vector.shape_cast %9 : vector<2x128xf32> to vector<1x2x128xf32>
    %c0_7 = arith.constant 0 : index
    %c0_8 = arith.constant 0 : index
    %c0_9 = arith.constant 0 : index
    %11 = vector.load %arg4[%c0_7, %c0_8, %c0_9] : memref<1x2x128xf32, #tpu.memory_space<vmem>>, vector<1x2x128xf32>
    tpu.vector_store %arg4[%c0_7, %c0_8, %c0_9], %10 {strides = array<i32>} : memref<1x2x128xf32, #tpu.memory_space<vmem>>, vector<1x2x128xf32>,
    return
  }
  func.func @transform_0(%arg0: i32) -> (i32, i32) {
    %c0_i32 = arith.constant 0 : i32
    %c0_i32_0 = arith.constant 0 : i32
    return %arg0, %c0_i32 : i32, i32
  }
  func.func @transform_1(%arg0: i32) -> (i32, i32) {
    %c0_i32 = arith.constant 0 : i32
    %c0_i32_0 = arith.constant 0 : i32
    %c0_i32_1 = arith.constant 0 : i32
    return %c0_i32, %c0_i32_0 : i32, i32
  }
  func.func @transform_2(%arg0: i32) -> (i32, i32) {
    %c0_i32 = arith.constant 0 : i32
    %c0_i32_0 = arith.constant 0 : i32
    return %arg0, %c0_i32 : i32, i32
  }
  func.func @transform_3(%arg0: i32) -> (i32, i32, i32) {
    %c0_i32 = arith.constant 0 : i32
    %c0_i32_0 = arith.constant 0 : i32
    %c0_i32_1 = arith.constant 0 : i32
    return %arg0, %c0_i32, %c0_i32_0 : i32, i32, i32
  }
}

module attributes {stable_mosaic.version = 11 : i64} {
  func.func @_bn_conv3x3_stats_kernel(%arg0: i32, %arg1: memref<1x16x16x128xf32, #tpu.memory_space<vmem>>, %arg2: memref<1x128xf32, #tpu.memory_space<vmem>>, %arg3: memref<1x128xf32, #tpu.memory_space<vmem>>, %arg4: memref<9x128x128xf32, #tpu.memory_space<vmem>>, %arg5: memref<1x16x16x128xf32, #tpu.memory_space<vmem>>, %arg6: memref<1x2x128xf32, #tpu.memory_space<vmem>>) attributes {dimension_semantics = [#tpu.dimension_semantics<parallel>], iteration_bounds = array<i64: 2>, scalar_prefetch = 0 : i64, scratch_operands = 0 : i64, tpu.core_type = #tpu.core_type<tc>, window_params = [{transform_indices = @transform_0, window_bounds = array<i64: 1, 16, 16, 128>}, {pipeline_mode = #tpu.pipeline_mode<synchronous>, transform_indices = @transform_1, window_bounds = array<i64: 1, 128>}, {pipeline_mode = #tpu.pipeline_mode<synchronous>, transform_indices = @transform_2, window_bounds = array<i64: 1, 128>}, {pipeline_mode = #tpu.pipeline_mode<synchronous>, transform_indices = @transform_3, window_bounds = array<i64: 9, 128, 128>}, {transform_indices = @transform_4, window_bounds = array<i64: 1, 16, 16, 128>}, {transform_indices = @transform_5, window_bounds = array<i64: 1, 2, 128>}]} {
    %c0 = arith.constant 0 : index
    %c0_0 = arith.constant 0 : index
    %c0_1 = arith.constant 0 : index
    %c0_2 = arith.constant 0 : index
    %0 = vector.load %arg1[%c0, %c0_0, %c0_1, %c0_2] : memref<1x16x16x128xf32, #tpu.memory_space<vmem>>, vector<1x16x16x128xf32>
    %1 = vector.shape_cast %0 : vector<1x16x16x128xf32> to vector<16x16x128xf32>
    %c0_3 = arith.constant 0 : index
    %c0_4 = arith.constant 0 : index
    %2 = vector.load %arg2[%c0_3, %c0_4] : memref<1x128xf32, #tpu.memory_space<vmem>>, vector<1x128xf32>
    %3 = vector.shape_cast %2 : vector<1x128xf32> to vector<1x1x128xf32>
    %4 = vector.broadcast %3 : vector<1x1x128xf32> to vector<16x16x128xf32>
    %5 = arith.mulf %1, %4 : vector<16x16x128xf32>
    %c0_5 = arith.constant 0 : index
    %c0_6 = arith.constant 0 : index
    %6 = vector.load %arg3[%c0_5, %c0_6] : memref<1x128xf32, #tpu.memory_space<vmem>>, vector<1x128xf32>
    %7 = vector.shape_cast %6 : vector<1x128xf32> to vector<1x1x128xf32>
    %8 = vector.broadcast %7 : vector<1x1x128xf32> to vector<16x16x128xf32>
    %9 = arith.addf %5, %8 : vector<16x16x128xf32>
    %cst = arith.constant 0.000000e+00 : f32
    %10 = vector.broadcast %cst : f32 to vector<16x16x128xf32>
    %11 = arith.maximumf %9, %10 : vector<16x16x128xf32>
    %cst_7 = arith.constant 0.000000e+00 : f32
    %12 = vector.broadcast %cst_7 : f32 to vector<16x1x128xf32>
    %13 = vector.extract_strided_slice %11 {offsets = [0, 0, 0], sizes = [16, 15, 128], strides = [1, 1, 1]} : vector<16x16x128xf32> to vector<16x15x128xf32>
    %14 = tpu.concatenate %12, %13 in 1 : vector<16x1x128xf32>, vector<16x15x128xf32> -> vector<16x16x128xf32>
    %15 = vector.shape_cast %14 : vector<16x16x128xf32> to vector<256x128xf32>
    %16 = vector.shape_cast %11 : vector<16x16x128xf32> to vector<256x128xf32>
    %17 = vector.extract_strided_slice %11 {offsets = [0, 1, 0], sizes = [16, 15, 128], strides = [1, 1, 1]} : vector<16x16x128xf32> to vector<16x15x128xf32>
    %18 = tpu.concatenate %17, %12 in 1 : vector<16x15x128xf32>, vector<16x1x128xf32> -> vector<16x16x128xf32>
    %19 = vector.shape_cast %18 : vector<16x16x128xf32> to vector<256x128xf32>
    %cst_8 = arith.constant 0.000000e+00 : f32
    %20 = vector.broadcast %cst_8 : f32 to vector<16x128xf32>
    %cst_9 = arith.constant 0.000000e+00 : f32
    %21 = vector.broadcast %cst_9 : f32 to vector<256x128xf32>
    %22 = vector.extract_strided_slice %15 {offsets = [0, 0], sizes = [240, 128], strides = [1, 1]} : vector<256x128xf32> to vector<240x128xf32>
    %23 = tpu.concatenate %20, %22 in 0 : vector<16x128xf32>, vector<240x128xf32> -> vector<256x128xf32>
    %c0_10 = arith.constant 0 : index
    %c0_11 = arith.constant 0 : index
    %c0_12 = arith.constant 0 : index
    %24 = vector.load %arg4[%c0_10, %c0_11, %c0_12] : memref<9x128x128xf32, #tpu.memory_space<vmem>>, vector<1x128x128xf32>
    %25 = vector.shape_cast %24 : vector<1x128x128xf32> to vector<128x128xf32>
    %cst_13 = arith.constant dense<0.000000e+00> : vector<256x128xf32>
    %26 = tpu.matmul %23, %25, %cst_13 {dimension_numbers = #tpu.dot_dimension_numbers<[1], [0], [0], [1], [0, 0, 1, 1], [], []>} : vector<256x128xf32>, vector<128x128xf32>, vector<256x128xf32> -> vector<256x128xf32>
    %27 = arith.addf %21, %26 : vector<256x128xf32>
    %28 = vector.extract_strided_slice %16 {offsets = [0, 0], sizes = [240, 128], strides = [1, 1]} : vector<256x128xf32> to vector<240x128xf32>
    %29 = tpu.concatenate %20, %28 in 0 : vector<16x128xf32>, vector<240x128xf32> -> vector<256x128xf32>
    %c1 = arith.constant 1 : index
    %c0_14 = arith.constant 0 : index
    %c0_15 = arith.constant 0 : index
    %30 = vector.load %arg4[%c1, %c0_14, %c0_15] : memref<9x128x128xf32, #tpu.memory_space<vmem>>, vector<1x128x128xf32>
    %31 = vector.shape_cast %30 : vector<1x128x128xf32> to vector<128x128xf32>
    %cst_16 = arith.constant dense<0.000000e+00> : vector<256x128xf32>
    %32 = tpu.matmul %29, %31, %cst_16 {dimension_numbers = #tpu.dot_dimension_numbers<[1], [0], [0], [1], [0, 0, 1, 1], [], []>} : vector<256x128xf32>, vector<128x128xf32>, vector<256x128xf32> -> vector<256x128xf32>
    %33 = arith.addf %27, %32 : vector<256x128xf32>
    %34 = vector.extract_strided_slice %19 {offsets = [0, 0], sizes = [240, 128], strides = [1, 1]} : vector<256x128xf32> to vector<240x128xf32>
    %35 = tpu.concatenate %20, %34 in 0 : vector<16x128xf32>, vector<240x128xf32> -> vector<256x128xf32>
    %c2 = arith.constant 2 : index
    %c0_17 = arith.constant 0 : index
    %c0_18 = arith.constant 0 : index
    %36 = vector.load %arg4[%c2, %c0_17, %c0_18] : memref<9x128x128xf32, #tpu.memory_space<vmem>>, vector<1x128x128xf32>
    %37 = vector.shape_cast %36 : vector<1x128x128xf32> to vector<128x128xf32>
    %cst_19 = arith.constant dense<0.000000e+00> : vector<256x128xf32>
    %38 = tpu.matmul %35, %37, %cst_19 {dimension_numbers = #tpu.dot_dimension_numbers<[1], [0], [0], [1], [0, 0, 1, 1], [], []>} : vector<256x128xf32>, vector<128x128xf32>, vector<256x128xf32> -> vector<256x128xf32>
    %39 = arith.addf %33, %38 : vector<256x128xf32>
    %c3 = arith.constant 3 : index
    %c0_20 = arith.constant 0 : index
    %c0_21 = arith.constant 0 : index
    %40 = vector.load %arg4[%c3, %c0_20, %c0_21] : memref<9x128x128xf32, #tpu.memory_space<vmem>>, vector<1x128x128xf32>
    %41 = vector.shape_cast %40 : vector<1x128x128xf32> to vector<128x128xf32>
    %cst_22 = arith.constant dense<0.000000e+00> : vector<256x128xf32>
    %42 = tpu.matmul %15, %41, %cst_22 {dimension_numbers = #tpu.dot_dimension_numbers<[1], [0], [0], [1], [0, 0, 1, 1], [], []>} : vector<256x128xf32>, vector<128x128xf32>, vector<256x128xf32> -> vector<256x128xf32>
    %43 = arith.addf %39, %42 : vector<256x128xf32>
    %c4 = arith.constant 4 : index
    %c0_23 = arith.constant 0 : index
    %c0_24 = arith.constant 0 : index
    %44 = vector.load %arg4[%c4, %c0_23, %c0_24] : memref<9x128x128xf32, #tpu.memory_space<vmem>>, vector<1x128x128xf32>
    %45 = vector.shape_cast %44 : vector<1x128x128xf32> to vector<128x128xf32>
    %cst_25 = arith.constant dense<0.000000e+00> : vector<256x128xf32>
    %46 = tpu.matmul %16, %45, %cst_25 {dimension_numbers = #tpu.dot_dimension_numbers<[1], [0], [0], [1], [0, 0, 1, 1], [], []>} : vector<256x128xf32>, vector<128x128xf32>, vector<256x128xf32> -> vector<256x128xf32>
    %47 = arith.addf %43, %46 : vector<256x128xf32>
    %c5 = arith.constant 5 : index
    %c0_26 = arith.constant 0 : index
    %c0_27 = arith.constant 0 : index
    %48 = vector.load %arg4[%c5, %c0_26, %c0_27] : memref<9x128x128xf32, #tpu.memory_space<vmem>>, vector<1x128x128xf32>
    %49 = vector.shape_cast %48 : vector<1x128x128xf32> to vector<128x128xf32>
    %cst_28 = arith.constant dense<0.000000e+00> : vector<256x128xf32>
    %50 = tpu.matmul %19, %49, %cst_28 {dimension_numbers = #tpu.dot_dimension_numbers<[1], [0], [0], [1], [0, 0, 1, 1], [], []>} : vector<256x128xf32>, vector<128x128xf32>, vector<256x128xf32> -> vector<256x128xf32>
    %51 = arith.addf %47, %50 : vector<256x128xf32>
    %52 = vector.extract_strided_slice %15 {offsets = [16, 0], sizes = [240, 128], strides = [1, 1]} : vector<256x128xf32> to vector<240x128xf32>
    %53 = tpu.concatenate %52, %20 in 0 : vector<240x128xf32>, vector<16x128xf32> -> vector<256x128xf32>
    %c6 = arith.constant 6 : index
    %c0_29 = arith.constant 0 : index
    %c0_30 = arith.constant 0 : index
    %54 = vector.load %arg4[%c6, %c0_29, %c0_30] : memref<9x128x128xf32, #tpu.memory_space<vmem>>, vector<1x128x128xf32>
    %55 = vector.shape_cast %54 : vector<1x128x128xf32> to vector<128x128xf32>
    %cst_31 = arith.constant dense<0.000000e+00> : vector<256x128xf32>
    %56 = tpu.matmul %53, %55, %cst_31 {dimension_numbers = #tpu.dot_dimension_numbers<[1], [0], [0], [1], [0, 0, 1, 1], [], []>} : vector<256x128xf32>, vector<128x128xf32>, vector<256x128xf32> -> vector<256x128xf32>
    %57 = arith.addf %51, %56 : vector<256x128xf32>
    %58 = vector.extract_strided_slice %16 {offsets = [16, 0], sizes = [240, 128], strides = [1, 1]} : vector<256x128xf32> to vector<240x128xf32>
    %59 = tpu.concatenate %58, %20 in 0 : vector<240x128xf32>, vector<16x128xf32> -> vector<256x128xf32>
    %c7 = arith.constant 7 : index
    %c0_32 = arith.constant 0 : index
    %c0_33 = arith.constant 0 : index
    %60 = vector.load %arg4[%c7, %c0_32, %c0_33] : memref<9x128x128xf32, #tpu.memory_space<vmem>>, vector<1x128x128xf32>
    %61 = vector.shape_cast %60 : vector<1x128x128xf32> to vector<128x128xf32>
    %cst_34 = arith.constant dense<0.000000e+00> : vector<256x128xf32>
    %62 = tpu.matmul %59, %61, %cst_34 {dimension_numbers = #tpu.dot_dimension_numbers<[1], [0], [0], [1], [0, 0, 1, 1], [], []>} : vector<256x128xf32>, vector<128x128xf32>, vector<256x128xf32> -> vector<256x128xf32>
    %63 = arith.addf %57, %62 : vector<256x128xf32>
    %64 = vector.extract_strided_slice %19 {offsets = [16, 0], sizes = [240, 128], strides = [1, 1]} : vector<256x128xf32> to vector<240x128xf32>
    %65 = tpu.concatenate %64, %20 in 0 : vector<240x128xf32>, vector<16x128xf32> -> vector<256x128xf32>
    %c8 = arith.constant 8 : index
    %c0_35 = arith.constant 0 : index
    %c0_36 = arith.constant 0 : index
    %66 = vector.load %arg4[%c8, %c0_35, %c0_36] : memref<9x128x128xf32, #tpu.memory_space<vmem>>, vector<1x128x128xf32>
    %67 = vector.shape_cast %66 : vector<1x128x128xf32> to vector<128x128xf32>
    %cst_37 = arith.constant dense<0.000000e+00> : vector<256x128xf32>
    %68 = tpu.matmul %65, %67, %cst_37 {dimension_numbers = #tpu.dot_dimension_numbers<[1], [0], [0], [1], [0, 0, 1, 1], [], []>} : vector<256x128xf32>, vector<128x128xf32>, vector<256x128xf32> -> vector<256x128xf32>
    %69 = arith.addf %63, %68 : vector<256x128xf32>
    %70 = vector.shape_cast %69 : vector<256x128xf32> to vector<1x16x16x128xf32>
    %c0_38 = arith.constant 0 : index
    %c0_39 = arith.constant 0 : index
    %c0_40 = arith.constant 0 : index
    %c0_41 = arith.constant 0 : index
    %71 = vector.load %arg5[%c0_38, %c0_39, %c0_40, %c0_41] : memref<1x16x16x128xf32, #tpu.memory_space<vmem>>, vector<1x16x16x128xf32>
    tpu.vector_store %arg5[%c0_38, %c0_39, %c0_40, %c0_41], %70 {strides = array<i32>} : memref<1x16x16x128xf32, #tpu.memory_space<vmem>>, vector<1x16x16x128xf32>,
    %cst_42 = arith.constant dense<0.000000e+00> : vector<128xf32>
    %72 = vector.multi_reduction <add>, %69, %cst_42 [0] : vector<256x128xf32> to vector<128xf32>
    %73 = vector.shape_cast %72 : vector<128xf32> to vector<1x128xf32>
    %74 = arith.mulf %69, %69 : vector<256x128xf32>
    %cst_43 = arith.constant dense<0.000000e+00> : vector<128xf32>
    %75 = vector.multi_reduction <add>, %74, %cst_43 [0] : vector<256x128xf32> to vector<128xf32>
    %76 = vector.shape_cast %75 : vector<128xf32> to vector<1x128xf32>
    %77 = tpu.concatenate %73, %76 in 0 : vector<1x128xf32>, vector<1x128xf32> -> vector<2x128xf32>
    %78 = vector.shape_cast %77 : vector<2x128xf32> to vector<1x2x128xf32>
    %c0_44 = arith.constant 0 : index
    %c0_45 = arith.constant 0 : index
    %c0_46 = arith.constant 0 : index
    %79 = vector.load %arg6[%c0_44, %c0_45, %c0_46] : memref<1x2x128xf32, #tpu.memory_space<vmem>>, vector<1x2x128xf32>
    tpu.vector_store %arg6[%c0_44, %c0_45, %c0_46], %78 {strides = array<i32>} : memref<1x2x128xf32, #tpu.memory_space<vmem>>, vector<1x2x128xf32>,
    return
  }
  func.func @transform_0(%arg0: i32) -> (i32, i32, i32, i32) {
    %c0_i32 = arith.constant 0 : i32
    %c0_i32_0 = arith.constant 0 : i32
    %c0_i32_1 = arith.constant 0 : i32
    %c0_i32_2 = arith.constant 0 : i32
    return %arg0, %c0_i32, %c0_i32_0, %c0_i32_1 : i32, i32, i32, i32
  }
  func.func @transform_1(%arg0: i32) -> (i32, i32) {
    %c0_i32 = arith.constant 0 : i32
    %c0_i32_0 = arith.constant 0 : i32
    %c0_i32_1 = arith.constant 0 : i32
    return %c0_i32, %c0_i32_0 : i32, i32
  }
  func.func @transform_2(%arg0: i32) -> (i32, i32) {
    %c0_i32 = arith.constant 0 : i32
    %c0_i32_0 = arith.constant 0 : i32
    %c0_i32_1 = arith.constant 0 : i32
    return %c0_i32, %c0_i32_0 : i32, i32
  }
  func.func @transform_3(%arg0: i32) -> (i32, i32, i32) {
    %c0_i32 = arith.constant 0 : i32
    %c0_i32_0 = arith.constant 0 : i32
    %c0_i32_1 = arith.constant 0 : i32
    %c0_i32_2 = arith.constant 0 : i32
    return %c0_i32, %c0_i32_0, %c0_i32_1 : i32, i32, i32
  }
  func.func @transform_4(%arg0: i32) -> (i32, i32, i32, i32) {
    %c0_i32 = arith.constant 0 : i32
    %c0_i32_0 = arith.constant 0 : i32
    %c0_i32_1 = arith.constant 0 : i32
    %c0_i32_2 = arith.constant 0 : i32
    return %arg0, %c0_i32, %c0_i32_0, %c0_i32_1 : i32, i32, i32, i32
  }
  func.func @transform_5(%arg0: i32) -> (i32, i32, i32) {
    %c0_i32 = arith.constant 0 : i32
    %c0_i32_0 = arith.constant 0 : i32
    %c0_i32_1 = arith.constant 0 : i32
    return %arg0, %c0_i32, %c0_i32_0 : i32, i32, i32
  }
}

module attributes {stable_mosaic.version = 11 : i64} {
  func.func @_bn_residual_relu_kernel(%arg0: i32, %arg1: memref<256x128xf32, #tpu.memory_space<vmem>>, %arg2: memref<256x128xf32, #tpu.memory_space<vmem>>, %arg3: memref<1x128xf32, #tpu.memory_space<vmem>>, %arg4: memref<1x128xf32, #tpu.memory_space<vmem>>, %arg5: memref<256x128xf32, #tpu.memory_space<vmem>>) attributes {dimension_semantics = [#tpu.dimension_semantics<parallel>], iteration_bounds = array<i64: 2>, scalar_prefetch = 0 : i64, scratch_operands = 0 : i64, tpu.core_type = #tpu.core_type<tc>, window_params = [{transform_indices = @transform_0, window_bounds = array<i64: 256, 128>}, {transform_indices = @transform_1, window_bounds = array<i64: 256, 128>}, {pipeline_mode = #tpu.pipeline_mode<synchronous>, transform_indices = @transform_2, window_bounds = array<i64: 1, 128>}, {pipeline_mode = #tpu.pipeline_mode<synchronous>, transform_indices = @transform_3, window_bounds = array<i64: 1, 128>}, {transform_indices = @transform_4, window_bounds = array<i64: 256, 128>}]} {
    %c0 = arith.constant 0 : index
    %c0_0 = arith.constant 0 : index
    %0 = vector.load %arg1[%c0, %c0_0] : memref<256x128xf32, #tpu.memory_space<vmem>>, vector<256x128xf32>
    %c0_1 = arith.constant 0 : index
    %c0_2 = arith.constant 0 : index
    %1 = vector.load %arg3[%c0_1, %c0_2] : memref<1x128xf32, #tpu.memory_space<vmem>>, vector<1x128xf32>
    %2 = vector.broadcast %1 : vector<1x128xf32> to vector<256x128xf32>
    %3 = arith.mulf %0, %2 : vector<256x128xf32>
    %c0_3 = arith.constant 0 : index
    %c0_4 = arith.constant 0 : index
    %4 = vector.load %arg4[%c0_3, %c0_4] : memref<1x128xf32, #tpu.memory_space<vmem>>, vector<1x128xf32>
    %5 = vector.broadcast %4 : vector<1x128xf32> to vector<256x128xf32>
    %6 = arith.addf %3, %5 : vector<256x128xf32>
    %c0_5 = arith.constant 0 : index
    %c0_6 = arith.constant 0 : index
    %7 = vector.load %arg2[%c0_5, %c0_6] : memref<256x128xf32, #tpu.memory_space<vmem>>, vector<256x128xf32>
    %8 = arith.addf %6, %7 : vector<256x128xf32>
    %cst = arith.constant 0.000000e+00 : f32
    %9 = vector.broadcast %cst : f32 to vector<256x128xf32>
    %10 = arith.maximumf %8, %9 : vector<256x128xf32>
    %c0_7 = arith.constant 0 : index
    %c0_8 = arith.constant 0 : index
    %11 = vector.load %arg5[%c0_7, %c0_8] : memref<256x128xf32, #tpu.memory_space<vmem>>, vector<256x128xf32>
    tpu.vector_store %arg5[%c0_7, %c0_8], %10 {strides = array<i32>} : memref<256x128xf32, #tpu.memory_space<vmem>>, vector<256x128xf32>,
    return
  }
  func.func @transform_0(%arg0: i32) -> (i32, i32) {
    %c0_i32 = arith.constant 0 : i32
    %c0_i32_0 = arith.constant 0 : i32
    return %arg0, %c0_i32 : i32, i32
  }
  func.func @transform_1(%arg0: i32) -> (i32, i32) {
    %c0_i32 = arith.constant 0 : i32
    %c0_i32_0 = arith.constant 0 : i32
    return %arg0, %c0_i32 : i32, i32
  }
  func.func @transform_2(%arg0: i32) -> (i32, i32) {
    %c0_i32 = arith.constant 0 : i32
    %c0_i32_0 = arith.constant 0 : i32
    %c0_i32_1 = arith.constant 0 : i32
    return %c0_i32, %c0_i32_0 : i32, i32
  }
  func.func @transform_3(%arg0: i32) -> (i32, i32) {
    %c0_i32 = arith.constant 0 : i32
    %c0_i32_0 = arith.constant 0 : i32
    %c0_i32_1 = arith.constant 0 : i32
    return %c0_i32, %c0_i32_0 : i32, i32
  }
  func.func @transform_4(%arg0: i32) -> (i32, i32) {
    %c0_i32 = arith.constant 0 : i32
    %c0_i32_0 = arith.constant 0 : i32
    return %arg0, %c0_i32 : i32, i32
  }
}

</mosaic_0001>

<llo_original>
// kernel: _lambda_.7
$region0: #{_lambda_.7}
  #allocation0 [shape = 'u32[]', space=smem, size = 0x4, offset = 0x4, fixed_abs, tag = 'smem constant byte address 0x4 - core index']
  #allocation1 [shape = 'u32[144,128]{1,0:T(1,128)}', space=vmem, size = 0x12000, scoped, tag = 'internal scratch']
  %s0 = inlined_call_operand.vmem [shape: f32[512,128], index: 0, kind: input, shape index: {}]
  %s1 = inlined_call_operand.vmem [shape: f32[512,128], index: 1, kind: input, shape index: {}]
  %s2 = inlined_call_operand.vmem [shape: f32[1,128], index: 2, kind: input, shape index: {}]
  %s3 = inlined_call_operand.vmem [shape: f32[1,128], index: 3, kind: input, shape index: {}]
  %s4 = inlined_call_operand.vmem [shape: f32[512,128], index: 4, kind: output, shape index: {}]
  %s5 = sld [smem:[#allocation0]]
  $region49: #{_lambda_.7} parent=0
    _
  %s7 = ssub.s32 1, %s5
  %s8 = scalar_select 0, %s7, %s5
  loop: start=0, step=1, limit=4
  $region2: #{_lambda_.7} parent=0 // loop_pre_header
    _
  $region3: #{_lambda_.7} parent=0 // loop_header
    %s10 = sphi 0, %s14
    %p11 = scmp.ge.s32.totalorder %s10, 4
    %s20 = sphi 0, %s22
    %s23 = sphi 0, %s20
    %s24 = sphi 0, %s23
    %s40 = sphi 0, %s24
    %s46 = sphi 0, %s48
    %s49 = sphi 0, %s46
    %s50 = sphi 0, %s49
    %s66 = sphi 0, %s50
    %s70 = sphi 0, %s70
    %s72 = sphi 0, %s70
    %s73 = sphi 0, %s72
    %s87 = sphi 0, %s73
    %s91 = sphi 0, %s91
    %s93 = sphi 0, %s91
    %s94 = sphi 0, %s93
    %s108 = sphi 0, %s94
    %s114 = sphi 0, %s116
    %s117 = sphi 0, %s114
    %s118 = sphi 0, %s117
    %s134 = sphi 0, %s118
  $region4: #{_lambda_.7} parent=0 // loop_header_branch
    %13 = sbr.rel (%p11) target = $region8
  $region5: #{_lambda_.7} parent=0 // loop_body
    %s15 = ssub.s32 %s10, 1
    %s16 = ssub.s32 %s10, 2
    %s17 = sadd.s32 %s10, 1
    %s18 = ssub.s32 %s10, %s17
    %p19 = scmp.eq.s32.totalorder %s18, 0
    %s21 = sadd.s32 %s20, 1
    %s22 = scalar_select %p19, %s20, %s21
    %p25 = pneg %p19
    %p26 = scmp.eq.s32.totalorder %s10, 1
    %p27 = por %p25, %p26
    %p28 = scmp.ne.s32.totalorder %s20, %s23
    %p29 = scmp.eq.s32.totalorder %s10, 0
    %p30 = por %p28, %p29
    %p31 = scmp.ne.s32.totalorder %s20, %s23
    %p32 = scmp.eq.s32.totalorder %s15, 1
    %p33 = por %p31, %p32
    %p34 = scmp.ne.s32.totalorder %s23, %s24
    %p35 = scmp.eq.s32.totalorder %s15, 0
    %p36 = por %p34, %p35
    %p37 = scmp.ne.s32.totalorder %s23, %s24
    %p38 = scmp.eq.s32.totalorder %s16, 1
    %p39 = por %p37, %p38
    %p41 = scmp.ne.s32.totalorder %s24, %s40
    %p42 = scmp.eq.s32.totalorder %s16, 0
    %p43 = por %p41, %p42
    %s44 = ssub.s32 %s10, %s17
    %p45 = scmp.eq.s32.totalorder %s44, 0
    %s47 = sadd.s32 %s46, 1
    %s48 = scalar_select %p45, %s46, %s47
    %p51 = pneg %p45
    %p52 = scmp.eq.s32.totalorder %s10, 1
    %p53 = por %p51, %p52
    %p54 = scmp.ne.s32.totalorder %s46, %s49
    %p55 = scmp.eq.s32.totalorder %s10, 0
    %p56 = por %p54, %p55
    %p57 = scmp.ne.s32.totalorder %s46, %s49
    %p58 = scmp.eq.s32.totalorder %s15, 1
    %p59 = por %p57, %p58
    %p60 = scmp.ne.s32.totalorder %s49, %s50
    %p61 = scmp.eq.s32.totalorder %s15, 0
    %p62 = por %p60, %p61
    %p63 = scmp.ne.s32.totalorder %s49, %s50
    %p64 = scmp.eq.s32.totalorder %s16, 1
    %p65 = por %p63, %p64
    %p67 = scmp.ne.s32.totalorder %s50, %s66
    %p68 = scmp.eq.s32.totalorder %s16, 0
    %p69 = por %p67, %p68
    %s71 = sadd.s32 %s70, 1
    %p74 = scmp.eq.s32.totalorder %s10, 1
    %p75 = scmp.ne.s32.totalorder %s70, %s72
    %p76 = scmp.eq.s32.totalorder %s10, 0
    %p77 = por %p75, %p76
    %p78 = scmp.ne.s32.totalorder %s70, %s72
    %p79 = scmp.eq.s32.totalorder %s15, 1
    %p80 = por %p78, %p79
    %p81 = scmp.ne.s32.totalorder %s72, %s73
    %p82 = scmp.eq.s32.totalorder %s15, 0
    %p83 = por %p81, %p82
    %p84 = scmp.ne.s32.totalorder %s72, %s73
    %p85 = scmp.eq.s32.totalorder %s16, 1
    %p86 = por %p84, %p85
    %p88 = scmp.ne.s32.totalorder %s73, %s87
    %p89 = scmp.eq.s32.totalorder %s16, 0
    %p90 = por %p88, %p89
    %s92 = sadd.s32 %s91, 1
    %p95 = scmp.eq.s32.totalorder %s10, 1
    %p96 = scmp.ne.s32.totalorder %s91, %s93
    %p97 = scmp.eq.s32.totalorder %s10, 0
    %p98 = por %p96, %p97
    %p99 = scmp.ne.s32.totalorder %s91, %s93
    %p100 = scmp.eq.s32.totalorder %s15, 1
    %p101 = por %p99, %p100
    %p102 = scmp.ne.s32.totalorder %s93, %s94
    %p103 = scmp.eq.s32.totalorder %s15, 0
    %p104 = por %p102, %p103
    %p105 = scmp.ne.s32.totalorder %s93, %s94
    %p106 = scmp.eq.s32.totalorder %s16, 1
    %p107 = por %p105, %p106
    %p109 = scmp.ne.s32.totalorder %s94, %s108
    %p110 = scmp.eq.s32.totalorder %s16, 0
    %p111 = por %p109, %p110
    %s112 = ssub.s32 %s10, %s17
    %p113 = scmp.eq.s32.totalorder %s112, 0
    %s115 = sadd.s32 %s114, 1
    %s116 = scalar_select %p113, %s114, %s115
    %p119 = pneg %p113
    %p120 = scmp.eq.s32.totalorder %s10, 1
    %p121 = por %p119, %p120
    %p122 = scmp.ne.s32.totalorder %s114, %s117
    %p123 = scmp.eq.s32.totalorder %s10, 0
    %p124 = por %p122, %p123
    %p125 = scmp.ne.s32.totalorder %s114, %s117
    %p126 = scmp.eq.s32.totalorder %s15, 1
    %p127 = por %p125, %p126
    %p128 = scmp.ne.s32.totalorder %s117, %s118
    %p129 = scmp.eq.s32.totalorder %s15, 0
    %p130 = por %p128, %p129
    %p131 = scmp.ne.s32.totalorder %s117, %s118
    %p132 = scmp.eq.s32.totalorder %s16, 1
    %p133 = por %p131, %p132
    %p135 = scmp.ne.s32.totalorder %s118, %s134
    %p136 = scmp.eq.s32.totalorder %s16, 0
    %p137 = por %p135, %p136
    %p138 = scmp.le.s32.totalorder 1, %s10
    %p139 = scmp.lt.s32.totalorder %s10, 3
    %p140 = pnand %p138, %p139
    %p141 = pneg %p140
    // Predicated region
    $region9: #{_lambda_.7} parent=5 // pred_check
      _
    $region10: #{_lambda_.7} parent=5 // pred_check_branch
      %143 = sbr.rel (%p140) target = $region12
    $region11: #{_lambda_.7} parent=5 // pred_region
      %s144 = ssub.s32 %s10, 1
      // Predicated region
      $region13: #{_lambda_.7} parent=11 // pred_check
        %p145 = pneg %p83
      $region14: #{_lambda_.7} parent=11 // pred_check_branch
        %147 = sbr.rel (%p145) target = $region16
      $region15: #{_lambda_.7} parent=11 // pred_region
        _
      $region16: #{_lambda_.7} parent=11 // pred_fallthru
        _
      // Predicated region
      $region17: #{_lambda_.7} parent=11 // pred_check
        %p148 = pneg %p104
      $region18: #{_lambda_.7} parent=11 // pred_check_branch
        %150 = sbr.rel (%p148) target = $region20
      $region19: #{_lambda_.7} parent=11 // pred_region
        _
      $region20: #{_lambda_.7} parent=11 // pred_fallthru
        _
    $region12: #{_lambda_.7} parent=5 // pred_fallthru
      _
    %p151 = scmp.lt.s32.totalorder %s10, 2
    // Predicated region
    $region21: #{_lambda_.7} parent=5 // pred_check
      %p152 = pneg %p151
    $region22: #{_lambda_.7} parent=5 // pred_check_branch
      %154 = sbr.rel (%p152) target = $region24
    $region23: #{_lambda_.7} parent=5 // pred_region
      // Predicated region
      $region25: #{_lambda_.7} parent=23 // pred_check
        %p155 = pneg %p30
      $region26: #{_lambda_.7} parent=23 // pred_check_branch
        %157 = sbr.rel (%p155) target = $region28
      $region27: #{_lambda_.7} parent=23 // pred_region
        %s158 = smul.u32 32, %s10
        %p159 = scmp.lt.s32.totalorder %s158, 63
        %s160 = scalar_select %p159, %s158, 63
        %s161 = smul.addr %s160, 8
        %s162 = scalar_lea.vmem %s0, %s161
        %s163 = smul.u32 32, %s10
      $region28: #{_lambda_.7} parent=23 // pred_fallthru
        _
      // Predicated region
      $region29: #{_lambda_.7} parent=23 // pred_check
        %p164 = pneg %p56
      $region30: #{_lambda_.7} parent=23 // pred_check_branch
        %166 = sbr.rel (%p164) target = $region32
      $region31: #{_lambda_.7} parent=23 // pred_region
        %s167 = smul.u32 32, %s10
        %p168 = scmp.lt.s32.totalorder %s167, 63
        %s169 = scalar_select %p168, %s167, 63
        %s170 = smul.addr %s169, 8
        %s171 = scalar_lea.vmem %s1, %s170
        %s172 = smul.u32 32, %s10
      $region32: #{_lambda_.7} parent=23 // pred_fallthru
        _
    $region24: #{_lambda_.7} parent=5 // pred_fallthru
      _
    %p173 = scmp.le.s32.totalorder 1, %s10
    %p174 = scmp.lt.s32.totalorder %s10, 3
    %p175 = pnand %p173, %p174
    %p176 = pneg %p175
    // Predicated region
    $region33: #{_lambda_.7} parent=5 // pred_check
      _
    $region34: #{_lambda_.7} parent=5 // pred_check_branch
      %178 = sbr.rel (%p175) target = $region36
    $region35: #{_lambda_.7} parent=5 // pred_region
      %s179 = ssub.s32 %s10, 1
      %s180 = smul.u32 32, %s15
      %p181 = scmp.lt.s32.totalorder %s180, 63
      %s182 = scalar_select %p181, %s180, 63
      %s183 = smul.addr %s182, 8
      %s184 = scalar_lea.vmem %s0, %s183
      %p185 = pneg %p36
      %p186 = pneg %p33
      %s187 = smul.u32 32, %s15
      %p188 = scmp.lt.s32.totalorder %s187, 63
      %s189 = scalar_select %p188, %s187, 63
      %s190 = smul.addr %s189, 8
      %s191 = scalar_lea.vmem %s1, %s190
      %p192 = pneg %p62
      %p193 = pneg %p59
      %p194 = pneg %p83
      %p195 = pneg %p80
      %p196 = pneg %p104
      %p197 = pneg %p101
      %p198 = pneg %p130
      %p199 = pneg %p127
      %s200 = smul.u32 32, %s15
      %p201 = scmp.lt.s32.totalorder %s200, 63
      %s202 = scalar_select %p201, %s200, 63
      %s203 = smul.addr %s202, 8
      %s204 = scalar_lea.vmem %s4, %s203
      %s205 = smul.u32 32, %s15
      %p206 = scmp.lt.s32.totalorder %s205, 63
      %s207 = scalar_select %p206, %s205, 63
      %s208 = smul.addr %s207, 8
      %s209 = scalar_lea.vmem %s0, %s208
      %s210 = smul.u32 32, %s15
      %s211 = smul.u32 32, %s15
      %p212 = scmp.lt.s32.totalorder %s211, 63
      %s213 = scalar_select %p212, %s211, 63
      %s214 = smul.addr %s213, 8
      %s215 = scalar_lea.vmem %s1, %s214
      %s216 = smul.u32 32, %s15
      %s217 = smul.u32 32, %s15
      %p218 = scmp.lt.s32.totalorder %s217, 63
      %s219 = scalar_select %p218, %s217, 63
      %s220 = smul.addr %s219, 8
      %s221 = scalar_lea.vmem %s4, %s220
      %s222 = smul.u32 32, %s15
      %v223 = vld [vmem:[%s209] sm:$0xff]
      %v224 = vld [vmem:[%s209 + $0x8] sm:$0xff]
      %v225 = vld [vmem:[%s209 + $0x10] sm:$0xff]
      %v226 = vld [vmem:[%s209 + $0x18] sm:$0xff]
      %v227 = vld [vmem:[%s209 + $0x20] sm:$0xff]
      %v228 = vld [vmem:[%s209 + $0x28] sm:$0xff]
      %v229 = vld [vmem:[%s209 + $0x30] sm:$0xff]
      %v230 = vld [vmem:[%s209 + $0x38] sm:$0xff]
      %v231 = vld [vmem:[%s209 + $0x40] sm:$0xff]
      %v232 = vld [vmem:[%s209 + $0x48] sm:$0xff]
      %v233 = vld [vmem:[%s209 + $0x50] sm:$0xff]
      %v234 = vld [vmem:[%s209 + $0x58] sm:$0xff]
      %v235 = vld [vmem:[%s209 + $0x60] sm:$0xff]
      %v236 = vld [vmem:[%s209 + $0x68] sm:$0xff]
      %v237 = vld [vmem:[%s209 + $0x70] sm:$0xff]
      %v238 = vld [vmem:[%s209 + $0x78] sm:$0xff]
      %v239 = vld [vmem:[%s209 + $0x80] sm:$0xff]
      %v240 = vld [vmem:[%s209 + $0x88] sm:$0xff]
      %v241 = vld [vmem:[%s209 + $0x90] sm:$0xff]
      %v242 = vld [vmem:[%s209 + $0x98] sm:$0xff]
      %v243 = vld [vmem:[%s209 + $0xa0] sm:$0xff]
      %v244 = vld [vmem:[%s209 + $0xa8] sm:$0xff]
      %v245 = vld [vmem:[%s209 + $0xb0] sm:$0xff]
      %v246 = vld [vmem:[%s209 + $0xb8] sm:$0xff]
      %v247 = vld [vmem:[%s209 + $0xc0] sm:$0xff]
      %v248 = vld [vmem:[%s209 + $0xc8] sm:$0xff]
      %v249 = vld [vmem:[%s209 + $0xd0] sm:$0xff]
      %v250 = vld [vmem:[%s209 + $0xd8] sm:$0xff]
      %v251 = vld [vmem:[%s209 + $0xe0] sm:$0xff]
      %v252 = vld [vmem:[%s209 + $0xe8] sm:$0xff]
      %v253 = vld [vmem:[%s209 + $0xf0] sm:$0xff]
      %v254 = vld [vmem:[%s209 + $0xf8] sm:$0xff]
      %v255 = vld [vmem:[%s2] sm:$0x1]
      %v257 = vlaneseq
      %v258 = vshrl.u32 %v257, 7
      %v259 = vsub.s32 0, %v258
      %v260 = vrot.slane %v255, %v259
      %v262 = vmul.f32 %v223, %v260
      %v263 = vmul.f32 %v224, %v260
      %v264 = vmul.f32 %v225, %v260
      %v265 = vmul.f32 %v226, %v260
      %v266 = vmul.f32 %v227, %v260
      %v267 = vmul.f32 %v228, %v260
      %v268 = vmul.f32 %v229, %v260
      %v269 = vmul.f32 %v230, %v260
      %v270 = vmul.f32 %v231, %v260
      %v271 = vmul.f32 %v232, %v260
      %v272 = vmul.f32 %v233, %v260
      %v273 = vmul.f32 %v234, %v260
      %v274 = vmul.f32 %v235, %v260
      %v275 = vmul.f32 %v236, %v260
      %v276 = vmul.f32 %v237, %v260
      %v277 = vmul.f32 %v238, %v260
      %v278 = vmul.f32 %v239, %v260
      %v279 = vmul.f32 %v240, %v260
      %v280 = vmul.f32 %v241, %v260
      %v281 = vmul.f32 %v242, %v260
      %v282 = vmul.f32 %v243, %v260
      %v283 = vmul.f32 %v244, %v260
      %v284 = vmul.f32 %v245, %v260
      %v285 = vmul.f32 %v246, %v260
      %v286 = vmul.f32 %v247, %v260
      %v287 = vmul.f32 %v248, %v260
      %v288 = vmul.f32 %v249, %v260
      %v289 = vmul.f32 %v250, %v260
      %v290 = vmul.f32 %v251, %v260
      %v291 = vmul.f32 %v252, %v260
      %v292 = vmul.f32 %v253, %v260
      %v293 = vmul.f32 %v254, %v260
      %v294 = vld [vmem:[%s3] sm:$0x1]
      %v296 = vlaneseq
      %v297 = vshrl.u32 %v296, 7
      %v298 = vsub.s32 0, %v297
      %v299 = vrot.slane %v294, %v298
      %v301 = vadd.f32 %v262, %v299
      %v302 = vadd.f32 %v263, %v299
      %v303 = vadd.f32 %v264, %v299
      %v304 = vadd.f32 %v265, %v299
      %v305 = vadd.f32 %v266, %v299
      %v306 = vadd.f32 %v267, %v299
      %v307 = vadd.f32 %v268, %v299
      %v308 = vadd.f32 %v269, %v299
      %v309 = vadd.f32 %v270, %v299
      %v310 = vadd.f32 %v271, %v299
      %v311 = vadd.f32 %v272, %v299
      %v312 = vadd.f32 %v273, %v299
      %v313 = vadd.f32 %v274, %v299
      %v314 = vadd.f32 %v275, %v299
      %v315 = vadd.f32 %v276, %v299
      %v316 = vadd.f32 %v277, %v299
      %v317 = vadd.f32 %v278, %v299
      %v318 = vadd.f32 %v279, %v299
      %v319 = vadd.f32 %v280, %v299
      %v320 = vadd.f32 %v281, %v299
      %v321 = vadd.f32 %v282, %v299
      %v322 = vadd.f32 %v283, %v299
      %v323 = vadd.f32 %v284, %v299
      %v324 = vadd.f32 %v285, %v299
      %v325 = vadd.f32 %v286, %v299
      %v326 = vadd.f32 %v287, %v299
      %v327 = vadd.f32 %v288, %v299
      %v328 = vadd.f32 %v289, %v299
      %v329 = vadd.f32 %v290, %v299
      %v330 = vadd.f32 %v291, %v299
      %v331 = vadd.f32 %v292, %v299
      %v332 = vadd.f32 %v293, %v299
      %v333 = vld [vmem:[%s215] sm:$0xff]
      %v334 = vld [vmem:[%s215 + $0x8] sm:$0xff]
      %v335 = vld [vmem:[%s215 + $0x10] sm:$0xff]
      %v336 = vld [vmem:[%s215 + $0x18] sm:$0xff]
      %v337 = vld [vmem:[%s215 + $0x20] sm:$0xff]
      %v338 = vld [vmem:[%s215 + $0x28] sm:$0xff]
      %v339 = vld [vmem:[%s215 + $0x30] sm:$0xff]
      %v340 = vld [vmem:[%s215 + $0x38] sm:$0xff]
      %v341 = vld [vmem:[%s215 + $0x40] sm:$0xff]
      %v342 = vld [vmem:[%s215 + $0x48] sm:$0xff]
      %v343 = vld [vmem:[%s215 + $0x50] sm:$0xff]
      %v344 = vld [vmem:[%s215 + $0x58] sm:$0xff]
      %v345 = vld [vmem:[%s215 + $0x60] sm:$0xff]
      %v346 = vld [vmem:[%s215 + $0x68] sm:$0xff]
      %v347 = vld [vmem:[%s215 + $0x70] sm:$0xff]
      %v348 = vld [vmem:[%s215 + $0x78] sm:$0xff]
      %v349 = vld [vmem:[%s215 + $0x80] sm:$0xff]
      %v350 = vld [vmem:[%s215 + $0x88] sm:$0xff]
      %v351 = vld [vmem:[%s215 + $0x90] sm:$0xff]
      %v352 = vld [vmem:[%s215 + $0x98] sm:$0xff]
      %v353 = vld [vmem:[%s215 + $0xa0] sm:$0xff]
      %v354 = vld [vmem:[%s215 + $0xa8] sm:$0xff]
      %v355 = vld [vmem:[%s215 + $0xb0] sm:$0xff]
      %v356 = vld [vmem:[%s215 + $0xb8] sm:$0xff]
      %v357 = vld [vmem:[%s215 + $0xc0] sm:$0xff]
      %v358 = vld [vmem:[%s215 + $0xc8] sm:$0xff]
      %v359 = vld [vmem:[%s215 + $0xd0] sm:$0xff]
      %v360 = vld [vmem:[%s215 + $0xd8] sm:$0xff]
      %v361 = vld [vmem:[%s215 + $0xe0] sm:$0xff]
      %v362 = vld [vmem:[%s215 + $0xe8] sm:$0xff]
      %v363 = vld [vmem:[%s215 + $0xf0] sm:$0xff]
      %v364 = vld [vmem:[%s215 + $0xf8] sm:$0xff]
      %v365 = vadd.f32 %v301, %v333
      %v366 = vadd.f32 %v302, %v334
      %v367 = vadd.f32 %v303, %v335
      %v368 = vadd.f32 %v304, %v336
      %v369 = vadd.f32 %v305, %v337
      %v370 = vadd.f32 %v306, %v338
      %v371 = vadd.f32 %v307, %v339
      %v372 = vadd.f32 %v308, %v340
      %v373 = vadd.f32 %v309, %v341
      %v374 = vadd.f32 %v310, %v342
      %v375 = vadd.f32 %v311, %v343
      %v376 = vadd.f32 %v312, %v344
      %v377 = vadd.f32 %v313, %v345
      %v378 = vadd.f32 %v314, %v346
      %v379 = vadd.f32 %v315, %v347
      %v380 = vadd.f32 %v316, %v348
      %v381 = vadd.f32 %v317, %v349
      %v382 = vadd.f32 %v318, %v350
      %v383 = vadd.f32 %v319, %v351
      %v384 = vadd.f32 %v320, %v352
      %v385 = vadd.f32 %v321, %v353
      %v386 = vadd.f32 %v322, %v354
      %v387 = vadd.f32 %v323, %v355
      %v388 = vadd.f32 %v324, %v356
      %v389 = vadd.f32 %v325, %v357
      %v390 = vadd.f32 %v326, %v358
      %v391 = vadd.f32 %v327, %v359
      %v392 = vadd.f32 %v328, %v360
      %v393 = vadd.f32 %v329, %v361
      %v394 = vadd.f32 %v330, %v362
      %v395 = vadd.f32 %v331, %v363
      %v396 = vadd.f32 %v332, %v364
      %v397 = vmax.f32 %v365, 0.0
      %v398 = vmax.f32 %v366, 0.0
      %v399 = vmax.f32 %v367, 0.0
      %v400 = vmax.f32 %v368, 0.0
      %v401 = vmax.f32 %v369, 0.0
      %v402 = vmax.f32 %v370, 0.0
      %v403 = vmax.f32 %v371, 0.0
      %v404 = vmax.f32 %v372, 0.0
      %v405 = vmax.f32 %v373, 0.0
      %v406 = vmax.f32 %v374, 0.0
      %v407 = vmax.f32 %v375, 0.0
      %v408 = vmax.f32 %v376, 0.0
      %v409 = vmax.f32 %v377, 0.0
      %v410 = vmax.f32 %v378, 0.0
      %v411 = vmax.f32 %v379, 0.0
      %v412 = vmax.f32 %v380, 0.0
      %v413 = vmax.f32 %v381, 0.0
      %v414 = vmax.f32 %v382, 0.0
      %v415 = vmax.f32 %v383, 0.0
      %v416 = vmax.f32 %v384, 0.0
      %v417 = vmax.f32 %v385, 0.0
      %v418 = vmax.f32 %v386, 0.0
      %v419 = vmax.f32 %v387, 0.0
      %v420 = vmax.f32 %v388, 0.0
      %v421 = vmax.f32 %v389, 0.0
      %v422 = vmax.f32 %v390, 0.0
      %v423 = vmax.f32 %v391, 0.0
      %v424 = vmax.f32 %v392, 0.0
      %v425 = vmax.f32 %v393, 0.0
      %v426 = vmax.f32 %v394, 0.0
      %v427 = vmax.f32 %v395, 0.0
      %v428 = vmax.f32 %v396, 0.0
      %429 = vst [vmem:[%s221] sm:$0xff] %v397
      %430 = vst [vmem:[%s221 + $0x8] sm:$0xff] %v398
      %431 = vst [vmem:[%s221 + $0x10] sm:$0xff] %v399
      %432 = vst [vmem:[%s221 + $0x18] sm:$0xff] %v400
      %433 = vst [vmem:[%s221 + $0x20] sm:$0xff] %v401
      %434 = vst [vmem:[%s221 + $0x28] sm:$0xff] %v402
      %435 = vst [vmem:[%s221 + $0x30] sm:$0xff] %v403
      %436 = vst [vmem:[%s221 + $0x38] sm:$0xff] %v404
      %437 = vst [vmem:[%s221 + $0x40] sm:$0xff] %v405
      %438 = vst [vmem:[%s221 + $0x48] sm:$0xff] %v406
      %439 = vst [vmem:[%s221 + $0x50] sm:$0xff] %v407
      %440 = vst [vmem:[%s221 + $0x58] sm:$0xff] %v408
      %441 = vst [vmem:[%s221 + $0x60] sm:$0xff] %v409
      %442 = vst [vmem:[%s221 + $0x68] sm:$0xff] %v410
      %443 = vst [vmem:[%s221 + $0x70] sm:$0xff] %v411
      %444 = vst [vmem:[%s221 + $0x78] sm:$0xff] %v412
      %445 = vst [vmem:[%s221 + $0x80] sm:$0xff] %v413
      %446 = vst [vmem:[%s221 + $0x88] sm:$0xff] %v414
      %447 = vst [vmem:[%s221 + $0x90] sm:$0xff] %v415
      %448 = vst [vmem:[%s221 + $0x98] sm:$0xff] %v416
      %449 = vst [vmem:[%s221 + $0xa0] sm:$0xff] %v417
      %450 = vst [vmem:[%s221 + $0xa8] sm:$0xff] %v418
      %451 = vst [vmem:[%s221 + $0xb0] sm:$0xff] %v419
      %452 = vst [vmem:[%s221 + $0xb8] sm:$0xff] %v420
      %453 = vst [vmem:[%s221 + $0xc0] sm:$0xff] %v421
      %454 = vst [vmem:[%s221 + $0xc8] sm:$0xff] %v422
      %455 = vst [vmem:[%s221 + $0xd0] sm:$0xff] %v423
      %456 = vst [vmem:[%s221 + $0xd8] sm:$0xff] %v424
      %457 = vst [vmem:[%s221 + $0xe0] sm:$0xff] %v425
      %458 = vst [vmem:[%s221 + $0xe8] sm:$0xff] %v426
      %459 = vst [vmem:[%s221 + $0xf0] sm:$0xff] %v427
      %460 = vst [vmem:[%s221 + $0xf8] sm:$0xff] %v428
      %s461 = smul.u32 32, %s15
      %p462 = scmp.lt.s32.totalorder %s461, 63
      %s463 = scalar_select %p462, %s461, 63
      %s464 = smul.addr %s463, 8
      %s465 = scalar_lea.vmem %s4, %s464
      // Predicated region
      $region37: #{_lambda_.7} parent=35 // pred_check
        %p466 = pneg %p127
      $region38: #{_lambda_.7} parent=35 // pred_check_branch
        %468 = sbr.rel (%p466) target = $region40
      $region39: #{_lambda_.7} parent=35 // pred_region
        %s469 = smul.u32 32, %s15
      $region40: #{_lambda_.7} parent=35 // pred_fallthru
        _
    $region36: #{_lambda_.7} parent=5 // pred_fallthru
      _
    %p470 = scmp.le.s32.totalorder 2, %s10
    // Predicated region
    $region41: #{_lambda_.7} parent=5 // pred_check
      %p471 = pneg %p470
    $region42: #{_lambda_.7} parent=5 // pred_check_branch
      %473 = sbr.rel (%p471) target = $region44
    $region43: #{_lambda_.7} parent=5 // pred_region
      %s474 = ssub.s32 %s10, 2
      // Predicated region
      $region45: #{_lambda_.7} parent=43 // pred_check
        %p475 = pneg %p133
      $region46: #{_lambda_.7} parent=43 // pred_check_branch
        %477 = sbr.rel (%p475) target = $region48
      $region47: #{_lambda_.7} parent=43 // pred_region
        %s478 = smul.u32 32, %s16
        %p479 = scmp.lt.s32.totalorder %s478, 63
        %s480 = scalar_select %p479, %s478, 63
        %s481 = smul.addr %s480, 8
        %s482 = scalar_lea.vmem %s4, %s481
      $region48: #{_lambda_.7} parent=43 // pred_fallthru
        _
    $region44: #{_lambda_.7} parent=5 // pred_fallthru
      _
  $region6: #{_lambda_.7} parent=0 // loop_footer
    %s14 = sadd.s32 1, %s10
  $region7: #{_lambda_.7} parent=0 // loop_footer_branch
    %9 = sbr.rel target = $region3
  $region8: #{_lambda_.7} parent=0 // loop_exit
    _

// kernel: _lambda_.4
$region0: #{_lambda_.4}
  #allocation0 [shape = 'u32[]', space=smem, size = 0x4, offset = 0x4, fixed_abs, tag = 'smem constant byte address 0x4 - core index']
  #allocation1 [shape = 'u32[144,128]{1,0:T(1,128)}', space=vmem, size = 0x12000, scoped, tag = 'internal scratch']
  %s0 = inlined_call_operand.vmem [shape: f32[512,128], index: 0, kind: input, shape index: {}]
  %s1 = inlined_call_operand.vmem [shape: f32[128,128], index: 1, kind: input, shape index: {}]
  %s2 = inlined_call_operand.vmem [shape: f32[512,128], index: 2, kind: output, shape index: {0}]
  %s3 = inlined_call_operand.vmem [shape: f32[2,2,128], index: 3, kind: output, shape index: {1}]
  %4 = xla_tuple %s2, %s3
  %s5 = sld [smem:[#allocation0]]
  $region49: #{_lambda_.4} parent=0
    _
  %s7 = ssub.s32 1, %s5
  %s8 = scalar_select 0, %s7, %s5
  loop: start=0, step=1, limit=4
  $region2: #{_lambda_.4} parent=0 // loop_pre_header
    _
  $region3: #{_lambda_.4} parent=0 // loop_header
    %s10 = sphi 0, %s14
    %p11 = scmp.ge.s32.totalorder %s10, 4
    %s20 = sphi 0, %s22
    %s23 = sphi 0, %s20
    %s24 = sphi 0, %s23
    %s40 = sphi 0, %s24
    %s44 = sphi 0, %s44
    %s46 = sphi 0, %s44
    %s47 = sphi 0, %s46
    %s61 = sphi 0, %s47
    %s67 = sphi 0, %s69
    %s70 = sphi 0, %s67
    %s71 = sphi 0, %s70
    %s87 = sphi 0, %s71
    %s93 = sphi 0, %s95
    %s96 = sphi 0, %s93
    %s97 = sphi 0, %s96
    %s113 = sphi 0, %s97
  $region4: #{_lambda_.4} parent=0 // loop_header_branch
    %13 = sbr.rel (%p11) target = $region8
  $region5: #{_lambda_.4} parent=0 // loop_body
    %s15 = ssub.s32 %s10, 1
    %s16 = ssub.s32 %s10, 2
    %s17 = sadd.s32 %s10, 1
    %s18 = ssub.s32 %s10, %s17
    %p19 = scmp.eq.s32.totalorder %s18, 0
    %s21 = sadd.s32 %s20, 1
    %s22 = scalar_select %p19, %s20, %s21
    %p25 = pneg %p19
    %p26 = scmp.eq.s32.totalorder %s10, 1
    %p27 = por %p25, %p26
    %p28 = scmp.ne.s32.totalorder %s20, %s23
    %p29 = scmp.eq.s32.totalorder %s10, 0
    %p30 = por %p28, %p29
    %p31 = scmp.ne.s32.totalorder %s20, %s23
    %p32 = scmp.eq.s32.totalorder %s15, 1
    %p33 = por %p31, %p32
    %p34 = scmp.ne.s32.totalorder %s23, %s24
    %p35 = scmp.eq.s32.totalorder %s15, 0
    %p36 = por %p34, %p35
    %p37 = scmp.ne.s32.totalorder %s23, %s24
    %p38 = scmp.eq.s32.totalorder %s16, 1
    %p39 = por %p37, %p38
    %p41 = scmp.ne.s32.totalorder %s24, %s40
    %p42 = scmp.eq.s32.totalorder %s16, 0
    %p43 = por %p41, %p42
    %s45 = sadd.s32 %s44, 1
    %p48 = scmp.eq.s32.totalorder %s10, 1
    %p49 = scmp.ne.s32.totalorder %s44, %s46
    %p50 = scmp.eq.s32.totalorder %s10, 0
    %p51 = por %p49, %p50
    %p52 = scmp.ne.s32.totalorder %s44, %s46
    %p53 = scmp.eq.s32.totalorder %s15, 1
    %p54 = por %p52, %p53
    %p55 = scmp.ne.s32.totalorder %s46, %s47
    %p56 = scmp.eq.s32.totalorder %s15, 0
    %p57 = por %p55, %p56
    %p58 = scmp.ne.s32.totalorder %s46, %s47
    %p59 = scmp.eq.s32.totalorder %s16, 1
    %p60 = por %p58, %p59
    %p62 = scmp.ne.s32.totalorder %s47, %s61
    %p63 = scmp.eq.s32.totalorder %s16, 0
    %p64 = por %p62, %p63
    %s65 = ssub.s32 %s10, %s17
    %p66 = scmp.eq.s32.totalorder %s65, 0
    %s68 = sadd.s32 %s67, 1
    %s69 = scalar_select %p66, %s67, %s68
    %p72 = pneg %p66
    %p73 = scmp.eq.s32.totalorder %s10, 1
    %p74 = por %p72, %p73
    %p75 = scmp.ne.s32.totalorder %s67, %s70
    %p76 = scmp.eq.s32.totalorder %s10, 0
    %p77 = por %p75, %p76
    %p78 = scmp.ne.s32.totalorder %s67, %s70
    %p79 = scmp.eq.s32.totalorder %s15, 1
    %p80 = por %p78, %p79
    %p81 = scmp.ne.s32.totalorder %s70, %s71
    %p82 = scmp.eq.s32.totalorder %s15, 0
    %p83 = por %p81, %p82
    %p84 = scmp.ne.s32.totalorder %s70, %s71
    %p85 = scmp.eq.s32.totalorder %s16, 1
    %p86 = por %p84, %p85
    %p88 = scmp.ne.s32.totalorder %s71, %s87
    %p89 = scmp.eq.s32.totalorder %s16, 0
    %p90 = por %p88, %p89
    %s91 = ssub.s32 %s10, %s17
    %p92 = scmp.eq.s32.totalorder %s91, 0
    %s94 = sadd.s32 %s93, 1
    %s95 = scalar_select %p92, %s93, %s94
    %p98 = pneg %p92
    %p99 = scmp.eq.s32.totalorder %s10, 1
    %p100 = por %p98, %p99
    %p101 = scmp.ne.s32.totalorder %s93, %s96
    %p102 = scmp.eq.s32.totalorder %s10, 0
    %p103 = por %p101, %p102
    %p104 = scmp.ne.s32.totalorder %s93, %s96
    %p105 = scmp.eq.s32.totalorder %s15, 1
    %p106 = por %p104, %p105
    %p107 = scmp.ne.s32.totalorder %s96, %s97
    %p108 = scmp.eq.s32.totalorder %s15, 0
    %p109 = por %p107, %p108
    %p110 = scmp.ne.s32.totalorder %s96, %s97
    %p111 = scmp.eq.s32.totalorder %s16, 1
    %p112 = por %p110, %p111
    %p114 = scmp.ne.s32.totalorder %s97, %s113
    %p115 = scmp.eq.s32.totalorder %s16, 0
    %p116 = por %p114, %p115
    %p117 = scmp.le.s32.totalorder 1, %s10
    %p118 = scmp.lt.s32.totalorder %s10, 3
    %p119 = pnand %p117, %p118
    %p120 = pneg %p119
    // Predicated region
    $region9: #{_lambda_.4} parent=5 // pred_check
      _
    $region10: #{_lambda_.4} parent=5 // pred_check_branch
      %122 = sbr.rel (%p119) target = $region12
    $region11: #{_lambda_.4} parent=5 // pred_region
      %s123 = ssub.s32 %s10, 1
      // Predicated region
      $region13: #{_lambda_.4} parent=11 // pred_check
        %p124 = pneg %p57
      $region14: #{_lambda_.4} parent=11 // pred_check_branch
        %126 = sbr.rel (%p124) target = $region16
      $region15: #{_lambda_.4} parent=11 // pred_region
        _
      $region16: #{_lambda_.4} parent=11 // pred_fallthru
        _
    $region12: #{_lambda_.4} parent=5 // pred_fallthru
      _
    %p127 = scmp.lt.s32.totalorder %s10, 2
    // Predicated region
    $region17: #{_lambda_.4} parent=5 // pred_check
      %p128 = pneg %p127
    $region18: #{_lambda_.4} parent=5 // pred_check_branch
      %130 = sbr.rel (%p128) target = $region20
    $region19: #{_lambda_.4} parent=5 // pred_region
      // Predicated region
      $region21: #{_lambda_.4} parent=19 // pred_check
        %p131 = pneg %p30
      $region22: #{_lambda_.4} parent=19 // pred_check_branch
        %133 = sbr.rel (%p131) target = $region24
      $region23: #{_lambda_.4} parent=19 // pred_region
        %s134 = smul.u32 32, %s10
        %p135 = scmp.lt.s32.totalorder %s134, 63
        %s136 = scalar_select %p135, %s134, 63
        %s137 = smul.addr %s136, 8
        %s138 = scalar_lea.vmem %s0, %s137
        %s139 = smul.u32 32, %s10
      $region24: #{_lambda_.4} parent=19 // pred_fallthru
        _
    $region20: #{_lambda_.4} parent=5 // pred_fallthru
      _
    %p140 = scmp.le.s32.totalorder 1, %s10
    %p141 = scmp.lt.s32.totalorder %s10, 3
    %p142 = pnand %p140, %p141
    %p143 = pneg %p142
    // Predicated region
    $region25: #{_lambda_.4} parent=5 // pred_check
      _
    $region26: #{_lambda_.4} parent=5 // pred_check_branch
      %145 = sbr.rel (%p142) target = $region28
    $region27: #{_lambda_.4} parent=5 // pred_region
      %s146 = ssub.s32 %s10, 1
      %s147 = smul.u32 32, %s15
      %p148 = scmp.lt.s32.totalorder %s147, 63
      %s149 = scalar_select %p148, %s147, 63
      %s150 = smul.addr %s149, 8
      %s151 = scalar_lea.vmem %s0, %s150
      %p152 = pneg %p36
      %p153 = pneg %p33
      %p154 = pneg %p57
      %p155 = pneg %p54
      %p156 = pneg %p83
      %p157 = pneg %p80
      %s158 = smul.u32 32, %s15
      %p159 = scmp.lt.s32.totalorder %s158, 63
      %s160 = scalar_select %p159, %s158, 63
      %s161 = smul.addr %s160, 8
      %s162 = scalar_lea.vmem %s2, %s161
      %p163 = pneg %p109
      %p164 = pneg %p106
      %p165 = scmp.lt.s32.totalorder %s15, 1
      %s166 = scalar_select %p165, %s15, 1
      %s167 = smul.addr %s166, 2
      %s168 = scalar_lea.vmem %s3, %s167
      %s169 = smul.u32 32, %s15
      %p170 = scmp.lt.s32.totalorder %s169, 63
      %s171 = scalar_select %p170, %s169, 63
      %s172 = smul.addr %s171, 8
      %s173 = scalar_lea.vmem %s0, %s172
      %s174 = smul.u32 32, %s15
      %s175 = smul.u32 32, %s15
      %p176 = scmp.lt.s32.totalorder %s175, 63
      %s177 = scalar_select %p176, %s175, 63
      %s178 = smul.addr %s177, 8
      %s179 = scalar_lea.vmem %s2, %s178
      %s180 = smul.u32 32, %s15
      %p181 = scmp.lt.s32.totalorder %s15, 1
      %s182 = scalar_select %p181, %s15, 1
      %s183 = smul.addr %s182, 2
      %s184 = scalar_lea.vmem %s3, %s183
      %v185 = vld [vmem:[%s173] sm:$0xff]
      %v186 = vld [vmem:[%s173 + $0x8] sm:$0xff]
      %v187 = vld [vmem:[%s173 + $0x10] sm:$0xff]
      %v188 = vld [vmem:[%s173 + $0x18] sm:$0xff]
      %v189 = vld [vmem:[%s173 + $0x20] sm:$0xff]
      %v190 = vld [vmem:[%s173 + $0x28] sm:$0xff]
      %v191 = vld [vmem:[%s173 + $0x30] sm:$0xff]
      %v192 = vld [vmem:[%s173 + $0x38] sm:$0xff]
      %v193 = vld [vmem:[%s173 + $0x40] sm:$0xff]
      %v194 = vld [vmem:[%s173 + $0x48] sm:$0xff]
      %v195 = vld [vmem:[%s173 + $0x50] sm:$0xff]
      %v196 = vld [vmem:[%s173 + $0x58] sm:$0xff]
      %v197 = vld [vmem:[%s173 + $0x60] sm:$0xff]
      %v198 = vld [vmem:[%s173 + $0x68] sm:$0xff]
      %v199 = vld [vmem:[%s173 + $0x70] sm:$0xff]
      %v200 = vld [vmem:[%s173 + $0x78] sm:$0xff]
      %v201 = vld [vmem:[%s173 + $0x80] sm:$0xff]
      %v202 = vld [vmem:[%s173 + $0x88] sm:$0xff]
      %v203 = vld [vmem:[%s173 + $0x90] sm:$0xff]
      %v204 = vld [vmem:[%s173 + $0x98] sm:$0xff]
      %v205 = vld [vmem:[%s173 + $0xa0] sm:$0xff]
      %v206 = vld [vmem:[%s173 + $0xa8] sm:$0xff]
      %v207 = vld [vmem:[%s173 + $0xb0] sm:$0xff]
      %v208 = vld [vmem:[%s173 + $0xb8] sm:$0xff]
      %v209 = vld [vmem:[%s173 + $0xc0] sm:$0xff]
      %v210 = vld [vmem:[%s173 + $0xc8] sm:$0xff]
      %v211 = vld [vmem:[%s173 + $0xd0] sm:$0xff]
      %v212 = vld [vmem:[%s173 + $0xd8] sm:$0xff]
      %v213 = vld [vmem:[%s173 + $0xe0] sm:$0xff]
      %v214 = vld [vmem:[%s173 + $0xe8] sm:$0xff]
      %v215 = vld [vmem:[%s173 + $0xf0] sm:$0xff]
      %v216 = vld [vmem:[%s173 + $0xf8] sm:$0xff]
      %v217 = vld [vmem:[%s1] sm:$0xff]
      %v218 = vld [vmem:[%s1 + $0x8] sm:$0xff]
      %v219 = vld [vmem:[%s1 + $0x10] sm:$0xff]
      %v220 = vld [vmem:[%s1 + $0x18] sm:$0xff]
      %v221 = vld [vmem:[%s1 + $0x20] sm:$0xff]
      %v222 = vld [vmem:[%s1 + $0x28] sm:$0xff]
      %v223 = vld [vmem:[%s1 + $0x30] sm:$0xff]
      %v224 = vld [vmem:[%s1 + $0x38] sm:$0xff]
      %v225 = vld [vmem:[%s1 + $0x40] sm:$0xff]
      %v226 = vld [vmem:[%s1 + $0x48] sm:$0xff]
      %v227 = vld [vmem:[%s1 + $0x50] sm:$0xff]
      %v228 = vld [vmem:[%s1 + $0x58] sm:$0xff]
      %v229 = vld [vmem:[%s1 + $0x60] sm:$0xff]
      %v230 = vld [vmem:[%s1 + $0x68] sm:$0xff]
      %v231 = vld [vmem:[%s1 + $0x70] sm:$0xff]
      %v232 = vld [vmem:[%s1 + $0x78] sm:$0xff]
      %233 = vmatprep.subr.mxu0 0.0
      %234 = vmatpush1.msra.mxu0 %v217
      %235 = vmatprep.subr.mxu0 0.0
      %236 = vmatpush1.msra.mxu0 %v218
      %237 = vmatprep.subr.mxu0 0.0
      %238 = vmatpush1.msra.mxu0 %v219
      %239 = vmatprep.subr.mxu0 0.0
      %240 = vmatpush1.msra.mxu0 %v220
      %241 = vmatprep.subr.mxu0 0.0
      %242 = vmatpush1.msra.mxu0 %v221
      %243 = vmatprep.subr.mxu0 0.0
      %244 = vmatpush1.msra.mxu0 %v222
      %245 = vmatprep.subr.mxu0 0.0
      %246 = vmatpush1.msra.mxu0 %v223
      %247 = vmatprep.subr.mxu0 0.0
      %248 = vmatpush1.msra.mxu0 %v224
      %249 = vmatprep.subr.mxu0 0.0
      %250 = vmatpush1.msra.mxu0 %v225
      %251 = vmatprep.subr.mxu0 0.0
      %252 = vmatpush1.msra.mxu0 %v226
      %253 = vmatprep.subr.mxu0 0.0
      %254 = vmatpush1.msra.mxu0 %v227
      %255 = vmatprep.subr.mxu0 0.0
      %256 = vmatpush1.msra.mxu0 %v228
      %257 = vmatprep.subr.mxu0 0.0
      %258 = vmatpush1.msra.mxu0 %v229
      %259 = vmatprep.subr.mxu0 0.0
      %260 = vmatpush1.msra.mxu0 %v230
      %261 = vmatprep.subr.mxu0 0.0
      %262 = vmatpush1.msra.mxu0 %v231
      %263 = vmatprep.subr.mxu0 0.0
      %264 = vmatpush1.msra.mxu0 %v232
      %265 = vmatprep.subr.mxu0 0.0
      %266 = vmatpush1.msra.mxu0 0.0
      %267 = vmatprep.subr.mxu0 0.0
      %268 = vmatpush1.msra.mxu0 0.0
      %269 = vmatprep.subr.mxu0 0.0
      %270 = vmatpush1.msra.mxu0 0.0
      %271 = vmatprep.subr.mxu0 0.0
      %272 = vmatpush1.msra.mxu0 0.0
      %273 = vmatprep.subr.mxu0 0.0
      %274 = vmatpush1.msra.mxu0 0.0
      %275 = vmatprep.subr.mxu0 0.0
      %276 = vmatpush1.msra.mxu0 0.0
      %277 = vmatprep.subr.mxu0 0.0
      %278 = vmatpush1.msra.mxu0 0.0
      %279 = vmatprep.subr.mxu0 0.0
      %280 = vmatpush1.msra.mxu0 0.0
      %281 = vmatprep.subr.mxu0 0.0
      %282 = vmatpush1.msra.mxu0 0.0
      %283 = vmatprep.subr.mxu0 0.0
      %284 = vmatpush1.msra.mxu0 0.0
      %285 = vmatprep.subr.mxu0 0.0
      %286 = vmatpush1.msra.mxu0 0.0
      %287 = vmatprep.subr.mxu0 0.0
      %288 = vmatpush1.msra.mxu0 0.0
      %289 = vmatprep.subr.mxu0 0.0
      %290 = vmatpush1.msra.mxu0 0.0
      %291 = vmatprep.subr.mxu0 0.0
      %292 = vmatpush1.msra.mxu0 0.0
      %293 = vmatprep.subr.mxu0 0.0
      %294 = vmatpush1.msra.mxu0 0.0
      %295 = vmatprep.subr.mxu0 0.0
      %296 = vmatpush1.msra.mxu0 0.0
      %297 = vmatprep.mubr.f32.mxu0 0.0
      %298 = vmatmul.mubr.f32.gmra.mrb[0].mxu0 %v185
      %v299 = vpop.f32.mrb[0].mxu0
      %v300 = vadd.f32 0.0, %v299
      %v301 = vpop.f32.mrb[0].mxu0
      %302 = vmatprep.mubr.f32.mxu0 0.0
      %303 = vmatmul.mubr.f32.gmra.mrb[0].mxu0 %v186
      %v304 = vpop.f32.mrb[0].mxu0
      %v305 = vadd.f32 0.0, %v304
      %v306 = vpop.f32.mrb[0].mxu0
      %307 = vmatprep.mubr.f32.mxu0 0.0
      %308 = vmatmul.mubr.f32.gmra.mrb[0].mxu0 %v187
      %v309 = vpop.f32.mrb[0].mxu0
      %v310 = vadd.f32 0.0, %v309
      %v311 = vpop.f32.mrb[0].mxu0
      %312 = vmatprep.mubr.f32.mxu0 0.0
      %313 = vmatmul.mubr.f32.gmra.mrb[0].mxu0 %v188
      %v314 = vpop.f32.mrb[0].mxu0
      %v315 = vadd.f32 0.0, %v314
      %v316 = vpop.f32.mrb[0].mxu0
      %317 = vmatprep.mubr.f32.mxu0 0.0
      %318 = vmatmul.mubr.f32.gmra.mrb[0].mxu0 %v189
      %v319 = vpop.f32.mrb[0].mxu0
      %v320 = vadd.f32 0.0, %v319
      %v321 = vpop.f32.mrb[0].mxu0
      %322 = vmatprep.mubr.f32.mxu0 0.0
      %323 = vmatmul.mubr.f32.gmra.mrb[0].mxu0 %v190
      %v324 = vpop.f32.mrb[0].mxu0
      %v325 = vadd.f32 0.0, %v324
      %v326 = vpop.f32.mrb[0].mxu0
      %327 = vmatprep.mubr.f32.mxu0 0.0
      %328 = vmatmul.mubr.f32.gmra.mrb[0].mxu0 %v191
      %v329 = vpop.f32.mrb[0].mxu0
      %v330 = vadd.f32 0.0, %v329
      %v331 = vpop.f32.mrb[0].mxu0
      %332 = vmatprep.mubr.f32.mxu0 0.0
      %333 = vmatmul.mubr.f32.gmra.mrb[0].mxu0 %v192
      %v334 = vpop.f32.mrb[0].mxu0
      %v335 = vadd.f32 0.0, %v334
      %v336 = vpop.f32.mrb[0].mxu0
      %337 = vmatprep.mubr.f32.mxu0 0.0
      %338 = vmatmul.mubr.f32.gmra.mrb[0].mxu0 %v193
      %v339 = vpop.f32.mrb[0].mxu0
      %v340 = vadd.f32 0.0, %v339
      %v341 = vpop.f32.mrb[0].mxu0
      %342 = vmatprep.mubr.f32.mxu0 0.0
      %343 = vmatmul.mubr.f32.gmra.mrb[0].mxu0 %v194
      %v344 = vpop.f32.mrb[0].mxu0
      %v345 = vadd.f32 0.0, %v344
      %v346 = vpop.f32.mrb[0].mxu0
      %347 = vmatprep.mubr.f32.mxu0 0.0
      %348 = vmatmul.mubr.f32.gmra.mrb[0].mxu0 %v195
      %v349 = vpop.f32.mrb[0].mxu0
      %v350 = vadd.f32 0.0, %v349
      %v351 = vpop.f32.mrb[0].mxu0
      %352 = vmatprep.mubr.f32.mxu0 0.0
      %353 = vmatmul.mubr.f32.gmra.mrb[0].mxu0 %v196
      %v354 = vpop.f32.mrb[0].mxu0
      %v355 = vadd.f32 0.0, %v354
      %v356 = vpop.f32.mrb[0].mxu0
      %357 = vmatprep.mubr.f32.mxu0 0.0
      %358 = vmatmul.mubr.f32.gmra.mrb[0].mxu0 %v197
      %v359 = vpop.f32.mrb[0].mxu0
      %v360 = vadd.f32 0.0, %v359
      %v361 = vpop.f32.mrb[0].mxu0
      %362 = vmatprep.mubr.f32.mxu0 0.0
      %363 = vmatmul.mubr.f32.gmra.mrb[0].mxu0 %v198
      %v364 = vpop.f32.mrb[0].mxu0
      %v365 = vadd.f32 0.0, %v364
      %v366 = vpop.f32.mrb[0].mxu0
      %367 = vmatprep.mubr.f32.mxu0 0.0
      %368 = vmatmul.mubr.f32.gmra.mrb[0].mxu0 %v199
      %v369 = vpop.f32.mrb[0].mxu0
      %v370 = vadd.f32 0.0, %v369
      %v371 = vpop.f32.mrb[0].mxu0
      %372 = vmatprep.mubr.f32.mxu0 0.0
      %373 = vmatmul.mubr.f32.gmra.mrb[0].mxu0 %v200
      %v374 = vpop.f32.mrb[0].mxu0
      %v375 = vadd.f32 0.0, %v374
      %v376 = vpop.f32.mrb[0].mxu0
      %377 = vmatprep.mubr.f32.mxu0 0.0
      %378 = vmatmul.mubr.f32.gmra.mrb[0].mxu0 %v201
      %v379 = vpop.f32.mrb[0].mxu0
      %v380 = vadd.f32 0.0, %v379
      %v381 = vpop.f32.mrb[0].mxu0
      %382 = vmatprep.mubr.f32.mxu0 0.0
      %383 = vmatmul.mubr.f32.gmra.mrb[0].mxu0 %v202
      %v384 = vpop.f32.mrb[0].mxu0
      %v385 = vadd.f32 0.0, %v384
      %v386 = vpop.f32.mrb[0].mxu0
      %387 = vmatprep.mubr.f32.mxu0 0.0
      %388 = vmatmul.mubr.f32.gmra.mrb[0].mxu0 %v203
      %v389 = vpop.f32.mrb[0].mxu0
      %v390 = vadd.f32 0.0, %v389
      %v391 = vpop.f32.mrb[0].mxu0
      %392 = vmatprep.mubr.f32.mxu0 0.0
      %393 = vmatmul.mubr.f32.gmra.mrb[0].mxu0 %v204
      %v394 = vpop.f32.mrb[0].mxu0
      %v395 = vadd.f32 0.0, %v394
      %v396 = vpop.f32.mrb[0].mxu0
      %397 = vmatprep.mubr.f32.mxu0 0.0
      %398 = vmatmul.mubr.f32.gmra.mrb[0].mxu0 %v205
      %v399 = vpop.f32.mrb[0].mxu0
      %v400 = vadd.f32 0.0, %v399
      %v401 = vpop.f32.mrb[0].mxu0
      %402 = vmatprep.mubr.f32.mxu0 0.0
      %403 = vmatmul.mubr.f32.gmra.mrb[0].mxu0 %v206
      %v404 = vpop.f32.mrb[0].mxu0
      %v405 = vadd.f32 0.0, %v404
      %v406 = vpop.f32.mrb[0].mxu0
      %407 = vmatprep.mubr.f32.mxu0 0.0
      %408 = vmatmul.mubr.f32.gmra.mrb[0].mxu0 %v207
      %v409 = vpop.f32.mrb[0].mxu0
      %v410 = vadd.f32 0.0, %v409
      %v411 = vpop.f32.mrb[0].mxu0
      %412 = vmatprep.mubr.f32.mxu0 0.0
      %413 = vmatmul.mubr.f32.gmra.mrb[0].mxu0 %v208
      %v414 = vpop.f32.mrb[0].mxu0
      %v415 = vadd.f32 0.0, %v414
      %v416 = vpop.f32.mrb[0].mxu0
      %417 = vmatprep.mubr.f32.mxu0 0.0
      %418 = vmatmul.mubr.f32.gmra.mrb[0].mxu0 %v209
      %v419 = vpop.f32.mrb[0].mxu0
      %v420 = vadd.f32 0.0, %v419
      %v421 = vpop.f32.mrb[0].mxu0
      %422 = vmatprep.mubr.f32.mxu0 0.0
      %423 = vmatmul.mubr.f32.gmra.mrb[0].mxu0 %v210
      %v424 = vpop.f32.mrb[0].mxu0
      %v425 = vadd.f32 0.0, %v424
      %v426 = vpop.f32.mrb[0].mxu0
      %427 = vmatprep.mubr.f32.mxu0 0.0
      %428 = vmatmul.mubr.f32.gmra.mrb[0].mxu0 %v211
      %v429 = vpop.f32.mrb[0].mxu0
      %v430 = vadd.f32 0.0, %v429
      %v431 = vpop.f32.mrb[0].mxu0
      %432 = vmatprep.mubr.f32.mxu0 0.0
      %433 = vmatmul.mubr.f32.gmra.mrb[0].mxu0 %v212
      %v434 = vpop.f32.mrb[0].mxu0
      %v435 = vadd.f32 0.0, %v434
      %v436 = vpop.f32.mrb[0].mxu0
      %437 = vmatprep.mubr.f32.mxu0 0.0
      %438 = vmatmul.mubr.f32.gmra.mrb[0].mxu0 %v213
      %v439 = vpop.f32.mrb[0].mxu0
      %v440 = vadd.f32 0.0, %v439
      %v441 = vpop.f32.mrb[0].mxu0
      %442 = vmatprep.mubr.f32.mxu0 0.0
      %443 = vmatmul.mubr.f32.gmra.mrb[0].mxu0 %v214
      %v444 = vpop.f32.mrb[0].mxu0
      %v445 = vadd.f32 0.0, %v444
      %v446 = vpop.f32.mrb[0].mxu0
      %447 = vmatprep.mubr.f32.mxu0 0.0
      %448 = vmatmul.mubr.f32.gmra.mrb[0].mxu0 %v215
      %v449 = vpop.f32.mrb[0].mxu0
      %v450 = vadd.f32 0.0, %v449
      %v451 = vpop.f32.mrb[0].mxu0
      %452 = vmatprep.mubr.f32.mxu0 0.0
      %453 = vmatmul.mubr.f32.gmra.mrb[0].mxu0 %v216
      %v454 = vpop.f32.mrb[0].mxu0
      %v455 = vadd.f32 0.0, %v454
      %v456 = vpop.f32.mrb[0].mxu0
      %457 = vdwg.mxu0
      %458 = vst [vmem:[%s179] sm:$0xff] %v300
      %459 = vst [vmem:[%s179 + $0x8] sm:$0xff] %v305
      %460 = vst [vmem:[%s179 + $0x10] sm:$0xff] %v310
      %461 = vst [vmem:[%s179 + $0x18] sm:$0xff] %v315
      %462 = vst [vmem:[%s179 + $0x20] sm:$0xff] %v320
      %463 = vst [vmem:[%s179 + $0x28] sm:$0xff] %v325
      %464 = vst [vmem:[%s179 + $0x30] sm:$0xff] %v330
      %465 = vst [vmem:[%s179 + $0x38] sm:$0xff] %v335
      %466 = vst [vmem:[%s179 + $0x40] sm:$0xff] %v340
      %467 = vst [vmem:[%s179 + $0x48] sm:$0xff] %v345
      %468 = vst [vmem:[%s179 + $0x50] sm:$0xff] %v350
      %469 = vst [vmem:[%s179 + $0x58] sm:$0xff] %v355
      %470 = vst [vmem:[%s179 + $0x60] sm:$0xff] %v360
      %471 = vst [vmem:[%s179 + $0x68] sm:$0xff] %v365
      %472 = vst [vmem:[%s179 + $0x70] sm:$0xff] %v370
      %473 = vst [vmem:[%s179 + $0x78] sm:$0xff] %v375
      %474 = vst [vmem:[%s179 + $0x80] sm:$0xff] %v380
      %475 = vst [vmem:[%s179 + $0x88] sm:$0xff] %v385
      %476 = vst [vmem:[%s179 + $0x90] sm:$0xff] %v390
      %477 = vst [vmem:[%s179 + $0x98] sm:$0xff] %v395
      %478 = vst [vmem:[%s179 + $0xa0] sm:$0xff] %v400
      %479 = vst [vmem:[%s179 + $0xa8] sm:$0xff] %v405
      %480 = vst [vmem:[%s179 + $0xb0] sm:$0xff] %v410
      %481 = vst [vmem:[%s179 + $0xb8] sm:$0xff] %v415
      %482 = vst [vmem:[%s179 + $0xc0] sm:$0xff] %v420
      %483 = vst [vmem:[%s179 + $0xc8] sm:$0xff] %v425
      %484 = vst [vmem:[%s179 + $0xd0] sm:$0xff] %v430
      %485 = vst [vmem:[%s179 + $0xd8] sm:$0xff] %v435
      %486 = vst [vmem:[%s179 + $0xe0] sm:$0xff] %v440
      %487 = vst [vmem:[%s179 + $0xe8] sm:$0xff] %v445
      %488 = vst [vmem:[%s179 + $0xf0] sm:$0xff] %v450
      %489 = vst [vmem:[%s179 + $0xf8] sm:$0xff] %v455
      %v490 = vadd.f32 %v300, %v305
      %v491 = vadd.f32 %v490, %v310
      %v492 = vadd.f32 %v491, %v315
      %v493 = vadd.f32 %v492, %v320
      %v494 = vadd.f32 %v493, %v325
      %v495 = vadd.f32 %v494, %v330
      %v496 = vadd.f32 %v495, %v335
      %v497 = vadd.f32 %v496, %v340
      %v498 = vadd.f32 %v497, %v345
      %v499 = vadd.f32 %v498, %v350
      %v500 = vadd.f32 %v499, %v355
      %v501 = vadd.f32 %v500, %v360
      %v502 = vadd.f32 %v501, %v365
      %v503 = vadd.f32 %v502, %v370
      %v504 = vadd.f32 %v503, %v375
      %v505 = vadd.f32 %v504, %v380
      %v506 = vadd.f32 %v505, %v385
      %v507 = vadd.f32 %v506, %v390
      %v508 = vadd.f32 %v507, %v395
      %v509 = vadd.f32 %v508, %v400
      %v510 = vadd.f32 %v509, %v405
      %v511 = vadd.f32 %v510, %v410
      %v512 = vadd.f32 %v511, %v415
      %v513 = vadd.f32 %v512, %v420
      %v514 = vadd.f32 %v513, %v425
      %v515 = vadd.f32 %v514, %v430
      %v516 = vadd.f32 %v515, %v435
      %v517 = vadd.f32 %v516, %v440
      %v518 = vadd.f32 %v517, %v445
      %v519 = vadd.f32 %v518, %v450
      %v520 = vadd.f32 %v519, %v455
      %v521 = vrot.slane %v520, 4
      %v522 = vadd.f32 %v520, %v521
      %v523 = vrot.slane %v522, 2
      %v524 = vadd.f32 %v522, %v523
      %v525 = vrot.slane %v524, 1
      %v526 = vadd.f32 %v524, %v525
      %v527 = vmul.f32 %v300, %v300
      %v528 = vmul.f32 %v305, %v305
      %v529 = vmul.f32 %v310, %v310
      %v530 = vmul.f32 %v315, %v315
      %v531 = vmul.f32 %v320, %v320
      %v532 = vmul.f32 %v325, %v325
      %v533 = vmul.f32 %v330, %v330
      %v534 = vmul.f32 %v335, %v335
      %v535 = vmul.f32 %v340, %v340
      %v536 = vmul.f32 %v345, %v345
      %v537 = vmul.f32 %v350, %v350
      %v538 = vmul.f32 %v355, %v355
      %v539 = vmul.f32 %v360, %v360
      %v540 = vmul.f32 %v365, %v365
      %v541 = vmul.f32 %v370, %v370
      %v542 = vmul.f32 %v375, %v375
      %v543 = vmul.f32 %v380, %v380
      %v544 = vmul.f32 %v385, %v385
      %v545 = vmul.f32 %v390, %v390
      %v546 = vmul.f32 %v395, %v395
      %v547 = vmul.f32 %v400, %v400
      %v548 = vmul.f32 %v405, %v405
      %v549 = vmul.f32 %v410, %v410
      %v550 = vmul.f32 %v415, %v415
      %v551 = vmul.f32 %v420, %v420
      %v552 = vmul.f32 %v425, %v425
      %v553 = vmul.f32 %v430, %v430
      %v554 = vmul.f32 %v435, %v435
      %v555 = vmul.f32 %v440, %v440
      %v556 = vmul.f32 %v445, %v445
      %v557 = vmul.f32 %v450, %v450
      %v558 = vmul.f32 %v455, %v455
      %v559 = vadd.f32 %v527, %v528
      %v560 = vadd.f32 %v559, %v529
      %v561 = vadd.f32 %v560, %v530
      %v562 = vadd.f32 %v561, %v531
      %v563 = vadd.f32 %v562, %v532
      %v564 = vadd.f32 %v563, %v533
      %v565 = vadd.f32 %v564, %v534
      %v566 = vadd.f32 %v565, %v535
      %v567 = vadd.f32 %v566, %v536
      %v568 = vadd.f32 %v567, %v537
      %v569 = vadd.f32 %v568, %v538
      %v570 = vadd.f32 %v569, %v539
      %v571 = vadd.f32 %v570, %v540
      %v572 = vadd.f32 %v571, %v541
      %v573 = vadd.f32 %v572, %v542
      %v574 = vadd.f32 %v573, %v543
      %v575 = vadd.f32 %v574, %v544
      %v576 = vadd.f32 %v575, %v545
      %v577 = vadd.f32 %v576, %v546
      %v578 = vadd.f32 %v577, %v547
      %v579 = vadd.f32 %v578, %v548
      %v580 = vadd.f32 %v579, %v549
      %v581 = vadd.f32 %v580, %v550
      %v582 = vadd.f32 %v581, %v551
      %v583 = vadd.f32 %v582, %v552
      %v584 = vadd.f32 %v583, %v553
      %v585 = vadd.f32 %v584, %v554
      %v586 = vadd.f32 %v585, %v555
      %v587 = vadd.f32 %v586, %v556
      %v588 = vadd.f32 %v587, %v557
      %v589 = vadd.f32 %v588, %v558
      %v590 = vrot.slane %v589, 4
      %v591 = vadd.f32 %v589, %v590
      %v592 = vrot.slane %v591, 2
      %v593 = vadd.f32 %v591, %v592
      %v594 = vrot.slane %v593, 1
      %v595 = vadd.f32 %v593, %v594
      %vm596 = vcmask 1040384
      %v597 = vsel %vm596, %v526, %v595
      %598 = vst [vmem:[%s184] sm:$0x3] %v597
      %s599 = smul.u32 32, %s15
      %p600 = scmp.lt.s32.totalorder %s599, 63
      %s601 = scalar_select %p600, %s599, 63
      %s602 = smul.addr %s601, 8
      %s603 = scalar_lea.vmem %s2, %s602
      %p604 = scmp.lt.s32.totalorder %s15, 1
      %s605 = scalar_select %p604, %s15, 1
      %s606 = smul.addr %s605, 2
      %s607 = scalar_lea.vmem %s3, %s606
      // Predicated region
      $region29: #{_lambda_.4} parent=27 // pred_check
        %p608 = pneg %p80
      $region30: #{_lambda_.4} parent=27 // pred_check_branch
        %610 = sbr.rel (%p608) target = $region32
      $region31: #{_lambda_.4} parent=27 // pred_region
        %s611 = smul.u32 32, %s15
      $region32: #{_lambda_.4} parent=27 // pred_fallthru
        _
      // Predicated region
      $region33: #{_lambda_.4} parent=27 // pred_check
        %p612 = pneg %p106
      $region34: #{_lambda_.4} parent=27 // pred_check_branch
        %614 = sbr.rel (%p612) target = $region36
      $region35: #{_lambda_.4} parent=27 // pred_region
        _
      $region36: #{_lambda_.4} parent=27 // pred_fallthru
        _
    $region28: #{_lambda_.4} parent=5 // pred_fallthru
      _
    %p615 = scmp.le.s32.totalorder 2, %s10
    // Predicated region
    $region37: #{_lambda_.4} parent=5 // pred_check
      %p616 = pneg %p615
    $region38: #{_lambda_.4} parent=5 // pred_check_branch
      %618 = sbr.rel (%p616) target = $region40
    $region39: #{_lambda_.4} parent=5 // pred_region
      %s619 = ssub.s32 %s10, 2
      // Predicated region
      $region41: #{_lambda_.4} parent=39 // pred_check
        %p620 = pneg %p86
      $region42: #{_lambda_.4} parent=39 // pred_check_branch
        %622 = sbr.rel (%p620) target = $region44
      $region43: #{_lambda_.4} parent=39 // pred_region
        %s623 = smul.u32 32, %s16
        %p624 = scmp.lt.s32.totalorder %s623, 63
        %s625 = scalar_select %p624, %s623, 63
        %s626 = smul.addr %s625, 8
        %s627 = scalar_lea.vmem %s2, %s626
      $region44: #{_lambda_.4} parent=39 // pred_fallthru
        _
      // Predicated region
      $region45: #{_lambda_.4} parent=39 // pred_check
        %p628 = pneg %p112
      $region46: #{_lambda_.4} parent=39 // pred_check_branch
        %630 = sbr.rel (%p628) target = $region48
      $region47: #{_lambda_.4} parent=39 // pred_region
        %p631 = scmp.lt.s32.totalorder %s16, 1
        %s632 = scalar_select %p631, %s16, 1
        %s633 = smul.addr %s632, 2
        %s634 = scalar_lea.vmem %s3, %s633
      $region48: #{_lambda_.4} parent=39 // pred_fallthru
        _
    $region40: #{_lambda_.4} parent=5 // pred_fallthru
      _
  $region6: #{_lambda_.4} parent=0 // loop_footer
    %s14 = sadd.s32 1, %s10
  $region7: #{_lambda_.4} parent=0 // loop_footer_branch
    %9 = sbr.rel target = $region3
  $region8: #{_lambda_.4} parent=0 // loop_exit
    _

// kernel: _lambda_.6
$region0: #{_lambda_.6}
  #allocation0 [shape = 'u32[]', space=smem, size = 0x4, offset = 0x4, fixed_abs, tag = 'smem constant byte address 0x4 - core index']
  #allocation1 [shape = 'u32[144,128]{1,0:T(1,128)}', space=vmem, size = 0x12000, scoped, tag = 'internal scratch']
  %s0 = inlined_call_operand.vmem [shape: f32[512,128], index: 0, kind: input, shape index: {}]
  %s1 = inlined_call_operand.vmem [shape: f32[1,128], index: 1, kind: input, shape index: {}]
  %s2 = inlined_call_operand.vmem [shape: f32[1,128], index: 2, kind: input, shape index: {}]
  %s3 = inlined_call_operand.vmem [shape: f32[128,128], index: 3, kind: input, shape index: {}]
  %s4 = inlined_call_operand.vmem [shape: f32[512,128], index: 4, kind: output, shape index: {0}]
  %s5 = inlined_call_operand.vmem [shape: f32[2,2,128], index: 5, kind: output, shape index: {1}]
  %6 = xla_tuple %s4, %s5
  %s7 = sld [smem:[#allocation0]]
  $region57: #{_lambda_.6} parent=0
    _
  %s9 = ssub.s32 1, %s7
  %s10 = scalar_select 0, %s9, %s7
  loop: start=0, step=1, limit=4
  $region2: #{_lambda_.6} parent=0 // loop_pre_header
    _
  $region3: #{_lambda_.6} parent=0 // loop_header
    %s12 = sphi 0, %s16
    %p13 = scmp.ge.s32.totalorder %s12, 4
    %s22 = sphi 0, %s24
    %s25 = sphi 0, %s22
    %s26 = sphi 0, %s25
    %s42 = sphi 0, %s26
    %s46 = sphi 0, %s46
    %s48 = sphi 0, %s46
    %s49 = sphi 0, %s48
    %s63 = sphi 0, %s49
    %s67 = sphi 0, %s67
    %s69 = sphi 0, %s67
    %s70 = sphi 0, %s69
    %s84 = sphi 0, %s70
    %s88 = sphi 0, %s88
    %s90 = sphi 0, %s88
    %s91 = sphi 0, %s90
    %s105 = sphi 0, %s91
    %s111 = sphi 0, %s113
    %s114 = sphi 0, %s111
    %s115 = sphi 0, %s114
    %s131 = sphi 0, %s115
    %s137 = sphi 0, %s139
    %s140 = sphi 0, %s137
    %s141 = sphi 0, %s140
    %s157 = sphi 0, %s141
  $region4: #{_lambda_.6} parent=0 // loop_header_branch
    %15 = sbr.rel (%p13) target = $region8
  $region5: #{_lambda_.6} parent=0 // loop_body
    %s17 = ssub.s32 %s12, 1
    %s18 = ssub.s32 %s12, 2
    %s19 = sadd.s32 %s12, 1
    %s20 = ssub.s32 %s12, %s19
    %p21 = scmp.eq.s32.totalorder %s20, 0
    %s23 = sadd.s32 %s22, 1
    %s24 = scalar_select %p21, %s22, %s23
    %p27 = pneg %p21
    %p28 = scmp.eq.s32.totalorder %s12, 1
    %p29 = por %p27, %p28
    %p30 = scmp.ne.s32.totalorder %s22, %s25
    %p31 = scmp.eq.s32.totalorder %s12, 0
    %p32 = por %p30, %p31
    %p33 = scmp.ne.s32.totalorder %s22, %s25
    %p34 = scmp.eq.s32.totalorder %s17, 1
    %p35 = por %p33, %p34
    %p36 = scmp.ne.s32.totalorder %s25, %s26
    %p37 = scmp.eq.s32.totalorder %s17, 0
    %p38 = por %p36, %p37
    %p39 = scmp.ne.s32.totalorder %s25, %s26
    %p40 = scmp.eq.s32.totalorder %s18, 1
    %p41 = por %p39, %p40
    %p43 = scmp.ne.s32.totalorder %s26, %s42
    %p44 = scmp.eq.s32.totalorder %s18, 0
    %p45 = por %p43, %p44
    %s47 = sadd.s32 %s46, 1
    %p50 = scmp.eq.s32.totalorder %s12, 1
    %p51 = scmp.ne.s32.totalorder %s46, %s48
    %p52 = scmp.eq.s32.totalorder %s12, 0
    %p53 = por %p51, %p52
    %p54 = scmp.ne.s32.totalorder %s46, %s48
    %p55 = scmp.eq.s32.totalorder %s17, 1
    %p56 = por %p54, %p55
    %p57 = scmp.ne.s32.totalorder %s48, %s49
    %p58 = scmp.eq.s32.totalorder %s17, 0
    %p59 = por %p57, %p58
    %p60 = scmp.ne.s32.totalorder %s48, %s49
    %p61 = scmp.eq.s32.totalorder %s18, 1
    %p62 = por %p60, %p61
    %p64 = scmp.ne.s32.totalorder %s49, %s63
    %p65 = scmp.eq.s32.totalorder %s18, 0
    %p66 = por %p64, %p65
    %s68 = sadd.s32 %s67, 1
    %p71 = scmp.eq.s32.totalorder %s12, 1
    %p72 = scmp.ne.s32.totalorder %s67, %s69
    %p73 = scmp.eq.s32.totalorder %s12, 0
    %p74 = por %p72, %p73
    %p75 = scmp.ne.s32.totalorder %s67, %s69
    %p76 = scmp.eq.s32.totalorder %s17, 1
    %p77 = por %p75, %p76
    %p78 = scmp.ne.s32.totalorder %s69, %s70
    %p79 = scmp.eq.s32.totalorder %s17, 0
    %p80 = por %p78, %p79
    %p81 = scmp.ne.s32.totalorder %s69, %s70
    %p82 = scmp.eq.s32.totalorder %s18, 1
    %p83 = por %p81, %p82
    %p85 = scmp.ne.s32.totalorder %s70, %s84
    %p86 = scmp.eq.s32.totalorder %s18, 0
    %p87 = por %p85, %p86
    %s89 = sadd.s32 %s88, 1
    %p92 = scmp.eq.s32.totalorder %s12, 1
    %p93 = scmp.ne.s32.totalorder %s88, %s90
    %p94 = scmp.eq.s32.totalorder %s12, 0
    %p95 = por %p93, %p94
    %p96 = scmp.ne.s32.totalorder %s88, %s90
    %p97 = scmp.eq.s32.totalorder %s17, 1
    %p98 = por %p96, %p97
    %p99 = scmp.ne.s32.totalorder %s90, %s91
    %p100 = scmp.eq.s32.totalorder %s17, 0
    %p101 = por %p99, %p100
    %p102 = scmp.ne.s32.totalorder %s90, %s91
    %p103 = scmp.eq.s32.totalorder %s18, 1
    %p104 = por %p102, %p103
    %p106 = scmp.ne.s32.totalorder %s91, %s105
    %p107 = scmp.eq.s32.totalorder %s18, 0
    %p108 = por %p106, %p107
    %s109 = ssub.s32 %s12, %s19
    %p110 = scmp.eq.s32.totalorder %s109, 0
    %s112 = sadd.s32 %s111, 1
    %s113 = scalar_select %p110, %s111, %s112
    %p116 = pneg %p110
    %p117 = scmp.eq.s32.totalorder %s12, 1
    %p118 = por %p116, %p117
    %p119 = scmp.ne.s32.totalorder %s111, %s114
    %p120 = scmp.eq.s32.totalorder %s12, 0
    %p121 = por %p119, %p120
    %p122 = scmp.ne.s32.totalorder %s111, %s114
    %p123 = scmp.eq.s32.totalorder %s17, 1
    %p124 = por %p122, %p123
    %p125 = scmp.ne.s32.totalorder %s114, %s115
    %p126 = scmp.eq.s32.totalorder %s17, 0
    %p127 = por %p125, %p126
    %p128 = scmp.ne.s32.totalorder %s114, %s115
    %p129 = scmp.eq.s32.totalorder %s18, 1
    %p130 = por %p128, %p129
    %p132 = scmp.ne.s32.totalorder %s115, %s131
    %p133 = scmp.eq.s32.totalorder %s18, 0
    %p134 = por %p132, %p133
    %s135 = ssub.s32 %s12, %s19
    %p136 = scmp.eq.s32.totalorder %s135, 0
    %s138 = sadd.s32 %s137, 1
    %s139 = scalar_select %p136, %s137, %s138
    %p142 = pneg %p136
    %p143 = scmp.eq.s32.totalorder %s12, 1
    %p144 = por %p142, %p143
    %p145 = scmp.ne.s32.totalorder %s137, %s140
    %p146 = scmp.eq.s32.totalorder %s12, 0
    %p147 = por %p145, %p146
    %p148 = scmp.ne.s32.totalorder %s137, %s140
    %p149 = scmp.eq.s32.totalorder %s17, 1
    %p150 = por %p148, %p149
    %p151 = scmp.ne.s32.totalorder %s140, %s141
    %p152 = scmp.eq.s32.totalorder %s17, 0
    %p153 = por %p151, %p152
    %p154 = scmp.ne.s32.totalorder %s140, %s141
    %p155 = scmp.eq.s32.totalorder %s18, 1
    %p156 = por %p154, %p155
    %p158 = scmp.ne.s32.totalorder %s141, %s157
    %p159 = scmp.eq.s32.totalorder %s18, 0
    %p160 = por %p158, %p159
    %p161 = scmp.le.s32.totalorder 1, %s12
    %p162 = scmp.lt.s32.totalorder %s12, 3
    %p163 = pnand %p161, %p162
    %p164 = pneg %p163
    // Predicated region
    $region9: #{_lambda_.6} parent=5 // pred_check
      _
    $region10: #{_lambda_.6} parent=5 // pred_check_branch
      %166 = sbr.rel (%p163) target = $region12
    $region11: #{_lambda_.6} parent=5 // pred_region
      %s167 = ssub.s32 %s12, 1
      // Predicated region
      $region13: #{_lambda_.6} parent=11 // pred_check
        %p168 = pneg %p59
      $region14: #{_lambda_.6} parent=11 // pred_check_branch
        %170 = sbr.rel (%p168) target = $region16
      $region15: #{_lambda_.6} parent=11 // pred_region
        _
      $region16: #{_lambda_.6} parent=11 // pred_fallthru
        _
      // Predicated region
      $region17: #{_lambda_.6} parent=11 // pred_check
        %p171 = pneg %p80
      $region18: #{_lambda_.6} parent=11 // pred_check_branch
        %173 = sbr.rel (%p171) target = $region20
      $region19: #{_lambda_.6} parent=11 // pred_region
        _
      $region20: #{_lambda_.6} parent=11 // pred_fallthru
        _
      // Predicated region
      $region21: #{_lambda_.6} parent=11 // pred_check
        %p174 = pneg %p101
      $region22: #{_lambda_.6} parent=11 // pred_check_branch
        %176 = sbr.rel (%p174) target = $region24
      $region23: #{_lambda_.6} parent=11 // pred_region
        _
      $region24: #{_lambda_.6} parent=11 // pred_fallthru
        _
    $region12: #{_lambda_.6} parent=5 // pred_fallthru
      _
    %p177 = scmp.lt.s32.totalorder %s12, 2
    // Predicated region
    $region25: #{_lambda_.6} parent=5 // pred_check
      %p178 = pneg %p177
    $region26: #{_lambda_.6} parent=5 // pred_check_branch
      %180 = sbr.rel (%p178) target = $region28
    $region27: #{_lambda_.6} parent=5 // pred_region
      // Predicated region
      $region29: #{_lambda_.6} parent=27 // pred_check
        %p181 = pneg %p32
      $region30: #{_lambda_.6} parent=27 // pred_check_branch
        %183 = sbr.rel (%p181) target = $region32
      $region31: #{_lambda_.6} parent=27 // pred_region
        %s184 = smul.u32 32, %s12
        %p185 = scmp.lt.s32.totalorder %s184, 63
        %s186 = scalar_select %p185, %s184, 63
        %s187 = smul.addr %s186, 8
        %s188 = scalar_lea.vmem %s0, %s187
        %s189 = smul.u32 32, %s12
      $region32: #{_lambda_.6} parent=27 // pred_fallthru
        _
    $region28: #{_lambda_.6} parent=5 // pred_fallthru
      _
    %p190 = scmp.le.s32.totalorder 1, %s12
    %p191 = scmp.lt.s32.totalorder %s12, 3
    %p192 = pnand %p190, %p191
    %p193 = pneg %p192
    // Predicated region
    $region33: #{_lambda_.6} parent=5 // pred_check
      _
    $region34: #{_lambda_.6} parent=5 // pred_check_branch
      %195 = sbr.rel (%p192) target = $region36
    $region35: #{_lambda_.6} parent=5 // pred_region
      %s196 = ssub.s32 %s12, 1
      %s197 = smul.u32 32, %s17
      %p198 = scmp.lt.s32.totalorder %s197, 63
      %s199 = scalar_select %p198, %s197, 63
      %s200 = smul.addr %s199, 8
      %s201 = scalar_lea.vmem %s0, %s200
      %p202 = pneg %p38
      %p203 = pneg %p35
      %p204 = pneg %p59
      %p205 = pneg %p56
      %p206 = pneg %p80
      %p207 = pneg %p77
      %p208 = pneg %p101
      %p209 = pneg %p98
      %p210 = pneg %p127
      %p211 = pneg %p124
      %s212 = smul.u32 32, %s17
      %p213 = scmp.lt.s32.totalorder %s212, 63
      %s214 = scalar_select %p213, %s212, 63
      %s215 = smul.addr %s214, 8
      %s216 = scalar_lea.vmem %s4, %s215
      %p217 = pneg %p153
      %p218 = pneg %p150
      %p219 = scmp.lt.s32.totalorder %s17, 1
      %s220 = scalar_select %p219, %s17, 1
      %s221 = smul.addr %s220, 2
      %s222 = scalar_lea.vmem %s5, %s221
      %s223 = smul.u32 32, %s17
      %p224 = scmp.lt.s32.totalorder %s223, 63
      %s225 = scalar_select %p224, %s223, 63
      %s226 = smul.addr %s225, 8
      %s227 = scalar_lea.vmem %s0, %s226
      %s228 = smul.u32 32, %s17
      %s229 = smul.u32 32, %s17
      %p230 = scmp.lt.s32.totalorder %s229, 63
      %s231 = scalar_select %p230, %s229, 63
      %s232 = smul.addr %s231, 8
      %s233 = scalar_lea.vmem %s4, %s232
      %s234 = smul.u32 32, %s17
      %p235 = scmp.lt.s32.totalorder %s17, 1
      %s236 = scalar_select %p235, %s17, 1
      %s237 = smul.addr %s236, 2
      %s238 = scalar_lea.vmem %s5, %s237
      %v239 = vld [vmem:[%s227] sm:$0xff]
      %v240 = vld [vmem:[%s227 + $0x8] sm:$0xff]
      %v241 = vld [vmem:[%s227 + $0x10] sm:$0xff]
      %v242 = vld [vmem:[%s227 + $0x18] sm:$0xff]
      %v243 = vld [vmem:[%s227 + $0x20] sm:$0xff]
      %v244 = vld [vmem:[%s227 + $0x28] sm:$0xff]
      %v245 = vld [vmem:[%s227 + $0x30] sm:$0xff]
      %v246 = vld [vmem:[%s227 + $0x38] sm:$0xff]
      %v247 = vld [vmem:[%s227 + $0x40] sm:$0xff]
      %v248 = vld [vmem:[%s227 + $0x48] sm:$0xff]
      %v249 = vld [vmem:[%s227 + $0x50] sm:$0xff]
      %v250 = vld [vmem:[%s227 + $0x58] sm:$0xff]
      %v251 = vld [vmem:[%s227 + $0x60] sm:$0xff]
      %v252 = vld [vmem:[%s227 + $0x68] sm:$0xff]
      %v253 = vld [vmem:[%s227 + $0x70] sm:$0xff]
      %v254 = vld [vmem:[%s227 + $0x78] sm:$0xff]
      %v255 = vld [vmem:[%s227 + $0x80] sm:$0xff]
      %v256 = vld [vmem:[%s227 + $0x88] sm:$0xff]
      %v257 = vld [vmem:[%s227 + $0x90] sm:$0xff]
      %v258 = vld [vmem:[%s227 + $0x98] sm:$0xff]
      %v259 = vld [vmem:[%s227 + $0xa0] sm:$0xff]
      %v260 = vld [vmem:[%s227 + $0xa8] sm:$0xff]
      %v261 = vld [vmem:[%s227 + $0xb0] sm:$0xff]
      %v262 = vld [vmem:[%s227 + $0xb8] sm:$0xff]
      %v263 = vld [vmem:[%s227 + $0xc0] sm:$0xff]
      %v264 = vld [vmem:[%s227 + $0xc8] sm:$0xff]
      %v265 = vld [vmem:[%s227 + $0xd0] sm:$0xff]
      %v266 = vld [vmem:[%s227 + $0xd8] sm:$0xff]
      %v267 = vld [vmem:[%s227 + $0xe0] sm:$0xff]
      %v268 = vld [vmem:[%s227 + $0xe8] sm:$0xff]
      %v269 = vld [vmem:[%s227 + $0xf0] sm:$0xff]
      %v270 = vld [vmem:[%s227 + $0xf8] sm:$0xff]
      %v271 = vld [vmem:[%s1] sm:$0x1]
      %v273 = vlaneseq
      %v274 = vshrl.u32 %v273, 7
      %v275 = vsub.s32 0, %v274
      %v276 = vrot.slane %v271, %v275
      %v278 = vmul.f32 %v239, %v276
      %v279 = vmul.f32 %v240, %v276
      %v280 = vmul.f32 %v241, %v276
      %v281 = vmul.f32 %v242, %v276
      %v282 = vmul.f32 %v243, %v276
      %v283 = vmul.f32 %v244, %v276
      %v284 = vmul.f32 %v245, %v276
      %v285 = vmul.f32 %v246, %v276
      %v286 = vmul.f32 %v247, %v276
      %v287 = vmul.f32 %v248, %v276
      %v288 = vmul.f32 %v249, %v276
      %v289 = vmul.f32 %v250, %v276
      %v290 = vmul.f32 %v251, %v276
      %v291 = vmul.f32 %v252, %v276
      %v292 = vmul.f32 %v253, %v276
      %v293 = vmul.f32 %v254, %v276
      %v294 = vmul.f32 %v255, %v276
      %v295 = vmul.f32 %v256, %v276
      %v296 = vmul.f32 %v257, %v276
      %v297 = vmul.f32 %v258, %v276
      %v298 = vmul.f32 %v259, %v276
      %v299 = vmul.f32 %v260, %v276
      %v300 = vmul.f32 %v261, %v276
      %v301 = vmul.f32 %v262, %v276
      %v302 = vmul.f32 %v263, %v276
      %v303 = vmul.f32 %v264, %v276
      %v304 = vmul.f32 %v265, %v276
      %v305 = vmul.f32 %v266, %v276
      %v306 = vmul.f32 %v267, %v276
      %v307 = vmul.f32 %v268, %v276
      %v308 = vmul.f32 %v269, %v276
      %v309 = vmul.f32 %v270, %v276
      %v310 = vld [vmem:[%s2] sm:$0x1]
      %v312 = vlaneseq
      %v313 = vshrl.u32 %v312, 7
      %v314 = vsub.s32 0, %v313
      %v315 = vrot.slane %v310, %v314
      %v317 = vadd.f32 %v278, %v315
      %v318 = vadd.f32 %v279, %v315
      %v319 = vadd.f32 %v280, %v315
      %v320 = vadd.f32 %v281, %v315
      %v321 = vadd.f32 %v282, %v315
      %v322 = vadd.f32 %v283, %v315
      %v323 = vadd.f32 %v284, %v315
      %v324 = vadd.f32 %v285, %v315
      %v325 = vadd.f32 %v286, %v315
      %v326 = vadd.f32 %v287, %v315
      %v327 = vadd.f32 %v288, %v315
      %v328 = vadd.f32 %v289, %v315
      %v329 = vadd.f32 %v290, %v315
      %v330 = vadd.f32 %v291, %v315
      %v331 = vadd.f32 %v292, %v315
      %v332 = vadd.f32 %v293, %v315
      %v333 = vadd.f32 %v294, %v315
      %v334 = vadd.f32 %v295, %v315
      %v335 = vadd.f32 %v296, %v315
      %v336 = vadd.f32 %v297, %v315
      %v337 = vadd.f32 %v298, %v315
      %v338 = vadd.f32 %v299, %v315
      %v339 = vadd.f32 %v300, %v315
      %v340 = vadd.f32 %v301, %v315
      %v341 = vadd.f32 %v302, %v315
      %v342 = vadd.f32 %v303, %v315
      %v343 = vadd.f32 %v304, %v315
      %v344 = vadd.f32 %v305, %v315
      %v345 = vadd.f32 %v306, %v315
      %v346 = vadd.f32 %v307, %v315
      %v347 = vadd.f32 %v308, %v315
      %v348 = vadd.f32 %v309, %v315
      %v349 = vmax.f32 %v317, 0.0
      %v350 = vmax.f32 %v318, 0.0
      %v351 = vmax.f32 %v319, 0.0
      %v352 = vmax.f32 %v320, 0.0
      %v353 = vmax.f32 %v321, 0.0
      %v354 = vmax.f32 %v322, 0.0
      %v355 = vmax.f32 %v323, 0.0
      %v356 = vmax.f32 %v324, 0.0
      %v357 = vmax.f32 %v325, 0.0
      %v358 = vmax.f32 %v326, 0.0
      %v359 = vmax.f32 %v327, 0.0
      %v360 = vmax.f32 %v328, 0.0
      %v361 = vmax.f32 %v329, 0.0
      %v362 = vmax.f32 %v330, 0.0
      %v363 = vmax.f32 %v331, 0.0
      %v364 = vmax.f32 %v332, 0.0
      %v365 = vmax.f32 %v333, 0.0
      %v366 = vmax.f32 %v334, 0.0
      %v367 = vmax.f32 %v335, 0.0
      %v368 = vmax.f32 %v336, 0.0
      %v369 = vmax.f32 %v337, 0.0
      %v370 = vmax.f32 %v338, 0.0
      %v371 = vmax.f32 %v339, 0.0
      %v372 = vmax.f32 %v340, 0.0
      %v373 = vmax.f32 %v341, 0.0
      %v374 = vmax.f32 %v342, 0.0
      %v375 = vmax.f32 %v343, 0.0
      %v376 = vmax.f32 %v344, 0.0
      %v377 = vmax.f32 %v345, 0.0
      %v378 = vmax.f32 %v346, 0.0
      %v379 = vmax.f32 %v347, 0.0
      %v380 = vmax.f32 %v348, 0.0
      %v381 = vld [vmem:[%s3] sm:$0xff]
      %v382 = vld [vmem:[%s3 + $0x8] sm:$0xff]
      %v383 = vld [vmem:[%s3 + $0x10] sm:$0xff]
      %v384 = vld [vmem:[%s3 + $0x18] sm:$0xff]
      %v385 = vld [vmem:[%s3 + $0x20] sm:$0xff]
      %v386 = vld [vmem:[%s3 + $0x28] sm:$0xff]
      %v387 = vld [vmem:[%s3 + $0x30] sm:$0xff]
      %v388 = vld [vmem:[%s3 + $0x38] sm:$0xff]
      %v389 = vld [vmem:[%s3 + $0x40] sm:$0xff]
      %v390 = vld [vmem:[%s3 + $0x48] sm:$0xff]
      %v391 = vld [vmem:[%s3 + $0x50] sm:$0xff]
      %v392 = vld [vmem:[%s3 + $0x58] sm:$0xff]
      %v393 = vld [vmem:[%s3 + $0x60] sm:$0xff]
      %v394 = vld [vmem:[%s3 + $0x68] sm:$0xff]
      %v395 = vld [vmem:[%s3 + $0x70] sm:$0xff]
      %v396 = vld [vmem:[%s3 + $0x78] sm:$0xff]
      %397 = vmatprep.subr.mxu0 0.0
      %398 = vmatpush1.msra.mxu0 %v381
      %399 = vmatprep.subr.mxu0 0.0
      %400 = vmatpush1.msra.mxu0 %v382
      %401 = vmatprep.subr.mxu0 0.0
      %402 = vmatpush1.msra.mxu0 %v383
      %403 = vmatprep.subr.mxu0 0.0
      %404 = vmatpush1.msra.mxu0 %v384
      %405 = vmatprep.subr.mxu0 0.0
      %406 = vmatpush1.msra.mxu0 %v385
      %407 = vmatprep.subr.mxu0 0.0
      %408 = vmatpush1.msra.mxu0 %v386
      %409 = vmatprep.subr.mxu0 0.0
      %410 = vmatpush1.msra.mxu0 %v387
      %411 = vmatprep.subr.mxu0 0.0
      %412 = vmatpush1.msra.mxu0 %v388
      %413 = vmatprep.subr.mxu0 0.0
      %414 = vmatpush1.msra.mxu0 %v389
      %415 = vmatprep.subr.mxu0 0.0
      %416 = vmatpush1.msra.mxu0 %v390
      %417 = vmatprep.subr.mxu0 0.0
      %418 = vmatpush1.msra.mxu0 %v391
      %419 = vmatprep.subr.mxu0 0.0
      %420 = vmatpush1.msra.mxu0 %v392
      %421 = vmatprep.subr.mxu0 0.0
      %422 = vmatpush1.msra.mxu0 %v393
      %423 = vmatprep.subr.mxu0 0.0
      %424 = vmatpush1.msra.mxu0 %v394
      %425 = vmatprep.subr.mxu0 0.0
      %426 = vmatpush1.msra.mxu0 %v395
      %427 = vmatprep.subr.mxu0 0.0
      %428 = vmatpush1.msra.mxu0 %v396
      %429 = vmatprep.subr.mxu0 0.0
      %430 = vmatpush1.msra.mxu0 0.0
      %431 = vmatprep.subr.mxu0 0.0
      %432 = vmatpush1.msra.mxu0 0.0
      %433 = vmatprep.subr.mxu0 0.0
      %434 = vmatpush1.msra.mxu0 0.0
      %435 = vmatprep.subr.mxu0 0.0
      %436 = vmatpush1.msra.mxu0 0.0
      %437 = vmatprep.subr.mxu0 0.0
      %438 = vmatpush1.msra.mxu0 0.0
      %439 = vmatprep.subr.mxu0 0.0
      %440 = vmatpush1.msra.mxu0 0.0
      %441 = vmatprep.subr.mxu0 0.0
      %442 = vmatpush1.msra.mxu0 0.0
      %443 = vmatprep.subr.mxu0 0.0
      %444 = vmatpush1.msra.mxu0 0.0
      %445 = vmatprep.subr.mxu0 0.0
      %446 = vmatpush1.msra.mxu0 0.0
      %447 = vmatprep.subr.mxu0 0.0
      %448 = vmatpush1.msra.mxu0 0.0
      %449 = vmatprep.subr.mxu0 0.0
      %450 = vmatpush1.msra.mxu0 0.0
      %451 = vmatprep.subr.mxu0 0.0
      %452 = vmatpush1.msra.mxu0 0.0
      %453 = vmatprep.subr.mxu0 0.0
      %454 = vmatpush1.msra.mxu0 0.0
      %455 = vmatprep.subr.mxu0 0.0
      %456 = vmatpush1.msra.mxu0 0.0
      %457 = vmatprep.subr.mxu0 0.0
      %458 = vmatpush1.msra.mxu0 0.0
      %459 = vmatprep.subr.mxu0 0.0
      %460 = vmatpush1.msra.mxu0 0.0
      %461 = vmatprep.mubr.f32.mxu0 0.0
      %462 = vmatmul.mubr.f32.gmra.mrb[0].mxu0 %v349
      %v463 = vpop.f32.mrb[0].mxu0
      %v464 = vadd.f32 0.0, %v463
      %v465 = vpop.f32.mrb[0].mxu0
      %466 = vmatprep.mubr.f32.mxu0 0.0
      %467 = vmatmul.mubr.f32.gmra.mrb[0].mxu0 %v350
      %v468 = vpop.f32.mrb[0].mxu0
      %v469 = vadd.f32 0.0, %v468
      %v470 = vpop.f32.mrb[0].mxu0
      %471 = vmatprep.mubr.f32.mxu0 0.0
      %472 = vmatmul.mubr.f32.gmra.mrb[0].mxu0 %v351
      %v473 = vpop.f32.mrb[0].mxu0
      %v474 = vadd.f32 0.0, %v473
      %v475 = vpop.f32.mrb[0].mxu0
      %476 = vmatprep.mubr.f32.mxu0 0.0
      %477 = vmatmul.mubr.f32.gmra.mrb[0].mxu0 %v352
      %v478 = vpop.f32.mrb[0].mxu0
      %v479 = vadd.f32 0.0, %v478
      %v480 = vpop.f32.mrb[0].mxu0
      %481 = vmatprep.mubr.f32.mxu0 0.0
      %482 = vmatmul.mubr.f32.gmra.mrb[0].mxu0 %v353
      %v483 = vpop.f32.mrb[0].mxu0
      %v484 = vadd.f32 0.0, %v483
      %v485 = vpop.f32.mrb[0].mxu0
      %486 = vmatprep.mubr.f32.mxu0 0.0
      %487 = vmatmul.mubr.f32.gmra.mrb[0].mxu0 %v354
      %v488 = vpop.f32.mrb[0].mxu0
      %v489 = vadd.f32 0.0, %v488
      %v490 = vpop.f32.mrb[0].mxu0
      %491 = vmatprep.mubr.f32.mxu0 0.0
      %492 = vmatmul.mubr.f32.gmra.mrb[0].mxu0 %v355
      %v493 = vpop.f32.mrb[0].mxu0
      %v494 = vadd.f32 0.0, %v493
      %v495 = vpop.f32.mrb[0].mxu0
      %496 = vmatprep.mubr.f32.mxu0 0.0
      %497 = vmatmul.mubr.f32.gmra.mrb[0].mxu0 %v356
      %v498 = vpop.f32.mrb[0].mxu0
      %v499 = vadd.f32 0.0, %v498
      %v500 = vpop.f32.mrb[0].mxu0
      %501 = vmatprep.mubr.f32.mxu0 0.0
      %502 = vmatmul.mubr.f32.gmra.mrb[0].mxu0 %v357
      %v503 = vpop.f32.mrb[0].mxu0
      %v504 = vadd.f32 0.0, %v503
      %v505 = vpop.f32.mrb[0].mxu0
      %506 = vmatprep.mubr.f32.mxu0 0.0
      %507 = vmatmul.mubr.f32.gmra.mrb[0].mxu0 %v358
      %v508 = vpop.f32.mrb[0].mxu0
      %v509 = vadd.f32 0.0, %v508
      %v510 = vpop.f32.mrb[0].mxu0
      %511 = vmatprep.mubr.f32.mxu0 0.0
      %512 = vmatmul.mubr.f32.gmra.mrb[0].mxu0 %v359
      %v513 = vpop.f32.mrb[0].mxu0
      %v514 = vadd.f32 0.0, %v513
      %v515 = vpop.f32.mrb[0].mxu0
      %516 = vmatprep.mubr.f32.mxu0 0.0
      %517 = vmatmul.mubr.f32.gmra.mrb[0].mxu0 %v360
      %v518 = vpop.f32.mrb[0].mxu0
      %v519 = vadd.f32 0.0, %v518
      %v520 = vpop.f32.mrb[0].mxu0
      %521 = vmatprep.mubr.f32.mxu0 0.0
      %522 = vmatmul.mubr.f32.gmra.mrb[0].mxu0 %v361
      %v523 = vpop.f32.mrb[0].mxu0
      %v524 = vadd.f32 0.0, %v523
      %v525 = vpop.f32.mrb[0].mxu0
      %526 = vmatprep.mubr.f32.mxu0 0.0
      %527 = vmatmul.mubr.f32.gmra.mrb[0].mxu0 %v362
      %v528 = vpop.f32.mrb[0].mxu0
      %v529 = vadd.f32 0.0, %v528
      %v530 = vpop.f32.mrb[0].mxu0
      %531 = vmatprep.mubr.f32.mxu0 0.0
      %532 = vmatmul.mubr.f32.gmra.mrb[0].mxu0 %v363
      %v533 = vpop.f32.mrb[0].mxu0
      %v534 = vadd.f32 0.0, %v533
      %v535 = vpop.f32.mrb[0].mxu0
      %536 = vmatprep.mubr.f32.mxu0 0.0
      %537 = vmatmul.mubr.f32.gmra.mrb[0].mxu0 %v364
      %v538 = vpop.f32.mrb[0].mxu0
      %v539 = vadd.f32 0.0, %v538
      %v540 = vpop.f32.mrb[0].mxu0
      %541 = vmatprep.mubr.f32.mxu0 0.0
      %542 = vmatmul.mubr.f32.gmra.mrb[0].mxu0 %v365
      %v543 = vpop.f32.mrb[0].mxu0
      %v544 = vadd.f32 0.0, %v543
      %v545 = vpop.f32.mrb[0].mxu0
      %546 = vmatprep.mubr.f32.mxu0 0.0
      %547 = vmatmul.mubr.f32.gmra.mrb[0].mxu0 %v366
      %v548 = vpop.f32.mrb[0].mxu0
      %v549 = vadd.f32 0.0, %v548
      %v550 = vpop.f32.mrb[0].mxu0
      %551 = vmatprep.mubr.f32.mxu0 0.0
      %552 = vmatmul.mubr.f32.gmra.mrb[0].mxu0 %v367
      %v553 = vpop.f32.mrb[0].mxu0
      %v554 = vadd.f32 0.0, %v553
      %v555 = vpop.f32.mrb[0].mxu0
      %556 = vmatprep.mubr.f32.mxu0 0.0
      %557 = vmatmul.mubr.f32.gmra.mrb[0].mxu0 %v368
      %v558 = vpop.f32.mrb[0].mxu0
      %v559 = vadd.f32 0.0, %v558
      %v560 = vpop.f32.mrb[0].mxu0
      %561 = vmatprep.mubr.f32.mxu0 0.0
      %562 = vmatmul.mubr.f32.gmra.mrb[0].mxu0 %v369
      %v563 = vpop.f32.mrb[0].mxu0
      %v564 = vadd.f32 0.0, %v563
      %v565 = vpop.f32.mrb[0].mxu0
      %566 = vmatprep.mubr.f32.mxu0 0.0
      %567 = vmatmul.mubr.f32.gmra.mrb[0].mxu0 %v370
      %v568 = vpop.f32.mrb[0].mxu0
      %v569 = vadd.f32 0.0, %v568
      %v570 = vpop.f32.mrb[0].mxu0
      %571 = vmatprep.mubr.f32.mxu0 0.0
      %572 = vmatmul.mubr.f32.gmra.mrb[0].mxu0 %v371
      %v573 = vpop.f32.mrb[0].mxu0
      %v574 = vadd.f32 0.0, %v573
      %v575 = vpop.f32.mrb[0].mxu0
      %576 = vmatprep.mubr.f32.mxu0 0.0
      %577 = vmatmul.mubr.f32.gmra.mrb[0].mxu0 %v372
      %v578 = vpop.f32.mrb[0].mxu0
      %v579 = vadd.f32 0.0, %v578
      %v580 = vpop.f32.mrb[0].mxu0
      %581 = vmatprep.mubr.f32.mxu0 0.0
      %582 = vmatmul.mubr.f32.gmra.mrb[0].mxu0 %v373
      %v583 = vpop.f32.mrb[0].mxu0
      %v584 = vadd.f32 0.0, %v583
      %v585 = vpop.f32.mrb[0].mxu0
      %586 = vmatprep.mubr.f32.mxu0 0.0
      %587 = vmatmul.mubr.f32.gmra.mrb[0].mxu0 %v374
      %v588 = vpop.f32.mrb[0].mxu0
      %v589 = vadd.f32 0.0, %v588
      %v590 = vpop.f32.mrb[0].mxu0
      %591 = vmatprep.mubr.f32.mxu0 0.0
      %592 = vmatmul.mubr.f32.gmra.mrb[0].mxu0 %v375
      %v593 = vpop.f32.mrb[0].mxu0
      %v594 = vadd.f32 0.0, %v593
      %v595 = vpop.f32.mrb[0].mxu0
      %596 = vmatprep.mubr.f32.mxu0 0.0
      %597 = vmatmul.mubr.f32.gmra.mrb[0].mxu0 %v376
      %v598 = vpop.f32.mrb[0].mxu0
      %v599 = vadd.f32 0.0, %v598
      %v600 = vpop.f32.mrb[0].mxu0
      %601 = vmatprep.mubr.f32.mxu0 0.0
      %602 = vmatmul.mubr.f32.gmra.mrb[0].mxu0 %v377
      %v603 = vpop.f32.mrb[0].mxu0
      %v604 = vadd.f32 0.0, %v603
      %v605 = vpop.f32.mrb[0].mxu0
      %606 = vmatprep.mubr.f32.mxu0 0.0
      %607 = vmatmul.mubr.f32.gmra.mrb[0].mxu0 %v378
      %v608 = vpop.f32.mrb[0].mxu0
      %v609 = vadd.f32 0.0, %v608
      %v610 = vpop.f32.mrb[0].mxu0
      %611 = vmatprep.mubr.f32.mxu0 0.0
      %612 = vmatmul.mubr.f32.gmra.mrb[0].mxu0 %v379
      %v613 = vpop.f32.mrb[0].mxu0
      %v614 = vadd.f32 0.0, %v613
      %v615 = vpop.f32.mrb[0].mxu0
      %616 = vmatprep.mubr.f32.mxu0 0.0
      %617 = vmatmul.mubr.f32.gmra.mrb[0].mxu0 %v380
      %v618 = vpop.f32.mrb[0].mxu0
      %v619 = vadd.f32 0.0, %v618
      %v620 = vpop.f32.mrb[0].mxu0
      %621 = vdwg.mxu0
      %622 = vst [vmem:[%s233] sm:$0xff] %v464
      %623 = vst [vmem:[%s233 + $0x8] sm:$0xff] %v469
      %624 = vst [vmem:[%s233 + $0x10] sm:$0xff] %v474
      %625 = vst [vmem:[%s233 + $0x18] sm:$0xff] %v479
      %626 = vst [vmem:[%s233 + $0x20] sm:$0xff] %v484
      %627 = vst [vmem:[%s233 + $0x28] sm:$0xff] %v489
      %628 = vst [vmem:[%s233 + $0x30] sm:$0xff] %v494
      %629 = vst [vmem:[%s233 + $0x38] sm:$0xff] %v499
      %630 = vst [vmem:[%s233 + $0x40] sm:$0xff] %v504
      %631 = vst [vmem:[%s233 + $0x48] sm:$0xff] %v509
      %632 = vst [vmem:[%s233 + $0x50] sm:$0xff] %v514
      %633 = vst [vmem:[%s233 + $0x58] sm:$0xff] %v519
      %634 = vst [vmem:[%s233 + $0x60] sm:$0xff] %v524
      %635 = vst [vmem:[%s233 + $0x68] sm:$0xff] %v529
      %636 = vst [vmem:[%s233 + $0x70] sm:$0xff] %v534
      %637 = vst [vmem:[%s233 + $0x78] sm:$0xff] %v539
      %638 = vst [vmem:[%s233 + $0x80] sm:$0xff] %v544
      %639 = vst [vmem:[%s233 + $0x88] sm:$0xff] %v549
      %640 = vst [vmem:[%s233 + $0x90] sm:$0xff] %v554
      %641 = vst [vmem:[%s233 + $0x98] sm:$0xff] %v559
      %642 = vst [vmem:[%s233 + $0xa0] sm:$0xff] %v564
      %643 = vst [vmem:[%s233 + $0xa8] sm:$0xff] %v569
      %644 = vst [vmem:[%s233 + $0xb0] sm:$0xff] %v574
      %645 = vst [vmem:[%s233 + $0xb8] sm:$0xff] %v579
      %646 = vst [vmem:[%s233 + $0xc0] sm:$0xff] %v584
      %647 = vst [vmem:[%s233 + $0xc8] sm:$0xff] %v589
      %648 = vst [vmem:[%s233 + $0xd0] sm:$0xff] %v594
      %649 = vst [vmem:[%s233 + $0xd8] sm:$0xff] %v599
      %650 = vst [vmem:[%s233 + $0xe0] sm:$0xff] %v604
      %651 = vst [vmem:[%s233 + $0xe8] sm:$0xff] %v609
      %652 = vst [vmem:[%s233 + $0xf0] sm:$0xff] %v614
      %653 = vst [vmem:[%s233 + $0xf8] sm:$0xff] %v619
      %v654 = vadd.f32 %v464, %v469
      %v655 = vadd.f32 %v654, %v474
      %v656 = vadd.f32 %v655, %v479
      %v657 = vadd.f32 %v656, %v484
      %v658 = vadd.f32 %v657, %v489
      %v659 = vadd.f32 %v658, %v494
      %v660 = vadd.f32 %v659, %v499
      %v661 = vadd.f32 %v660, %v504
      %v662 = vadd.f32 %v661, %v509
      %v663 = vadd.f32 %v662, %v514
      %v664 = vadd.f32 %v663, %v519
      %v665 = vadd.f32 %v664, %v524
      %v666 = vadd.f32 %v665, %v529
      %v667 = vadd.f32 %v666, %v534
      %v668 = vadd.f32 %v667, %v539
      %v669 = vadd.f32 %v668, %v544
      %v670 = vadd.f32 %v669, %v549
      %v671 = vadd.f32 %v670, %v554
      %v672 = vadd.f32 %v671, %v559
      %v673 = vadd.f32 %v672, %v564
      %v674 = vadd.f32 %v673, %v569
      %v675 = vadd.f32 %v674, %v574
      %v676 = vadd.f32 %v675, %v579
      %v677 = vadd.f32 %v676, %v584
      %v678 = vadd.f32 %v677, %v589
      %v679 = vadd.f32 %v678, %v594
      %v680 = vadd.f32 %v679, %v599
      %v681 = vadd.f32 %v680, %v604
      %v682 = vadd.f32 %v681, %v609
      %v683 = vadd.f32 %v682, %v614
      %v684 = vadd.f32 %v683, %v619
      %v685 = vrot.slane %v684, 4
      %v686 = vadd.f32 %v684, %v685
      %v687 = vrot.slane %v686, 2
      %v688 = vadd.f32 %v686, %v687
      %v689 = vrot.slane %v688, 1
      %v690 = vadd.f32 %v688, %v689
      %v691 = vmul.f32 %v464, %v464
      %v692 = vmul.f32 %v469, %v469
      %v693 = vmul.f32 %v474, %v474
      %v694 = vmul.f32 %v479, %v479
      %v695 = vmul.f32 %v484, %v484
      %v696 = vmul.f32 %v489, %v489
      %v697 = vmul.f32 %v494, %v494
      %v698 = vmul.f32 %v499, %v499
      %v699 = vmul.f32 %v504, %v504
      %v700 = vmul.f32 %v509, %v509
      %v701 = vmul.f32 %v514, %v514
      %v702 = vmul.f32 %v519, %v519
      %v703 = vmul.f32 %v524, %v524
      %v704 = vmul.f32 %v529, %v529
      %v705 = vmul.f32 %v534, %v534
      %v706 = vmul.f32 %v539, %v539
      %v707 = vmul.f32 %v544, %v544
      %v708 = vmul.f32 %v549, %v549
      %v709 = vmul.f32 %v554, %v554
      %v710 = vmul.f32 %v559, %v559
      %v711 = vmul.f32 %v564, %v564
      %v712 = vmul.f32 %v569, %v569
      %v713 = vmul.f32 %v574, %v574
      %v714 = vmul.f32 %v579, %v579
      %v715 = vmul.f32 %v584, %v584
      %v716 = vmul.f32 %v589, %v589
      %v717 = vmul.f32 %v594, %v594
      %v718 = vmul.f32 %v599, %v599
      %v719 = vmul.f32 %v604, %v604
      %v720 = vmul.f32 %v609, %v609
      %v721 = vmul.f32 %v614, %v614
      %v722 = vmul.f32 %v619, %v619
      %v723 = vadd.f32 %v691, %v692
      %v724 = vadd.f32 %v723, %v693
      %v725 = vadd.f32 %v724, %v694
      %v726 = vadd.f32 %v725, %v695
      %v727 = vadd.f32 %v726, %v696
      %v728 = vadd.f32 %v727, %v697
      %v729 = vadd.f32 %v728, %v698
      %v730 = vadd.f32 %v729, %v699
      %v731 = vadd.f32 %v730, %v700
      %v732 = vadd.f32 %v731, %v701
      %v733 = vadd.f32 %v732, %v702
      %v734 = vadd.f32 %v733, %v703
      %v735 = vadd.f32 %v734, %v704
      %v736 = vadd.f32 %v735, %v705
      %v737 = vadd.f32 %v736, %v706
      %v738 = vadd.f32 %v737, %v707
      %v739 = vadd.f32 %v738, %v708
      %v740 = vadd.f32 %v739, %v709
      %v741 = vadd.f32 %v740, %v710
      %v742 = vadd.f32 %v741, %v711
      %v743 = vadd.f32 %v742, %v712
      %v744 = vadd.f32 %v743, %v713
      %v745 = vadd.f32 %v744, %v714
      %v746 = vadd.f32 %v745, %v715
      %v747 = vadd.f32 %v746, %v716
      %v748 = vadd.f32 %v747, %v717
      %v749 = vadd.f32 %v748, %v718
      %v750 = vadd.f32 %v749, %v719
      %v751 = vadd.f32 %v750, %v720
      %v752 = vadd.f32 %v751, %v721
      %v753 = vadd.f32 %v752, %v722
      %v754 = vrot.slane %v753, 4
      %v755 = vadd.f32 %v753, %v754
      %v756 = vrot.slane %v755, 2
      %v757 = vadd.f32 %v755, %v756
      %v758 = vrot.slane %v757, 1
      %v759 = vadd.f32 %v757, %v758
      %vm760 = vcmask 1040384
      %v761 = vsel %vm760, %v690, %v759
      %762 = vst [vmem:[%s238] sm:$0x3] %v761
      %s763 = smul.u32 32, %s17
      %p764 = scmp.lt.s32.totalorder %s763, 63
      %s765 = scalar_select %p764, %s763, 63
      %s766 = smul.addr %s765, 8
      %s767 = scalar_lea.vmem %s4, %s766
      %p768 = scmp.lt.s32.totalorder %s17, 1
      %s769 = scalar_select %p768, %s17, 1
      %s770 = smul.addr %s769, 2
      %s771 = scalar_lea.vmem %s5, %s770
      // Predicated region
      $region37: #{_lambda_.6} parent=35 // pred_check
        %p772 = pneg %p124
      $region38: #{_lambda_.6} parent=35 // pred_check_branch
        %774 = sbr.rel (%p772) target = $region40
      $region39: #{_lambda_.6} parent=35 // pred_region
        %s775 = smul.u32 32, %s17
      $region40: #{_lambda_.6} parent=35 // pred_fallthru
        _
      // Predicated region
      $region41: #{_lambda_.6} parent=35 // pred_check
        %p776 = pneg %p150
      $region42: #{_lambda_.6} parent=35 // pred_check_branch
        %778 = sbr.rel (%p776) target = $region44
      $region43: #{_lambda_.6} parent=35 // pred_region
        _
      $region44: #{_lambda_.6} parent=35 // pred_fallthru
        _
    $region36: #{_lambda_.6} parent=5 // pred_fallthru
      _
    %p779 = scmp.le.s32.totalorder 2, %s12
    // Predicated region
    $region45: #{_lambda_.6} parent=5 // pred_check
      %p780 = pneg %p779
    $region46: #{_lambda_.6} parent=5 // pred_check_branch
      %782 = sbr.rel (%p780) target = $region48
    $region47: #{_lambda_.6} parent=5 // pred_region
      %s783 = ssub.s32 %s12, 2
      // Predicated region
      $region49: #{_lambda_.6} parent=47 // pred_check
        %p784 = pneg %p130
      $region50: #{_lambda_.6} parent=47 // pred_check_branch
        %786 = sbr.rel (%p784) target = $region52
      $region51: #{_lambda_.6} parent=47 // pred_region
        %s787 = smul.u32 32, %s18
        %p788 = scmp.lt.s32.totalorder %s787, 63
        %s789 = scalar_select %p788, %s787, 63
        %s790 = smul.addr %s789, 8
        %s791 = scalar_lea.vmem %s4, %s790
      $region52: #{_lambda_.6} parent=47 // pred_fallthru
        _
      // Predicated region
      $region53: #{_lambda_.6} parent=47 // pred_check
        %p792 = pneg %p156
      $region54: #{_lambda_.6} parent=47 // pred_check_branch
        %794 = sbr.rel (%p792) target = $region56
      $region55: #{_lambda_.6} parent=47 // pred_region
        %p795 = scmp.lt.s32.totalorder %s18, 1
        %s796 = scalar_select %p795, %s18, 1
        %s797 = smul.addr %s796, 2
        %s798 = scalar_lea.vmem %s5, %s797
      $region56: #{_lambda_.6} parent=47 // pred_fallthru
        _
    $region48: #{_lambda_.6} parent=5 // pred_fallthru
      _
  $region6: #{_lambda_.6} parent=0 // loop_footer
    %s16 = sadd.s32 1, %s12
  $region7: #{_lambda_.6} parent=0 // loop_footer_branch
    %11 = sbr.rel target = $region3
  $region8: #{_lambda_.6} parent=0 // loop_exit
    _

// kernel: _lambda_.5
$region0: #{_lambda_.5}
  #allocation0 [shape = 'u32[]', space=smem, size = 0x4, offset = 0x4, fixed_abs, tag = 'smem constant byte address 0x4 - core index']
  #allocation1 [shape = 'u32[144,128]{1,0:T(1,128)}', space=vmem, size = 0x12000, scoped, tag = 'internal scratch']
  %s0 = inlined_call_operand.vmem [shape: f32[2,16,16,128], index: 0, kind: input, shape index: {}]
  %s1 = inlined_call_operand.vmem [shape: f32[1,128], index: 1, kind: input, shape index: {}]
  %s2 = inlined_call_operand.vmem [shape: f32[1,128], index: 2, kind: input, shape index: {}]
  %s3 = inlined_call_operand.vmem [shape: f32[9,128,128], index: 3, kind: input, shape index: {}]
  %s4 = inlined_call_operand.vmem [shape: f32[2,16,16,128], index: 4, kind: output, shape index: {0}]
  %s5 = inlined_call_operand.vmem [shape: f32[2,2,128], index: 5, kind: output, shape index: {1}]
  %6 = xla_tuple %s4, %s5
  %s7 = sld [smem:[#allocation0]]
  $region57: #{_lambda_.5} parent=0
    _
  %s9 = ssub.s32 1, %s7
  %s10 = scalar_select 0, %s9, %s7
  loop: start=0, step=1, limit=4
  $region2: #{_lambda_.5} parent=0 // loop_pre_header
    _
  $region3: #{_lambda_.5} parent=0 // loop_header
    %s12 = sphi 0, %s16
    %p13 = scmp.ge.s32.totalorder %s12, 4
    %s22 = sphi 0, %s24
    %s25 = sphi 0, %s22
    %s26 = sphi 0, %s25
    %s42 = sphi 0, %s26
    %s46 = sphi 0, %s46
    %s48 = sphi 0, %s46
    %s49 = sphi 0, %s48
    %s63 = sphi 0, %s49
    %s67 = sphi 0, %s67
    %s69 = sphi 0, %s67
    %s70 = sphi 0, %s69
    %s84 = sphi 0, %s70
    %s88 = sphi 0, %s88
    %s90 = sphi 0, %s88
    %s91 = sphi 0, %s90
    %s105 = sphi 0, %s91
    %s111 = sphi 0, %s113
    %s114 = sphi 0, %s111
    %s115 = sphi 0, %s114
    %s131 = sphi 0, %s115
    %s137 = sphi 0, %s139
    %s140 = sphi 0, %s137
    %s141 = sphi 0, %s140
    %s157 = sphi 0, %s141
  $region4: #{_lambda_.5} parent=0 // loop_header_branch
    %15 = sbr.rel (%p13) target = $region8
  $region5: #{_lambda_.5} parent=0 // loop_body
    %s17 = ssub.s32 %s12, 1
    %s18 = ssub.s32 %s12, 2
    %s19 = sadd.s32 %s12, 1
    %s20 = ssub.s32 %s12, %s19
    %p21 = scmp.eq.s32.totalorder %s20, 0
    %s23 = sadd.s32 %s22, 1
    %s24 = scalar_select %p21, %s22, %s23
    %p27 = pneg %p21
    %p28 = scmp.eq.s32.totalorder %s12, 1
    %p29 = por %p27, %p28
    %p30 = scmp.ne.s32.totalorder %s22, %s25
    %p31 = scmp.eq.s32.totalorder %s12, 0
    %p32 = por %p30, %p31
    %p33 = scmp.ne.s32.totalorder %s22, %s25
    %p34 = scmp.eq.s32.totalorder %s17, 1
    %p35 = por %p33, %p34
    %p36 = scmp.ne.s32.totalorder %s25, %s26
    %p37 = scmp.eq.s32.totalorder %s17, 0
    %p38 = por %p36, %p37
    %p39 = scmp.ne.s32.totalorder %s25, %s26
    %p40 = scmp.eq.s32.totalorder %s18, 1
    %p41 = por %p39, %p40
    %p43 = scmp.ne.s32.totalorder %s26, %s42
    %p44 = scmp.eq.s32.totalorder %s18, 0
    %p45 = por %p43, %p44
    %s47 = sadd.s32 %s46, 1
    %p50 = scmp.eq.s32.totalorder %s12, 1
    %p51 = scmp.ne.s32.totalorder %s46, %s48
    %p52 = scmp.eq.s32.totalorder %s12, 0
    %p53 = por %p51, %p52
    %p54 = scmp.ne.s32.totalorder %s46, %s48
    %p55 = scmp.eq.s32.totalorder %s17, 1
    %p56 = por %p54, %p55
    %p57 = scmp.ne.s32.totalorder %s48, %s49
    %p58 = scmp.eq.s32.totalorder %s17, 0
    %p59 = por %p57, %p58
    %p60 = scmp.ne.s32.totalorder %s48, %s49
    %p61 = scmp.eq.s32.totalorder %s18, 1
    %p62 = por %p60, %p61
    %p64 = scmp.ne.s32.totalorder %s49, %s63
    %p65 = scmp.eq.s32.totalorder %s18, 0
    %p66 = por %p64, %p65
    %s68 = sadd.s32 %s67, 1
    %p71 = scmp.eq.s32.totalorder %s12, 1
    %p72 = scmp.ne.s32.totalorder %s67, %s69
    %p73 = scmp.eq.s32.totalorder %s12, 0
    %p74 = por %p72, %p73
    %p75 = scmp.ne.s32.totalorder %s67, %s69
    %p76 = scmp.eq.s32.totalorder %s17, 1
    %p77 = por %p75, %p76
    %p78 = scmp.ne.s32.totalorder %s69, %s70
    %p79 = scmp.eq.s32.totalorder %s17, 0
    %p80 = por %p78, %p79
    %p81 = scmp.ne.s32.totalorder %s69, %s70
    %p82 = scmp.eq.s32.totalorder %s18, 1
    %p83 = por %p81, %p82
    %p85 = scmp.ne.s32.totalorder %s70, %s84
    %p86 = scmp.eq.s32.totalorder %s18, 0
    %p87 = por %p85, %p86
    %s89 = sadd.s32 %s88, 1
    %p92 = scmp.eq.s32.totalorder %s12, 1
    %p93 = scmp.ne.s32.totalorder %s88, %s90
    %p94 = scmp.eq.s32.totalorder %s12, 0
    %p95 = por %p93, %p94
    %p96 = scmp.ne.s32.totalorder %s88, %s90
    %p97 = scmp.eq.s32.totalorder %s17, 1
    %p98 = por %p96, %p97
    %p99 = scmp.ne.s32.totalorder %s90, %s91
    %p100 = scmp.eq.s32.totalorder %s17, 0
    %p101 = por %p99, %p100
    %p102 = scmp.ne.s32.totalorder %s90, %s91
    %p103 = scmp.eq.s32.totalorder %s18, 1
    %p104 = por %p102, %p103
    %p106 = scmp.ne.s32.totalorder %s91, %s105
    %p107 = scmp.eq.s32.totalorder %s18, 0
    %p108 = por %p106, %p107
    %s109 = ssub.s32 %s12, %s19
    %p110 = scmp.eq.s32.totalorder %s109, 0
    %s112 = sadd.s32 %s111, 1
    %s113 = scalar_select %p110, %s111, %s112
    %p116 = pneg %p110
    %p117 = scmp.eq.s32.totalorder %s12, 1
    %p118 = por %p116, %p117
    %p119 = scmp.ne.s32.totalorder %s111, %s114
    %p120 = scmp.eq.s32.totalorder %s12, 0
    %p121 = por %p119, %p120
    %p122 = scmp.ne.s32.totalorder %s111, %s114
    %p123 = scmp.eq.s32.totalorder %s17, 1
    %p124 = por %p122, %p123
    %p125 = scmp.ne.s32.totalorder %s114, %s115
    %p126 = scmp.eq.s32.totalorder %s17, 0
    %p127 = por %p125, %p126
    %p128 = scmp.ne.s32.totalorder %s114, %s115
    %p129 = scmp.eq.s32.totalorder %s18, 1
    %p130 = por %p128, %p129
    %p132 = scmp.ne.s32.totalorder %s115, %s131
    %p133 = scmp.eq.s32.totalorder %s18, 0
    %p134 = por %p132, %p133
    %s135 = ssub.s32 %s12, %s19
    %p136 = scmp.eq.s32.totalorder %s135, 0
    %s138 = sadd.s32 %s137, 1
    %s139 = scalar_select %p136, %s137, %s138
    %p142 = pneg %p136
    %p143 = scmp.eq.s32.totalorder %s12, 1
    %p144 = por %p142, %p143
    %p145 = scmp.ne.s32.totalorder %s137, %s140
    %p146 = scmp.eq.s32.totalorder %s12, 0
    %p147 = por %p145, %p146
    %p148 = scmp.ne.s32.totalorder %s137, %s140
    %p149 = scmp.eq.s32.totalorder %s17, 1
    %p150 = por %p148, %p149
    %p151 = scmp.ne.s32.totalorder %s140, %s141
    %p152 = scmp.eq.s32.totalorder %s17, 0
    %p153 = por %p151, %p152
    %p154 = scmp.ne.s32.totalorder %s140, %s141
    %p155 = scmp.eq.s32.totalorder %s18, 1
    %p156 = por %p154, %p155
    %p158 = scmp.ne.s32.totalorder %s141, %s157
    %p159 = scmp.eq.s32.totalorder %s18, 0
    %p160 = por %p158, %p159
    %p161 = scmp.le.s32.totalorder 1, %s12
    %p162 = scmp.lt.s32.totalorder %s12, 3
    %p163 = pnand %p161, %p162
    %p164 = pneg %p163
    // Predicated region
    $region9: #{_lambda_.5} parent=5 // pred_check
      _
    $region10: #{_lambda_.5} parent=5 // pred_check_branch
      %166 = sbr.rel (%p163) target = $region12
    $region11: #{_lambda_.5} parent=5 // pred_region
      %s167 = ssub.s32 %s12, 1
      // Predicated region
      $region13: #{_lambda_.5} parent=11 // pred_check
        %p168 = pneg %p59
      $region14: #{_lambda_.5} parent=11 // pred_check_branch
        %170 = sbr.rel (%p168) target = $region16
      $region15: #{_lambda_.5} parent=11 // pred_region
        _
      $region16: #{_lambda_.5} parent=11 // pred_fallthru
        _
      // Predicated region
      $region17: #{_lambda_.5} parent=11 // pred_check
        %p171 = pneg %p80
      $region18: #{_lambda_.5} parent=11 // pred_check_branch
        %173 = sbr.rel (%p171) target = $region20
      $region19: #{_lambda_.5} parent=11 // pred_region
        _
      $region20: #{_lambda_.5} parent=11 // pred_fallthru
        _
      // Predicated region
      $region21: #{_lambda_.5} parent=11 // pred_check
        %p174 = pneg %p101
      $region22: #{_lambda_.5} parent=11 // pred_check_branch
        %176 = sbr.rel (%p174) target = $region24
      $region23: #{_lambda_.5} parent=11 // pred_region
        _
      $region24: #{_lambda_.5} parent=11 // pred_fallthru
        _
    $region12: #{_lambda_.5} parent=5 // pred_fallthru
      _
    %p177 = scmp.lt.s32.totalorder %s12, 2
    // Predicated region
    $region25: #{_lambda_.5} parent=5 // pred_check
      %p178 = pneg %p177
    $region26: #{_lambda_.5} parent=5 // pred_check_branch
      %180 = sbr.rel (%p178) target = $region28
    $region27: #{_lambda_.5} parent=5 // pred_region
      // Predicated region
      $region29: #{_lambda_.5} parent=27 // pred_check
        %p181 = pneg %p32
      $region30: #{_lambda_.5} parent=27 // pred_check_branch
        %183 = sbr.rel (%p181) target = $region32
      $region31: #{_lambda_.5} parent=27 // pred_region
        %p184 = scmp.lt.s32.totalorder %s12, 1
        %s185 = scalar_select %p184, %s12, 1
        %s186 = smul.addr %s185, 32
        %s187 = smul.addr %s186, 8
        %s188 = scalar_lea.vmem %s0, %s187
      $region32: #{_lambda_.5} parent=27 // pred_fallthru
        _
    $region28: #{_lambda_.5} parent=5 // pred_fallthru
      _
    %p189 = scmp.le.s32.totalorder 1, %s12
    %p190 = scmp.lt.s32.totalorder %s12, 3
    %p191 = pnand %p189, %p190
    %p192 = pneg %p191
    // Predicated region
    $region33: #{_lambda_.5} parent=5 // pred_check
      _
    $region34: #{_lambda_.5} parent=5 // pred_check_branch
      %194 = sbr.rel (%p191) target = $region36
    $region35: #{_lambda_.5} parent=5 // pred_region
      %s195 = ssub.s32 %s12, 1
      %p196 = scmp.lt.s32.totalorder %s17, 1
      %s197 = scalar_select %p196, %s17, 1
      %s198 = smul.addr %s197, 32
      %s199 = smul.addr %s198, 8
      %s200 = scalar_lea.vmem %s0, %s199
      %p201 = pneg %p38
      %p202 = pneg %p35
      %p203 = pneg %p59
      %p204 = pneg %p56
      %p205 = pneg %p80
      %p206 = pneg %p77
      %p207 = pneg %p101
      %p208 = pneg %p98
      %p209 = pneg %p127
      %p210 = pneg %p124
      %p211 = scmp.lt.s32.totalorder %s17, 1
      %s212 = scalar_select %p211, %s17, 1
      %s213 = smul.addr %s212, 32
      %s214 = smul.addr %s213, 8
      %s215 = scalar_lea.vmem %s4, %s214
      %p216 = pneg %p153
      %p217 = pneg %p150
      %p218 = scmp.lt.s32.totalorder %s17, 1
      %s219 = scalar_select %p218, %s17, 1
      %s220 = smul.addr %s219, 2
      %s221 = scalar_lea.vmem %s5, %s220
      %p222 = scmp.lt.s32.totalorder %s17, 1
      %s223 = scalar_select %p222, %s17, 1
      %s224 = smul.addr %s223, 32
      %s225 = smul.addr %s224, 8
      %s226 = scalar_lea.vmem %s0, %s225
      %p227 = scmp.lt.s32.totalorder %s17, 1
      %s228 = scalar_select %p227, %s17, 1
      %s229 = smul.addr %s228, 32
      %s230 = smul.addr %s229, 8
      %s231 = scalar_lea.vmem %s4, %s230
      %p232 = scmp.lt.s32.totalorder %s17, 1
      %s233 = scalar_select %p232, %s17, 1
      %s234 = smul.addr %s233, 2
      %s235 = scalar_lea.vmem %s5, %s234
      %v236 = vld [vmem:[%s226] sm:$0xff]
      %v237 = vld [vmem:[%s226 + $0x8] sm:$0xff]
      %v238 = vld [vmem:[%s226 + $0x10] sm:$0xff]
      %v239 = vld [vmem:[%s226 + $0x18] sm:$0xff]
      %v240 = vld [vmem:[%s226 + $0x20] sm:$0xff]
      %v241 = vld [vmem:[%s226 + $0x28] sm:$0xff]
      %v242 = vld [vmem:[%s226 + $0x30] sm:$0xff]
      %v243 = vld [vmem:[%s226 + $0x38] sm:$0xff]
      %v244 = vld [vmem:[%s226 + $0x40] sm:$0xff]
      %v245 = vld [vmem:[%s226 + $0x48] sm:$0xff]
      %v246 = vld [vmem:[%s226 + $0x50] sm:$0xff]
      %v247 = vld [vmem:[%s226 + $0x58] sm:$0xff]
      %v248 = vld [vmem:[%s226 + $0x60] sm:$0xff]
      %v249 = vld [vmem:[%s226 + $0x68] sm:$0xff]
      %v250 = vld [vmem:[%s226 + $0x70] sm:$0xff]
      %v251 = vld [vmem:[%s226 + $0x78] sm:$0xff]
      %v252 = vld [vmem:[%s226 + $0x80] sm:$0xff]
      %v253 = vld [vmem:[%s226 + $0x88] sm:$0xff]
      %v254 = vld [vmem:[%s226 + $0x90] sm:$0xff]
      %v255 = vld [vmem:[%s226 + $0x98] sm:$0xff]
      %v256 = vld [vmem:[%s226 + $0xa0] sm:$0xff]
      %v257 = vld [vmem:[%s226 + $0xa8] sm:$0xff]
      %v258 = vld [vmem:[%s226 + $0xb0] sm:$0xff]
      %v259 = vld [vmem:[%s226 + $0xb8] sm:$0xff]
      %v260 = vld [vmem:[%s226 + $0xc0] sm:$0xff]
      %v261 = vld [vmem:[%s226 + $0xc8] sm:$0xff]
      %v262 = vld [vmem:[%s226 + $0xd0] sm:$0xff]
      %v263 = vld [vmem:[%s226 + $0xd8] sm:$0xff]
      %v264 = vld [vmem:[%s226 + $0xe0] sm:$0xff]
      %v265 = vld [vmem:[%s226 + $0xe8] sm:$0xff]
      %v266 = vld [vmem:[%s226 + $0xf0] sm:$0xff]
      %v267 = vld [vmem:[%s226 + $0xf8] sm:$0xff]
      %v268 = vld [vmem:[%s1] sm:$0x1]
      %v270 = vlaneseq
      %v271 = vshrl.u32 %v270, 7
      %v272 = vsub.s32 0, %v271
      %v273 = vrot.slane %v268, %v272
      %v275 = vmul.f32 %v236, %v273
      %v276 = vmul.f32 %v237, %v273
      %v277 = vmul.f32 %v238, %v273
      %v278 = vmul.f32 %v239, %v273
      %v279 = vmul.f32 %v240, %v273
      %v280 = vmul.f32 %v241, %v273
      %v281 = vmul.f32 %v242, %v273
      %v282 = vmul.f32 %v243, %v273
      %v283 = vmul.f32 %v244, %v273
      %v284 = vmul.f32 %v245, %v273
      %v285 = vmul.f32 %v246, %v273
      %v286 = vmul.f32 %v247, %v273
      %v287 = vmul.f32 %v248, %v273
      %v288 = vmul.f32 %v249, %v273
      %v289 = vmul.f32 %v250, %v273
      %v290 = vmul.f32 %v251, %v273
      %v291 = vmul.f32 %v252, %v273
      %v292 = vmul.f32 %v253, %v273
      %v293 = vmul.f32 %v254, %v273
      %v294 = vmul.f32 %v255, %v273
      %v295 = vmul.f32 %v256, %v273
      %v296 = vmul.f32 %v257, %v273
      %v297 = vmul.f32 %v258, %v273
      %v298 = vmul.f32 %v259, %v273
      %v299 = vmul.f32 %v260, %v273
      %v300 = vmul.f32 %v261, %v273
      %v301 = vmul.f32 %v262, %v273
      %v302 = vmul.f32 %v263, %v273
      %v303 = vmul.f32 %v264, %v273
      %v304 = vmul.f32 %v265, %v273
      %v305 = vmul.f32 %v266, %v273
      %v306 = vmul.f32 %v267, %v273
      %v307 = vld [vmem:[%s2] sm:$0x1]
      %v309 = vlaneseq
      %v310 = vshrl.u32 %v309, 7
      %v311 = vsub.s32 0, %v310
      %v312 = vrot.slane %v307, %v311
      %v314 = vadd.f32 %v275, %v312
      %v315 = vadd.f32 %v276, %v312
      %v316 = vadd.f32 %v277, %v312
      %v317 = vadd.f32 %v278, %v312
      %v318 = vadd.f32 %v279, %v312
      %v319 = vadd.f32 %v280, %v312
      %v320 = vadd.f32 %v281, %v312
      %v321 = vadd.f32 %v282, %v312
      %v322 = vadd.f32 %v283, %v312
      %v323 = vadd.f32 %v284, %v312
      %v324 = vadd.f32 %v285, %v312
      %v325 = vadd.f32 %v286, %v312
      %v326 = vadd.f32 %v287, %v312
      %v327 = vadd.f32 %v288, %v312
      %v328 = vadd.f32 %v289, %v312
      %v329 = vadd.f32 %v290, %v312
      %v330 = vadd.f32 %v291, %v312
      %v331 = vadd.f32 %v292, %v312
      %v332 = vadd.f32 %v293, %v312
      %v333 = vadd.f32 %v294, %v312
      %v334 = vadd.f32 %v295, %v312
      %v335 = vadd.f32 %v296, %v312
      %v336 = vadd.f32 %v297, %v312
      %v337 = vadd.f32 %v298, %v312
      %v338 = vadd.f32 %v299, %v312
      %v339 = vadd.f32 %v300, %v312
      %v340 = vadd.f32 %v301, %v312
      %v341 = vadd.f32 %v302, %v312
      %v342 = vadd.f32 %v303, %v312
      %v343 = vadd.f32 %v304, %v312
      %v344 = vadd.f32 %v305, %v312
      %v345 = vadd.f32 %v306, %v312
      %v346 = vmax.f32 %v314, 0.0
      %v347 = vmax.f32 %v315, 0.0
      %v348 = vmax.f32 %v316, 0.0
      %v349 = vmax.f32 %v317, 0.0
      %v350 = vmax.f32 %v318, 0.0
      %v351 = vmax.f32 %v319, 0.0
      %v352 = vmax.f32 %v320, 0.0
      %v353 = vmax.f32 %v321, 0.0
      %v354 = vmax.f32 %v322, 0.0
      %v355 = vmax.f32 %v323, 0.0
      %v356 = vmax.f32 %v324, 0.0
      %v357 = vmax.f32 %v325, 0.0
      %v358 = vmax.f32 %v326, 0.0
      %v359 = vmax.f32 %v327, 0.0
      %v360 = vmax.f32 %v328, 0.0
      %v361 = vmax.f32 %v329, 0.0
      %v362 = vmax.f32 %v330, 0.0
      %v363 = vmax.f32 %v331, 0.0
      %v364 = vmax.f32 %v332, 0.0
      %v365 = vmax.f32 %v333, 0.0
      %v366 = vmax.f32 %v334, 0.0
      %v367 = vmax.f32 %v335, 0.0
      %v368 = vmax.f32 %v336, 0.0
      %v369 = vmax.f32 %v337, 0.0
      %v370 = vmax.f32 %v338, 0.0
      %v371 = vmax.f32 %v339, 0.0
      %v372 = vmax.f32 %v340, 0.0
      %v373 = vmax.f32 %v341, 0.0
      %v374 = vmax.f32 %v342, 0.0
      %v375 = vmax.f32 %v343, 0.0
      %v376 = vmax.f32 %v344, 0.0
      %v377 = vmax.f32 %v345, 0.0
      %vm410 = vcmask 1040384
      %v411 = vrot.slane %v346, 7
      %v412 = vrot.slane %v347, 7
      %v413 = vsel %vm410, %v411, %v412
      %v414 = vrot.slane %v348, 7
      %v415 = vrot.slane %v349, 7
      %v416 = vsel %vm410, %v414, %v415
      %v417 = vrot.slane %v350, 7
      %v418 = vrot.slane %v351, 7
      %v419 = vsel %vm410, %v417, %v418
      %v420 = vrot.slane %v352, 7
      %v421 = vrot.slane %v353, 7
      %v422 = vsel %vm410, %v420, %v421
      %v423 = vrot.slane %v354, 7
      %v424 = vrot.slane %v355, 7
      %v425 = vsel %vm410, %v423, %v424
      %v426 = vrot.slane %v356, 7
      %v427 = vrot.slane %v357, 7
      %v428 = vsel %vm410, %v426, %v427
      %v429 = vrot.slane %v358, 7
      %v430 = vrot.slane %v359, 7
      %v431 = vsel %vm410, %v429, %v430
      %v432 = vrot.slane %v360, 7
      %v433 = vrot.slane %v361, 7
      %v434 = vsel %vm410, %v432, %v433
      %v435 = vrot.slane %v362, 7
      %v436 = vrot.slane %v363, 7
      %v437 = vsel %vm410, %v435, %v436
      %v438 = vrot.slane %v364, 7
      %v439 = vrot.slane %v365, 7
      %v440 = vsel %vm410, %v438, %v439
      %v441 = vrot.slane %v366, 7
      %v442 = vrot.slane %v367, 7
      %v443 = vsel %vm410, %v441, %v442
      %v444 = vrot.slane %v368, 7
      %v445 = vrot.slane %v369, 7
      %v446 = vsel %vm410, %v444, %v445
      %v447 = vrot.slane %v370, 7
      %v448 = vrot.slane %v371, 7
      %v449 = vsel %vm410, %v447, %v448
      %v450 = vrot.slane %v372, 7
      %v451 = vrot.slane %v373, 7
      %v452 = vsel %vm410, %v450, %v451
      %v453 = vrot.slane %v374, 7
      %v454 = vrot.slane %v375, 7
      %v455 = vsel %vm410, %v453, %v454
      %v456 = vrot.slane %v376, 7
      %v457 = vrot.slane %v377, 7
      %v458 = vsel %vm410, %v456, %v457
      %v491 = vsel %vm410, 0.0, %v411
      %v492 = vsel %vm410, 0.0, %v414
      %v493 = vsel %vm410, 0.0, %v417
      %v494 = vsel %vm410, 0.0, %v420
      %v495 = vsel %vm410, 0.0, %v423
      %v496 = vsel %vm410, 0.0, %v426
      %v497 = vsel %vm410, 0.0, %v429
      %v498 = vsel %vm410, 0.0, %v432
      %v499 = vsel %vm410, 0.0, %v435
      %v500 = vsel %vm410, 0.0, %v438
      %v501 = vsel %vm410, 0.0, %v441
      %v502 = vsel %vm410, 0.0, %v444
      %v503 = vsel %vm410, 0.0, %v447
      %v504 = vsel %vm410, 0.0, %v450
      %v505 = vsel %vm410, 0.0, %v453
      %v506 = vsel %vm410, 0.0, %v456
      %vm507 = vcmask 1046528
      %v508 = vrot.slane %v346, 1
      %v509 = vrot.slane %v347, 1
      %v510 = vsel %vm507, %v508, %v509
      %v511 = vrot.slane %v348, 1
      %v512 = vrot.slane %v349, 1
      %v513 = vsel %vm507, %v511, %v512
      %v514 = vrot.slane %v350, 1
      %v515 = vrot.slane %v351, 1
      %v516 = vsel %vm507, %v514, %v515
      %v517 = vrot.slane %v352, 1
      %v518 = vrot.slane %v353, 1
      %v519 = vsel %vm507, %v517, %v518
      %v520 = vrot.slane %v354, 1
      %v521 = vrot.slane %v355, 1
      %v522 = vsel %vm507, %v520, %v521
      %v523 = vrot.slane %v356, 1
      %v524 = vrot.slane %v357, 1
      %v525 = vsel %vm507, %v523, %v524
      %v526 = vrot.slane %v358, 1
      %v527 = vrot.slane %v359, 1
      %v528 = vsel %vm507, %v526, %v527
      %v529 = vrot.slane %v360, 1
      %v530 = vrot.slane %v361, 1
      %v531 = vsel %vm507, %v529, %v530
      %v532 = vrot.slane %v362, 1
      %v533 = vrot.slane %v363, 1
      %v534 = vsel %vm507, %v532, %v533
      %v535 = vrot.slane %v364, 1
      %v536 = vrot.slane %v365, 1
      %v537 = vsel %vm507, %v535, %v536
      %v538 = vrot.slane %v366, 1
      %v539 = vrot.slane %v367, 1
      %v540 = vsel %vm507, %v538, %v539
      %v541 = vrot.slane %v368, 1
      %v542 = vrot.slane %v369, 1
      %v543 = vsel %vm507, %v541, %v542
      %v544 = vrot.slane %v370, 1
      %v545 = vrot.slane %v371, 1
      %v546 = vsel %vm507, %v544, %v545
      %v547 = vrot.slane %v372, 1
      %v548 = vrot.slane %v373, 1
      %v549 = vsel %vm507, %v547, %v548
      %v550 = vrot.slane %v374, 1
      %v551 = vrot.slane %v375, 1
      %v552 = vsel %vm507, %v550, %v551
      %v553 = vrot.slane %v376, 1
      %v554 = vrot.slane %v377, 1
      %v555 = vsel %vm507, %v553, %v554
      %v588 = vsel %vm507, %v509, 0.0
      %v589 = vsel %vm507, %v512, 0.0
      %v590 = vsel %vm507, %v515, 0.0
      %v591 = vsel %vm507, %v518, 0.0
      %v592 = vsel %vm507, %v521, 0.0
      %v593 = vsel %vm507, %v524, 0.0
      %v594 = vsel %vm507, %v527, 0.0
      %v595 = vsel %vm507, %v530, 0.0
      %v596 = vsel %vm507, %v533, 0.0
      %v597 = vsel %vm507, %v536, 0.0
      %v598 = vsel %vm507, %v539, 0.0
      %v599 = vsel %vm507, %v542, 0.0
      %v600 = vsel %vm507, %v545, 0.0
      %v601 = vsel %vm507, %v548, 0.0
      %v602 = vsel %vm507, %v551, 0.0
      %v603 = vsel %vm507, %v554, 0.0
      %v604 = vld [vmem:[%s3] sm:$0xff]
      %v605 = vld [vmem:[%s3 + $0x8] sm:$0xff]
      %v606 = vld [vmem:[%s3 + $0x10] sm:$0xff]
      %v607 = vld [vmem:[%s3 + $0x18] sm:$0xff]
      %v608 = vld [vmem:[%s3 + $0x20] sm:$0xff]
      %v609 = vld [vmem:[%s3 + $0x28] sm:$0xff]
      %v610 = vld [vmem:[%s3 + $0x30] sm:$0xff]
      %v611 = vld [vmem:[%s3 + $0x38] sm:$0xff]
      %v612 = vld [vmem:[%s3 + $0x40] sm:$0xff]
      %v613 = vld [vmem:[%s3 + $0x48] sm:$0xff]
      %v614 = vld [vmem:[%s3 + $0x50] sm:$0xff]
      %v615 = vld [vmem:[%s3 + $0x58] sm:$0xff]
      %v616 = vld [vmem:[%s3 + $0x60] sm:$0xff]
      %v617 = vld [vmem:[%s3 + $0x68] sm:$0xff]
      %v618 = vld [vmem:[%s3 + $0x70] sm:$0xff]
      %v619 = vld [vmem:[%s3 + $0x78] sm:$0xff]
      %s620 = scalar_lea.vmem %s3, 128
      %v621 = vld [vmem:[%s620] sm:$0xff]
      %v622 = vld [vmem:[%s620 + $0x8] sm:$0xff]
      %v623 = vld [vmem:[%s620 + $0x10] sm:$0xff]
      %v624 = vld [vmem:[%s620 + $0x18] sm:$0xff]
      %v625 = vld [vmem:[%s620 + $0x20] sm:$0xff]
      %v626 = vld [vmem:[%s620 + $0x28] sm:$0xff]
      %v627 = vld [vmem:[%s620 + $0x30] sm:$0xff]
      %v628 = vld [vmem:[%s620 + $0x38] sm:$0xff]
      %v629 = vld [vmem:[%s620 + $0x40] sm:$0xff]
      %v630 = vld [vmem:[%s620 + $0x48] sm:$0xff]
      %v631 = vld [vmem:[%s620 + $0x50] sm:$0xff]
      %v632 = vld [vmem:[%s620 + $0x58] sm:$0xff]
      %v633 = vld [vmem:[%s620 + $0x60] sm:$0xff]
      %v634 = vld [vmem:[%s620 + $0x68] sm:$0xff]
      %v635 = vld [vmem:[%s620 + $0x70] sm:$0xff]
      %v636 = vld [vmem:[%s620 + $0x78] sm:$0xff]
      %637 = vmatprep.subr.mxu0 0.0
      %638 = vmatpush1.msra.mxu0 %v621
      %639 = vmatprep.subr.mxu0 0.0
      %640 = vmatpush1.msra.mxu0 %v622
      %641 = vmatprep.subr.mxu0 0.0
      %642 = vmatpush1.msra.mxu0 %v623
      %643 = vmatprep.subr.mxu0 0.0
      %644 = vmatpush1.msra.mxu0 %v624
      %645 = vmatprep.subr.mxu0 0.0
      %646 = vmatpush1.msra.mxu0 %v625
      %647 = vmatprep.subr.mxu0 0.0
      %648 = vmatpush1.msra.mxu0 %v626
      %649 = vmatprep.subr.mxu0 0.0
      %650 = vmatpush1.msra.mxu0 %v627
      %651 = vmatprep.subr.mxu0 0.0
      %652 = vmatpush1.msra.mxu0 %v628
      %653 = vmatprep.subr.mxu0 0.0
      %654 = vmatpush1.msra.mxu0 %v629
      %655 = vmatprep.subr.mxu0 0.0
      %656 = vmatpush1.msra.mxu0 %v630
      %657 = vmatprep.subr.mxu0 0.0
      %658 = vmatpush1.msra.mxu0 %v631
      %659 = vmatprep.subr.mxu0 0.0
      %660 = vmatpush1.msra.mxu0 %v632
      %661 = vmatprep.subr.mxu0 0.0
      %662 = vmatpush1.msra.mxu0 %v633
      %663 = vmatprep.subr.mxu0 0.0
      %664 = vmatpush1.msra.mxu0 %v634
      %665 = vmatprep.subr.mxu0 0.0
      %666 = vmatpush1.msra.mxu0 %v635
      %667 = vmatprep.subr.mxu0 0.0
      %668 = vmatpush1.msra.mxu0 %v636
      %669 = vmatprep.subr.mxu0 0.0
      %670 = vmatpush1.msra.mxu0 0.0
      %671 = vmatprep.subr.mxu0 0.0
      %672 = vmatpush1.msra.mxu0 0.0
      %673 = vmatprep.subr.mxu0 0.0
      %674 = vmatpush1.msra.mxu0 0.0
      %675 = vmatprep.subr.mxu0 0.0
      %676 = vmatpush1.msra.mxu0 0.0
      %677 = vmatprep.subr.mxu0 0.0
      %678 = vmatpush1.msra.mxu0 0.0
      %679 = vmatprep.subr.mxu0 0.0
      %680 = vmatpush1.msra.mxu0 0.0
      %681 = vmatprep.subr.mxu0 0.0
      %682 = vmatpush1.msra.mxu0 0.0
      %683 = vmatprep.subr.mxu0 0.0
      %684 = vmatpush1.msra.mxu0 0.0
      %685 = vmatprep.subr.mxu0 0.0
      %686 = vmatpush1.msra.mxu0 0.0
      %687 = vmatprep.subr.mxu0 0.0
      %688 = vmatpush1.msra.mxu0 0.0
      %689 = vmatprep.subr.mxu0 0.0
      %690 = vmatpush1.msra.mxu0 0.0
      %691 = vmatprep.subr.mxu0 0.0
      %692 = vmatpush1.msra.mxu0 0.0
      %693 = vmatprep.subr.mxu0 0.0
      %694 = vmatpush1.msra.mxu0 0.0
      %695 = vmatprep.subr.mxu0 0.0
      %696 = vmatpush1.msra.mxu0 0.0
      %697 = vmatprep.subr.mxu0 0.0
      %698 = vmatpush1.msra.mxu0 0.0
      %699 = vmatprep.subr.mxu0 0.0
      %700 = vmatpush1.msra.mxu0 0.0
      %701 = vmatprep.mubr.f32.mxu0 0.0
      %702 = vmatmul.mubr.f32.gmra.mrb[0].mxu0 0.0
      %v703 = vpop.f32.mrb[0].mxu0
      %v704 = vadd.f32 0.0, %v703
      %v705 = vpop.f32.mrb[0].mxu0
      %706 = vmatprep.mubr.f32.mxu0 0.0
      %707 = vmatmul.mubr.f32.gmra.mrb[0].mxu0 0.0
      %v708 = vpop.f32.mrb[0].mxu0
      %v709 = vadd.f32 0.0, %v708
      %v710 = vpop.f32.mrb[0].mxu0
      %711 = vmatprep.mubr.f32.mxu0 0.0
      %712 = vmatmul.mubr.f32.gmra.mrb[0].mxu0 %v346
      %v713 = vpop.f32.mrb[0].mxu0
      %v714 = vadd.f32 0.0, %v713
      %v715 = vpop.f32.mrb[0].mxu0
      %716 = vmatprep.mubr.f32.mxu0 0.0
      %717 = vmatmul.mubr.f32.gmra.mrb[0].mxu0 %v347
      %v718 = vpop.f32.mrb[0].mxu0
      %v719 = vadd.f32 0.0, %v718
      %v720 = vpop.f32.mrb[0].mxu0
      %721 = vmatprep.mubr.f32.mxu0 0.0
      %722 = vmatmul.mubr.f32.gmra.mrb[0].mxu0 %v348
      %v723 = vpop.f32.mrb[0].mxu0
      %v724 = vadd.f32 0.0, %v723
      %v725 = vpop.f32.mrb[0].mxu0
      %726 = vmatprep.mubr.f32.mxu0 0.0
      %727 = vmatmul.mubr.f32.gmra.mrb[0].mxu0 %v349
      %v728 = vpop.f32.mrb[0].mxu0
      %v729 = vadd.f32 0.0, %v728
      %v730 = vpop.f32.mrb[0].mxu0
      %731 = vmatprep.mubr.f32.mxu0 0.0
      %732 = vmatmul.mubr.f32.gmra.mrb[0].mxu0 %v350
      %v733 = vpop.f32.mrb[0].mxu0
      %v734 = vadd.f32 0.0, %v733
      %v735 = vpop.f32.mrb[0].mxu0
      %736 = vmatprep.mubr.f32.mxu0 0.0
      %737 = vmatmul.mubr.f32.gmra.mrb[0].mxu0 %v351
      %v738 = vpop.f32.mrb[0].mxu0
      %v739 = vadd.f32 0.0, %v738
      %v740 = vpop.f32.mrb[0].mxu0
      %741 = vmatprep.mubr.f32.mxu0 0.0
      %742 = vmatmul.mubr.f32.gmra.mrb[0].mxu0 %v352
      %v743 = vpop.f32.mrb[0].mxu0
      %v744 = vadd.f32 0.0, %v743
      %v745 = vpop.f32.mrb[0].mxu0
      %746 = vmatprep.mubr.f32.mxu0 0.0
      %747 = vmatmul.mubr.f32.gmra.mrb[0].mxu0 %v353
      %v748 = vpop.f32.mrb[0].mxu0
      %v749 = vadd.f32 0.0, %v748
      %v750 = vpop.f32.mrb[0].mxu0
      %751 = vmatprep.mubr.f32.mxu0 0.0
      %752 = vmatmul.mubr.f32.gmra.mrb[0].mxu0 %v354
      %v753 = vpop.f32.mrb[0].mxu0
      %v754 = vadd.f32 0.0, %v753
      %v755 = vpop.f32.mrb[0].mxu0
      %756 = vmatprep.mubr.f32.mxu0 0.0
      %757 = vmatmul.mubr.f32.gmra.mrb[0].mxu0 %v355
      %v758 = vpop.f32.mrb[0].mxu0
      %v759 = vadd.f32 0.0, %v758
      %v760 = vpop.f32.mrb[0].mxu0
      %761 = vmatprep.mubr.f32.mxu0 0.0
      %762 = vmatmul.mubr.f32.gmra.mrb[0].mxu0 %v356
      %v763 = vpop.f32.mrb[0].mxu0
      %v764 = vadd.f32 0.0, %v763
      %v765 = vpop.f32.mrb[0].mxu0
      %766 = vmatprep.mubr.f32.mxu0 0.0
      %767 = vmatmul.mubr.f32.gmra.mrb[0].mxu0 %v357
      %v768 = vpop.f32.mrb[0].mxu0
      %v769 = vadd.f32 0.0, %v768
      %v770 = vpop.f32.mrb[0].mxu0
      %771 = vmatprep.mubr.f32.mxu0 0.0
      %772 = vmatmul.mubr.f32.gmra.mrb[0].mxu0 %v358
      %v773 = vpop.f32.mrb[0].mxu0
      %v774 = vadd.f32 0.0, %v773
      %v775 = vpop.f32.mrb[0].mxu0
      %776 = vmatprep.mubr.f32.mxu0 0.0
      %777 = vmatmul.mubr.f32.gmra.mrb[0].mxu0 %v359
      %v778 = vpop.f32.mrb[0].mxu0
      %v779 = vadd.f32 0.0, %v778
      %v780 = vpop.f32.mrb[0].mxu0
      %781 = vmatprep.mubr.f32.mxu0 0.0
      %782 = vmatmul.mubr.f32.gmra.mrb[0].mxu0 %v360
      %v783 = vpop.f32.mrb[0].mxu0
      %v784 = vadd.f32 0.0, %v783
      %v785 = vpop.f32.mrb[0].mxu0
      %786 = vmatprep.mubr.f32.mxu0 0.0
      %787 = vmatmul.mubr.f32.gmra.mrb[0].mxu0 %v361
      %v788 = vpop.f32.mrb[0].mxu0
      %v789 = vadd.f32 0.0, %v788
      %v790 = vpop.f32.mrb[0].mxu0
      %791 = vmatprep.mubr.f32.mxu0 0.0
      %792 = vmatmul.mubr.f32.gmra.mrb[0].mxu0 %v362
      %v793 = vpop.f32.mrb[0].mxu0
      %v794 = vadd.f32 0.0, %v793
      %v795 = vpop.f32.mrb[0].mxu0
      %796 = vmatprep.mubr.f32.mxu0 0.0
      %797 = vmatmul.mubr.f32.gmra.mrb[0].mxu0 %v363
      %v798 = vpop.f32.mrb[0].mxu0
      %v799 = vadd.f32 0.0, %v798
      %v800 = vpop.f32.mrb[0].mxu0
      %801 = vmatprep.mubr.f32.mxu0 0.0
      %802 = vmatmul.mubr.f32.gmra.mrb[0].mxu0 %v364
      %v803 = vpop.f32.mrb[0].mxu0
      %v804 = vadd.f32 0.0, %v803
      %v805 = vpop.f32.mrb[0].mxu0
      %806 = vmatprep.mubr.f32.mxu0 0.0
      %807 = vmatmul.mubr.f32.gmra.mrb[0].mxu0 %v365
      %v808 = vpop.f32.mrb[0].mxu0
      %v809 = vadd.f32 0.0, %v808
      %v810 = vpop.f32.mrb[0].mxu0
      %811 = vmatprep.mubr.f32.mxu0 0.0
      %812 = vmatmul.mubr.f32.gmra.mrb[0].mxu0 %v366
      %v813 = vpop.f32.mrb[0].mxu0
      %v814 = vadd.f32 0.0, %v813
      %v815 = vpop.f32.mrb[0].mxu0
      %816 = vmatprep.mubr.f32.mxu0 0.0
      %817 = vmatmul.mubr.f32.gmra.mrb[0].mxu0 %v367
      %v818 = vpop.f32.mrb[0].mxu0
      %v819 = vadd.f32 0.0, %v818
      %v820 = vpop.f32.mrb[0].mxu0
      %821 = vmatprep.mubr.f32.mxu0 0.0
      %822 = vmatmul.mubr.f32.gmra.mrb[0].mxu0 %v368
      %v823 = vpop.f32.mrb[0].mxu0
      %v824 = vadd.f32 0.0, %v823
      %v825 = vpop.f32.mrb[0].mxu0
      %826 = vmatprep.mubr.f32.mxu0 0.0
      %827 = vmatmul.mubr.f32.gmra.mrb[0].mxu0 %v369
      %v828 = vpop.f32.mrb[0].mxu0
      %v829 = vadd.f32 0.0, %v828
      %v830 = vpop.f32.mrb[0].mxu0
      %831 = vmatprep.mubr.f32.mxu0 0.0
      %832 = vmatmul.mubr.f32.gmra.mrb[0].mxu0 %v370
      %v833 = vpop.f32.mrb[0].mxu0
      %v834 = vadd.f32 0.0, %v833
      %v835 = vpop.f32.mrb[0].mxu0
      %836 = vmatprep.mubr.f32.mxu0 0.0
      %837 = vmatmul.mubr.f32.gmra.mrb[0].mxu0 %v371
      %v838 = vpop.f32.mrb[0].mxu0
      %v839 = vadd.f32 0.0, %v838
      %v840 = vpop.f32.mrb[0].mxu0
      %841 = vmatprep.mubr.f32.mxu0 0.0
      %842 = vmatmul.mubr.f32.gmra.mrb[0].mxu0 %v372
      %v843 = vpop.f32.mrb[0].mxu0
      %v844 = vadd.f32 0.0, %v843
      %v845 = vpop.f32.mrb[0].mxu0
      %846 = vmatprep.mubr.f32.mxu0 0.0
      %847 = vmatmul.mubr.f32.gmra.mrb[0].mxu0 %v373
      %v848 = vpop.f32.mrb[0].mxu0
      %v849 = vadd.f32 0.0, %v848
      %v850 = vpop.f32.mrb[0].mxu0
      %851 = vmatprep.mubr.f32.mxu0 0.0
      %852 = vmatmul.mubr.f32.gmra.mrb[0].mxu0 %v374
      %v853 = vpop.f32.mrb[0].mxu0
      %v854 = vadd.f32 0.0, %v853
      %v855 = vpop.f32.mrb[0].mxu0
      %856 = vmatprep.mubr.f32.mxu0 0.0
      %857 = vmatmul.mubr.f32.gmra.mrb[0].mxu0 %v375
      %v858 = vpop.f32.mrb[0].mxu0
      %v859 = vadd.f32 0.0, %v858
      %v860 = vpop.f32.mrb[0].mxu0
      %861 = vdwg.mxu0
      %862 = vmatprep.subr.mxu0 0.0
      %863 = vmatpush1.msra.mxu0 %v604
      %864 = vmatprep.subr.mxu0 0.0
      %865 = vmatpush1.msra.mxu0 %v605
      %866 = vmatprep.subr.mxu0 0.0
      %867 = vmatpush1.msra.mxu0 %v606
      %868 = vmatprep.subr.mxu0 0.0
      %869 = vmatpush1.msra.mxu0 %v607
      %870 = vmatprep.subr.mxu0 0.0
      %871 = vmatpush1.msra.mxu0 %v608
      %872 = vmatprep.subr.mxu0 0.0
      %873 = vmatpush1.msra.mxu0 %v609
      %874 = vmatprep.subr.mxu0 0.0
      %875 = vmatpush1.msra.mxu0 %v610
      %876 = vmatprep.subr.mxu0 0.0
      %877 = vmatpush1.msra.mxu0 %v611
      %878 = vmatprep.subr.mxu0 0.0
      %879 = vmatpush1.msra.mxu0 %v612
      %880 = vmatprep.subr.mxu0 0.0
      %881 = vmatpush1.msra.mxu0 %v613
      %882 = vmatprep.subr.mxu0 0.0
      %883 = vmatpush1.msra.mxu0 %v614
      %884 = vmatprep.subr.mxu0 0.0
      %885 = vmatpush1.msra.mxu0 %v615
      %886 = vmatprep.subr.mxu0 0.0
      %887 = vmatpush1.msra.mxu0 %v616
      %888 = vmatprep.subr.mxu0 0.0
      %889 = vmatpush1.msra.mxu0 %v617
      %890 = vmatprep.subr.mxu0 0.0
      %891 = vmatpush1.msra.mxu0 %v618
      %892 = vmatprep.subr.mxu0 0.0
      %893 = vmatpush1.msra.mxu0 %v619
      %894 = vmatprep.subr.mxu0 0.0
      %895 = vmatpush1.msra.mxu0 0.0
      %896 = vmatprep.subr.mxu0 0.0
      %897 = vmatpush1.msra.mxu0 0.0
      %898 = vmatprep.subr.mxu0 0.0
      %899 = vmatpush1.msra.mxu0 0.0
      %900 = vmatprep.subr.mxu0 0.0
      %901 = vmatpush1.msra.mxu0 0.0
      %902 = vmatprep.subr.mxu0 0.0
      %903 = vmatpush1.msra.mxu0 0.0
      %904 = vmatprep.subr.mxu0 0.0
      %905 = vmatpush1.msra.mxu0 0.0
      %906 = vmatprep.subr.mxu0 0.0
      %907 = vmatpush1.msra.mxu0 0.0
      %908 = vmatprep.subr.mxu0 0.0
      %909 = vmatpush1.msra.mxu0 0.0
      %910 = vmatprep.subr.mxu0 0.0
      %911 = vmatpush1.msra.mxu0 0.0
      %912 = vmatprep.subr.mxu0 0.0
      %913 = vmatpush1.msra.mxu0 0.0
      %914 = vmatprep.subr.mxu0 0.0
      %915 = vmatpush1.msra.mxu0 0.0
      %916 = vmatprep.subr.mxu0 0.0
      %917 = vmatpush1.msra.mxu0 0.0
      %918 = vmatprep.subr.mxu0 0.0
      %919 = vmatpush1.msra.mxu0 0.0
      %920 = vmatprep.subr.mxu0 0.0
      %921 = vmatpush1.msra.mxu0 0.0
      %922 = vmatprep.subr.mxu0 0.0
      %923 = vmatpush1.msra.mxu0 0.0
      %924 = vmatprep.subr.mxu0 0.0
      %925 = vmatpush1.msra.mxu0 0.0
      %926 = vmatprep.mubr.f32.mxu0 0.0
      %927 = vmatmul.mubr.f32.gmra.mrb[0].mxu0 0.0
      %v928 = vpop.f32.mrb[0].mxu0
      %v929 = vadd.f32 %v704, %v928
      %v930 = vpop.f32.mrb[0].mxu0
      %931 = vmatprep.mubr.f32.mxu0 0.0
      %932 = vmatmul.mubr.f32.gmra.mrb[0].mxu0 0.0
      %v933 = vpop.f32.mrb[0].mxu0
      %v934 = vadd.f32 %v709, %v933
      %v935 = vpop.f32.mrb[0].mxu0
      %936 = vmatprep.mubr.f32.mxu0 0.0
      %937 = vmatmul.mubr.f32.gmra.mrb[0].mxu0 %v491
      %v938 = vpop.f32.mrb[0].mxu0
      %v939 = vadd.f32 %v714, %v938
      %v940 = vpop.f32.mrb[0].mxu0
      %941 = vmatprep.mubr.f32.mxu0 0.0
      %942 = vmatmul.mubr.f32.gmra.mrb[0].mxu0 %v413
      %v943 = vpop.f32.mrb[0].mxu0
      %v944 = vadd.f32 %v719, %v943
      %v945 = vpop.f32.mrb[0].mxu0
      %946 = vmatprep.mubr.f32.mxu0 0.0
      %947 = vmatmul.mubr.f32.gmra.mrb[0].mxu0 %v492
      %v948 = vpop.f32.mrb[0].mxu0
      %v949 = vadd.f32 %v724, %v948
      %v950 = vpop.f32.mrb[0].mxu0
      %951 = vmatprep.mubr.f32.mxu0 0.0
      %952 = vmatmul.mubr.f32.gmra.mrb[0].mxu0 %v416
      %v953 = vpop.f32.mrb[0].mxu0
      %v954 = vadd.f32 %v729, %v953
      %v955 = vpop.f32.mrb[0].mxu0
      %956 = vmatprep.mubr.f32.mxu0 0.0
      %957 = vmatmul.mubr.f32.gmra.mrb[0].mxu0 %v493
      %v958 = vpop.f32.mrb[0].mxu0
      %v959 = vadd.f32 %v734, %v958
      %v960 = vpop.f32.mrb[0].mxu0
      %961 = vmatprep.mubr.f32.mxu0 0.0
      %962 = vmatmul.mubr.f32.gmra.mrb[0].mxu0 %v419
      %v963 = vpop.f32.mrb[0].mxu0
      %v964 = vadd.f32 %v739, %v963
      %v965 = vpop.f32.mrb[0].mxu0
      %966 = vmatprep.mubr.f32.mxu0 0.0
      %967 = vmatmul.mubr.f32.gmra.mrb[0].mxu0 %v494
      %v968 = vpop.f32.mrb[0].mxu0
      %v969 = vadd.f32 %v744, %v968
      %v970 = vpop.f32.mrb[0].mxu0
      %971 = vmatprep.mubr.f32.mxu0 0.0
      %972 = vmatmul.mubr.f32.gmra.mrb[0].mxu0 %v422
      %v973 = vpop.f32.mrb[0].mxu0
      %v974 = vadd.f32 %v749, %v973
      %v975 = vpop.f32.mrb[0].mxu0
      %976 = vmatprep.mubr.f32.mxu0 0.0
      %977 = vmatmul.mubr.f32.gmra.mrb[0].mxu0 %v495
      %v978 = vpop.f32.mrb[0].mxu0
      %v979 = vadd.f32 %v754, %v978
      %v980 = vpop.f32.mrb[0].mxu0
      %981 = vmatprep.mubr.f32.mxu0 0.0
      %982 = vmatmul.mubr.f32.gmra.mrb[0].mxu0 %v425
      %v983 = vpop.f32.mrb[0].mxu0
      %v984 = vadd.f32 %v759, %v983
      %v985 = vpop.f32.mrb[0].mxu0
      %986 = vmatprep.mubr.f32.mxu0 0.0
      %987 = vmatmul.mubr.f32.gmra.mrb[0].mxu0 %v496
      %v988 = vpop.f32.mrb[0].mxu0
      %v989 = vadd.f32 %v764, %v988
      %v990 = vpop.f32.mrb[0].mxu0
      %991 = vmatprep.mubr.f32.mxu0 0.0
      %992 = vmatmul.mubr.f32.gmra.mrb[0].mxu0 %v428
      %v993 = vpop.f32.mrb[0].mxu0
      %v994 = vadd.f32 %v769, %v993
      %v995 = vpop.f32.mrb[0].mxu0
      %996 = vmatprep.mubr.f32.mxu0 0.0
      %997 = vmatmul.mubr.f32.gmra.mrb[0].mxu0 %v497
      %v998 = vpop.f32.mrb[0].mxu0
      %v999 = vadd.f32 %v774, %v998
      %v1000 = vpop.f32.mrb[0].mxu0
      %1001 = vmatprep.mubr.f32.mxu0 0.0
      %1002 = vmatmul.mubr.f32.gmra.mrb[0].mxu0 %v431
      %v1003 = vpop.f32.mrb[0].mxu0
      %v1004 = vadd.f32 %v779, %v1003
      %v1005 = vpop.f32.mrb[0].mxu0
      %1006 = vmatprep.mubr.f32.mxu0 0.0
      %1007 = vmatmul.mubr.f32.gmra.mrb[0].mxu0 %v498
      %v1008 = vpop.f32.mrb[0].mxu0
      %v1009 = vadd.f32 %v784, %v1008
      %v1010 = vpop.f32.mrb[0].mxu0
      %1011 = vmatprep.mubr.f32.mxu0 0.0
      %1012 = vmatmul.mubr.f32.gmra.mrb[0].mxu0 %v434
      %v1013 = vpop.f32.mrb[0].mxu0
      %v1014 = vadd.f32 %v789, %v1013
      %v1015 = vpop.f32.mrb[0].mxu0
      %1016 = vmatprep.mubr.f32.mxu0 0.0
      %1017 = vmatmul.mubr.f32.gmra.mrb[0].mxu0 %v499
      %v1018 = vpop.f32.mrb[0].mxu0
      %v1019 = vadd.f32 %v794, %v1018
      %v1020 = vpop.f32.mrb[0].mxu0
      %1021 = vmatprep.mubr.f32.mxu0 0.0
      %1022 = vmatmul.mubr.f32.gmra.mrb[0].mxu0 %v437
      %v1023 = vpop.f32.mrb[0].mxu0
      %v1024 = vadd.f32 %v799, %v1023
      %v1025 = vpop.f32.mrb[0].mxu0
      %1026 = vmatprep.mubr.f32.mxu0 0.0
      %1027 = vmatmul.mubr.f32.gmra.mrb[0].mxu0 %v500
      %v1028 = vpop.f32.mrb[0].mxu0
      %v1029 = vadd.f32 %v804, %v1028
      %v1030 = vpop.f32.mrb[0].mxu0
      %1031 = vmatprep.mubr.f32.mxu0 0.0
      %1032 = vmatmul.mubr.f32.gmra.mrb[0].mxu0 %v440
      %v1033 = vpop.f32.mrb[0].mxu0
      %v1034 = vadd.f32 %v809, %v1033
      %v1035 = vpop.f32.mrb[0].mxu0
      %1036 = vmatprep.mubr.f32.mxu0 0.0
      %1037 = vmatmul.mubr.f32.gmra.mrb[0].mxu0 %v501
      %v1038 = vpop.f32.mrb[0].mxu0
      %v1039 = vadd.f32 %v814, %v1038
      %v1040 = vpop.f32.mrb[0].mxu0
      %1041 = vmatprep.mubr.f32.mxu0 0.0
      %1042 = vmatmul.mubr.f32.gmra.mrb[0].mxu0 %v443
      %v1043 = vpop.f32.mrb[0].mxu0
      %v1044 = vadd.f32 %v819, %v1043
      %v1045 = vpop.f32.mrb[0].mxu0
      %1046 = vmatprep.mubr.f32.mxu0 0.0
      %1047 = vmatmul.mubr.f32.gmra.mrb[0].mxu0 %v502
      %v1048 = vpop.f32.mrb[0].mxu0
      %v1049 = vadd.f32 %v824, %v1048
      %v1050 = vpop.f32.mrb[0].mxu0
      %1051 = vmatprep.mubr.f32.mxu0 0.0
      %1052 = vmatmul.mubr.f32.gmra.mrb[0].mxu0 %v446
      %v1053 = vpop.f32.mrb[0].mxu0
      %v1054 = vadd.f32 %v829, %v1053
      %v1055 = vpop.f32.mrb[0].mxu0
      %1056 = vmatprep.mubr.f32.mxu0 0.0
      %1057 = vmatmul.mubr.f32.gmra.mrb[0].mxu0 %v503
      %v1058 = vpop.f32.mrb[0].mxu0
      %v1059 = vadd.f32 %v834, %v1058
      %v1060 = vpop.f32.mrb[0].mxu0
      %1061 = vmatprep.mubr.f32.mxu0 0.0
      %1062 = vmatmul.mubr.f32.gmra.mrb[0].mxu0 %v449
      %v1063 = vpop.f32.mrb[0].mxu0
      %v1064 = vadd.f32 %v839, %v1063
      %v1065 = vpop.f32.mrb[0].mxu0
      %1066 = vmatprep.mubr.f32.mxu0 0.0
      %1067 = vmatmul.mubr.f32.gmra.mrb[0].mxu0 %v504
      %v1068 = vpop.f32.mrb[0].mxu0
      %v1069 = vadd.f32 %v844, %v1068
      %v1070 = vpop.f32.mrb[0].mxu0
      %1071 = vmatprep.mubr.f32.mxu0 0.0
      %1072 = vmatmul.mubr.f32.gmra.mrb[0].mxu0 %v452
      %v1073 = vpop.f32.mrb[0].mxu0
      %v1074 = vadd.f32 %v849, %v1073
      %v1075 = vpop.f32.mrb[0].mxu0
      %1076 = vmatprep.mubr.f32.mxu0 0.0
      %1077 = vmatmul.mubr.f32.gmra.mrb[0].mxu0 %v505
      %v1078 = vpop.f32.mrb[0].mxu0
      %v1079 = vadd.f32 %v854, %v1078
      %v1080 = vpop.f32.mrb[0].mxu0
      %1081 = vmatprep.mubr.f32.mxu0 0.0
      %1082 = vmatmul.mubr.f32.gmra.mrb[0].mxu0 %v455
      %v1083 = vpop.f32.mrb[0].mxu0
      %v1084 = vadd.f32 %v859, %v1083
      %v1085 = vpop.f32.mrb[0].mxu0
      %1086 = vdwg.mxu0
      %s1087 = scalar_lea.vmem %s3, 256
      %v1088 = vld [vmem:[%s1087] sm:$0xff]
      %v1089 = vld [vmem:[%s1087 + $0x8] sm:$0xff]
      %v1090 = vld [vmem:[%s1087 + $0x10] sm:$0xff]
      %v1091 = vld [vmem:[%s1087 + $0x18] sm:$0xff]
      %v1092 = vld [vmem:[%s1087 + $0x20] sm:$0xff]
      %v1093 = vld [vmem:[%s1087 + $0x28] sm:$0xff]
      %v1094 = vld [vmem:[%s1087 + $0x30] sm:$0xff]
      %v1095 = vld [vmem:[%s1087 + $0x38] sm:$0xff]
      %v1096 = vld [vmem:[%s1087 + $0x40] sm:$0xff]
      %v1097 = vld [vmem:[%s1087 + $0x48] sm:$0xff]
      %v1098 = vld [vmem:[%s1087 + $0x50] sm:$0xff]
      %v1099 = vld [vmem:[%s1087 + $0x58] sm:$0xff]
      %v1100 = vld [vmem:[%s1087 + $0x60] sm:$0xff]
      %v1101 = vld [vmem:[%s1087 + $0x68] sm:$0xff]
      %v1102 = vld [vmem:[%s1087 + $0x70] sm:$0xff]
      %v1103 = vld [vmem:[%s1087 + $0x78] sm:$0xff]
      %1104 = vmatprep.subr.mxu0 0.0
      %1105 = vmatpush1.msra.mxu0 %v1088
      %1106 = vmatprep.subr.mxu0 0.0
      %1107 = vmatpush1.msra.mxu0 %v1089
      %1108 = vmatprep.subr.mxu0 0.0
      %1109 = vmatpush1.msra.mxu0 %v1090
      %1110 = vmatprep.subr.mxu0 0.0
      %1111 = vmatpush1.msra.mxu0 %v1091
      %1112 = vmatprep.subr.mxu0 0.0
      %1113 = vmatpush1.msra.mxu0 %v1092
      %1114 = vmatprep.subr.mxu0 0.0
      %1115 = vmatpush1.msra.mxu0 %v1093
      %1116 = vmatprep.subr.mxu0 0.0
      %1117 = vmatpush1.msra.mxu0 %v1094
      %1118 = vmatprep.subr.mxu0 0.0
      %1119 = vmatpush1.msra.mxu0 %v1095
      %1120 = vmatprep.subr.mxu0 0.0
      %1121 = vmatpush1.msra.mxu0 %v1096
      %1122 = vmatprep.subr.mxu0 0.0
      %1123 = vmatpush1.msra.mxu0 %v1097
      %1124 = vmatprep.subr.mxu0 0.0
      %1125 = vmatpush1.msra.mxu0 %v1098
      %1126 = vmatprep.subr.mxu0 0.0
      %1127 = vmatpush1.msra.mxu0 %v1099
      %1128 = vmatprep.subr.mxu0 0.0
      %1129 = vmatpush1.msra.mxu0 %v1100
      %1130 = vmatprep.subr.mxu0 0.0
      %1131 = vmatpush1.msra.mxu0 %v1101
      %1132 = vmatprep.subr.mxu0 0.0
      %1133 = vmatpush1.msra.mxu0 %v1102
      %1134 = vmatprep.subr.mxu0 0.0
      %1135 = vmatpush1.msra.mxu0 %v1103
      %1136 = vmatprep.subr.mxu0 0.0
      %1137 = vmatpush1.msra.mxu0 0.0
      %1138 = vmatprep.subr.mxu0 0.0
      %1139 = vmatpush1.msra.mxu0 0.0
      %1140 = vmatprep.subr.mxu0 0.0
      %1141 = vmatpush1.msra.mxu0 0.0
      %1142 = vmatprep.subr.mxu0 0.0
      %1143 = vmatpush1.msra.mxu0 0.0
      %1144 = vmatprep.subr.mxu0 0.0
      %1145 = vmatpush1.msra.mxu0 0.0
      %1146 = vmatprep.subr.mxu0 0.0
      %1147 = vmatpush1.msra.mxu0 0.0
      %1148 = vmatprep.subr.mxu0 0.0
      %1149 = vmatpush1.msra.mxu0 0.0
      %1150 = vmatprep.subr.mxu0 0.0
      %1151 = vmatpush1.msra.mxu0 0.0
      %1152 = vmatprep.subr.mxu0 0.0
      %1153 = vmatpush1.msra.mxu0 0.0
      %1154 = vmatprep.subr.mxu0 0.0
      %1155 = vmatpush1.msra.mxu0 0.0
      %1156 = vmatprep.subr.mxu0 0.0
      %1157 = vmatpush1.msra.mxu0 0.0
      %1158 = vmatprep.subr.mxu0 0.0
      %1159 = vmatpush1.msra.mxu0 0.0
      %1160 = vmatprep.subr.mxu0 0.0
      %1161 = vmatpush1.msra.mxu0 0.0
      %1162 = vmatprep.subr.mxu0 0.0
      %1163 = vmatpush1.msra.mxu0 0.0
      %1164 = vmatprep.subr.mxu0 0.0
      %1165 = vmatpush1.msra.mxu0 0.0
      %1166 = vmatprep.subr.mxu0 0.0
      %1167 = vmatpush1.msra.mxu0 0.0
      %1168 = vmatprep.mubr.f32.mxu0 0.0
      %1169 = vmatmul.mubr.f32.gmra.mrb[0].mxu0 0.0
      %v1170 = vpop.f32.mrb[0].mxu0
      %v1171 = vadd.f32 0.0, %v1170
      %v1172 = vpop.f32.mrb[0].mxu0
      %1173 = vmatprep.mubr.f32.mxu0 0.0
      %1174 = vmatmul.mubr.f32.gmra.mrb[0].mxu0 0.0
      %v1175 = vpop.f32.mrb[0].mxu0
      %v1176 = vadd.f32 0.0, %v1175
      %v1177 = vpop.f32.mrb[0].mxu0
      %1178 = vmatprep.mubr.f32.mxu0 0.0
      %1179 = vmatmul.mubr.f32.gmra.mrb[0].mxu0 %v510
      %v1180 = vpop.f32.mrb[0].mxu0
      %v1181 = vadd.f32 0.0, %v1180
      %v1182 = vpop.f32.mrb[0].mxu0
      %1183 = vmatprep.mubr.f32.mxu0 0.0
      %1184 = vmatmul.mubr.f32.gmra.mrb[0].mxu0 %v588
      %v1185 = vpop.f32.mrb[0].mxu0
      %v1186 = vadd.f32 0.0, %v1185
      %v1187 = vpop.f32.mrb[0].mxu0
      %1188 = vmatprep.mubr.f32.mxu0 0.0
      %1189 = vmatmul.mubr.f32.gmra.mrb[0].mxu0 %v513
      %v1190 = vpop.f32.mrb[0].mxu0
      %v1191 = vadd.f32 0.0, %v1190
      %v1192 = vpop.f32.mrb[0].mxu0
      %1193 = vmatprep.mubr.f32.mxu0 0.0
      %1194 = vmatmul.mubr.f32.gmra.mrb[0].mxu0 %v589
      %v1195 = vpop.f32.mrb[0].mxu0
      %v1196 = vadd.f32 0.0, %v1195
      %v1197 = vpop.f32.mrb[0].mxu0
      %1198 = vmatprep.mubr.f32.mxu0 0.0
      %1199 = vmatmul.mubr.f32.gmra.mrb[0].mxu0 %v516
      %v1200 = vpop.f32.mrb[0].mxu0
      %v1201 = vadd.f32 0.0, %v1200
      %v1202 = vpop.f32.mrb[0].mxu0
      %1203 = vmatprep.mubr.f32.mxu0 0.0
      %1204 = vmatmul.mubr.f32.gmra.mrb[0].mxu0 %v590
      %v1205 = vpop.f32.mrb[0].mxu0
      %v1206 = vadd.f32 0.0, %v1205
      %v1207 = vpop.f32.mrb[0].mxu0
      %1208 = vmatprep.mubr.f32.mxu0 0.0
      %1209 = vmatmul.mubr.f32.gmra.mrb[0].mxu0 %v519
      %v1210 = vpop.f32.mrb[0].mxu0
      %v1211 = vadd.f32 0.0, %v1210
      %v1212 = vpop.f32.mrb[0].mxu0
      %1213 = vmatprep.mubr.f32.mxu0 0.0
      %1214 = vmatmul.mubr.f32.gmra.mrb[0].mxu0 %v591
      %v1215 = vpop.f32.mrb[0].mxu0
      %v1216 = vadd.f32 0.0, %v1215
      %v1217 = vpop.f32.mrb[0].mxu0
      %1218 = vmatprep.mubr.f32.mxu0 0.0
      %1219 = vmatmul.mubr.f32.gmra.mrb[0].mxu0 %v522
      %v1220 = vpop.f32.mrb[0].mxu0
      %v1221 = vadd.f32 0.0, %v1220
      %v1222 = vpop.f32.mrb[0].mxu0
      %1223 = vmatprep.mubr.f32.mxu0 0.0
      %1224 = vmatmul.mubr.f32.gmra.mrb[0].mxu0 %v592
      %v1225 = vpop.f32.mrb[0].mxu0
      %v1226 = vadd.f32 0.0, %v1225
      %v1227 = vpop.f32.mrb[0].mxu0
      %1228 = vmatprep.mubr.f32.mxu0 0.0
      %1229 = vmatmul.mubr.f32.gmra.mrb[0].mxu0 %v525
      %v1230 = vpop.f32.mrb[0].mxu0
      %v1231 = vadd.f32 0.0, %v1230
      %v1232 = vpop.f32.mrb[0].mxu0
      %1233 = vmatprep.mubr.f32.mxu0 0.0
      %1234 = vmatmul.mubr.f32.gmra.mrb[0].mxu0 %v593
      %v1235 = vpop.f32.mrb[0].mxu0
      %v1236 = vadd.f32 0.0, %v1235
      %v1237 = vpop.f32.mrb[0].mxu0
      %1238 = vmatprep.mubr.f32.mxu0 0.0
      %1239 = vmatmul.mubr.f32.gmra.mrb[0].mxu0 %v528
      %v1240 = vpop.f32.mrb[0].mxu0
      %v1241 = vadd.f32 0.0, %v1240
      %v1242 = vpop.f32.mrb[0].mxu0
      %1243 = vmatprep.mubr.f32.mxu0 0.0
      %1244 = vmatmul.mubr.f32.gmra.mrb[0].mxu0 %v594
      %v1245 = vpop.f32.mrb[0].mxu0
      %v1246 = vadd.f32 0.0, %v1245
      %v1247 = vpop.f32.mrb[0].mxu0
      %1248 = vmatprep.mubr.f32.mxu0 0.0
      %1249 = vmatmul.mubr.f32.gmra.mrb[0].mxu0 %v531
      %v1250 = vpop.f32.mrb[0].mxu0
      %v1251 = vadd.f32 0.0, %v1250
      %v1252 = vpop.f32.mrb[0].mxu0
      %1253 = vmatprep.mubr.f32.mxu0 0.0
      %1254 = vmatmul.mubr.f32.gmra.mrb[0].mxu0 %v595
      %v1255 = vpop.f32.mrb[0].mxu0
      %v1256 = vadd.f32 0.0, %v1255
      %v1257 = vpop.f32.mrb[0].mxu0
      %1258 = vmatprep.mubr.f32.mxu0 0.0
      %1259 = vmatmul.mubr.f32.gmra.mrb[0].mxu0 %v534
      %v1260 = vpop.f32.mrb[0].mxu0
      %v1261 = vadd.f32 0.0, %v1260
      %v1262 = vpop.f32.mrb[0].mxu0
      %1263 = vmatprep.mubr.f32.mxu0 0.0
      %1264 = vmatmul.mubr.f32.gmra.mrb[0].mxu0 %v596
      %v1265 = vpop.f32.mrb[0].mxu0
      %v1266 = vadd.f32 0.0, %v1265
      %v1267 = vpop.f32.mrb[0].mxu0
      %1268 = vmatprep.mubr.f32.mxu0 0.0
      %1269 = vmatmul.mubr.f32.gmra.mrb[0].mxu0 %v537
      %v1270 = vpop.f32.mrb[0].mxu0
      %v1271 = vadd.f32 0.0, %v1270
      %v1272 = vpop.f32.mrb[0].mxu0
      %1273 = vmatprep.mubr.f32.mxu0 0.0
      %1274 = vmatmul.mubr.f32.gmra.mrb[0].mxu0 %v597
      %v1275 = vpop.f32.mrb[0].mxu0
      %v1276 = vadd.f32 0.0, %v1275
      %v1277 = vpop.f32.mrb[0].mxu0
      %1278 = vmatprep.mubr.f32.mxu0 0.0
      %1279 = vmatmul.mubr.f32.gmra.mrb[0].mxu0 %v540
      %v1280 = vpop.f32.mrb[0].mxu0
      %v1281 = vadd.f32 0.0, %v1280
      %v1282 = vpop.f32.mrb[0].mxu0
      %1283 = vmatprep.mubr.f32.mxu0 0.0
      %1284 = vmatmul.mubr.f32.gmra.mrb[0].mxu0 %v598
      %v1285 = vpop.f32.mrb[0].mxu0
      %v1286 = vadd.f32 0.0, %v1285
      %v1287 = vpop.f32.mrb[0].mxu0
      %1288 = vmatprep.mubr.f32.mxu0 0.0
      %1289 = vmatmul.mubr.f32.gmra.mrb[0].mxu0 %v543
      %v1290 = vpop.f32.mrb[0].mxu0
      %v1291 = vadd.f32 0.0, %v1290
      %v1292 = vpop.f32.mrb[0].mxu0
      %1293 = vmatprep.mubr.f32.mxu0 0.0
      %1294 = vmatmul.mubr.f32.gmra.mrb[0].mxu0 %v599
      %v1295 = vpop.f32.mrb[0].mxu0
      %v1296 = vadd.f32 0.0, %v1295
      %v1297 = vpop.f32.mrb[0].mxu0
      %1298 = vmatprep.mubr.f32.mxu0 0.0
      %1299 = vmatmul.mubr.f32.gmra.mrb[0].mxu0 %v546
      %v1300 = vpop.f32.mrb[0].mxu0
      %v1301 = vadd.f32 0.0, %v1300
      %v1302 = vpop.f32.mrb[0].mxu0
      %1303 = vmatprep.mubr.f32.mxu0 0.0
      %1304 = vmatmul.mubr.f32.gmra.mrb[0].mxu0 %v600
      %v1305 = vpop.f32.mrb[0].mxu0
      %v1306 = vadd.f32 0.0, %v1305
      %v1307 = vpop.f32.mrb[0].mxu0
      %1308 = vmatprep.mubr.f32.mxu0 0.0
      %1309 = vmatmul.mubr.f32.gmra.mrb[0].mxu0 %v549
      %v1310 = vpop.f32.mrb[0].mxu0
      %v1311 = vadd.f32 0.0, %v1310
      %v1312 = vpop.f32.mrb[0].mxu0
      %1313 = vmatprep.mubr.f32.mxu0 0.0
      %1314 = vmatmul.mubr.f32.gmra.mrb[0].mxu0 %v601
      %v1315 = vpop.f32.mrb[0].mxu0
      %v1316 = vadd.f32 0.0, %v1315
      %v1317 = vpop.f32.mrb[0].mxu0
      %1318 = vmatprep.mubr.f32.mxu0 0.0
      %1319 = vmatmul.mubr.f32.gmra.mrb[0].mxu0 %v552
      %v1320 = vpop.f32.mrb[0].mxu0
      %v1321 = vadd.f32 0.0, %v1320
      %v1322 = vpop.f32.mrb[0].mxu0
      %1323 = vmatprep.mubr.f32.mxu0 0.0
      %1324 = vmatmul.mubr.f32.gmra.mrb[0].mxu0 %v602
      %v1325 = vpop.f32.mrb[0].mxu0
      %v1326 = vadd.f32 0.0, %v1325
      %v1327 = vpop.f32.mrb[0].mxu0
      %1328 = vdwg.mxu0
      %v1329 = vadd.f32 %v929, %v1171
      %v1330 = vadd.f32 %v934, %v1176
      %v1331 = vadd.f32 %v939, %v1181
      %v1332 = vadd.f32 %v944, %v1186
      %v1333 = vadd.f32 %v949, %v1191
      %v1334 = vadd.f32 %v954, %v1196
      %v1335 = vadd.f32 %v959, %v1201
      %v1336 = vadd.f32 %v964, %v1206
      %v1337 = vadd.f32 %v969, %v1211
      %v1338 = vadd.f32 %v974, %v1216
      %v1339 = vadd.f32 %v979, %v1221
      %v1340 = vadd.f32 %v984, %v1226
      %v1341 = vadd.f32 %v989, %v1231
      %v1342 = vadd.f32 %v994, %v1236
      %v1343 = vadd.f32 %v999, %v1241
      %v1344 = vadd.f32 %v1004, %v1246
      %v1345 = vadd.f32 %v1009, %v1251
      %v1346 = vadd.f32 %v1014, %v1256
      %v1347 = vadd.f32 %v1019, %v1261
      %v1348 = vadd.f32 %v1024, %v1266
      %v1349 = vadd.f32 %v1029, %v1271
      %v1350 = vadd.f32 %v1034, %v1276
      %v1351 = vadd.f32 %v1039, %v1281
      %v1352 = vadd.f32 %v1044, %v1286
      %v1353 = vadd.f32 %v1049, %v1291
      %v1354 = vadd.f32 %v1054, %v1296
      %v1355 = vadd.f32 %v1059, %v1301
      %v1356 = vadd.f32 %v1064, %v1306
      %v1357 = vadd.f32 %v1069, %v1311
      %v1358 = vadd.f32 %v1074, %v1316
      %v1359 = vadd.f32 %v1079, %v1321
      %v1360 = vadd.f32 %v1084, %v1326
      %s1361 = scalar_lea.vmem %s3, 384
      %v1362 = vld [vmem:[%s1361] sm:$0xff]
      %v1363 = vld [vmem:[%s1361 + $0x8] sm:$0xff]
      %v1364 = vld [vmem:[%s1361 + $0x10] sm:$0xff]
      %v1365 = vld [vmem:[%s1361 + $0x18] sm:$0xff]
      %v1366 = vld [vmem:[%s1361 + $0x20] sm:$0xff]
      %v1367 = vld [vmem:[%s1361 + $0x28] sm:$0xff]
      %v1368 = vld [vmem:[%s1361 + $0x30] sm:$0xff]
      %v1369 = vld [vmem:[%s1361 + $0x38] sm:$0xff]
      %v1370 = vld [vmem:[%s1361 + $0x40] sm:$0xff]
      %v1371 = vld [vmem:[%s1361 + $0x48] sm:$0xff]
      %v1372 = vld [vmem:[%s1361 + $0x50] sm:$0xff]
      %v1373 = vld [vmem:[%s1361 + $0x58] sm:$0xff]
      %v1374 = vld [vmem:[%s1361 + $0x60] sm:$0xff]
      %v1375 = vld [vmem:[%s1361 + $0x68] sm:$0xff]
      %v1376 = vld [vmem:[%s1361 + $0x70] sm:$0xff]
      %v1377 = vld [vmem:[%s1361 + $0x78] sm:$0xff]
      %1378 = vmatprep.subr.mxu0 0.0
      %1379 = vmatpush1.msra.mxu0 %v1362
      %1380 = vmatprep.subr.mxu0 0.0
      %1381 = vmatpush1.msra.mxu0 %v1363
      %1382 = vmatprep.subr.mxu0 0.0
      %1383 = vmatpush1.msra.mxu0 %v1364
      %1384 = vmatprep.subr.mxu0 0.0
      %1385 = vmatpush1.msra.mxu0 %v1365
      %1386 = vmatprep.subr.mxu0 0.0
      %1387 = vmatpush1.msra.mxu0 %v1366
      %1388 = vmatprep.subr.mxu0 0.0
      %1389 = vmatpush1.msra.mxu0 %v1367
      %1390 = vmatprep.subr.mxu0 0.0
      %1391 = vmatpush1.msra.mxu0 %v1368
      %1392 = vmatprep.subr.mxu0 0.0
      %1393 = vmatpush1.msra.mxu0 %v1369
      %1394 = vmatprep.subr.mxu0 0.0
      %1395 = vmatpush1.msra.mxu0 %v1370
      %1396 = vmatprep.subr.mxu0 0.0
      %1397 = vmatpush1.msra.mxu0 %v1371
      %1398 = vmatprep.subr.mxu0 0.0
      %1399 = vmatpush1.msra.mxu0 %v1372
      %1400 = vmatprep.subr.mxu0 0.0
      %1401 = vmatpush1.msra.mxu0 %v1373
      %1402 = vmatprep.subr.mxu0 0.0
      %1403 = vmatpush1.msra.mxu0 %v1374
      %1404 = vmatprep.subr.mxu0 0.0
      %1405 = vmatpush1.msra.mxu0 %v1375
      %1406 = vmatprep.subr.mxu0 0.0
      %1407 = vmatpush1.msra.mxu0 %v1376
      %1408 = vmatprep.subr.mxu0 0.0
      %1409 = vmatpush1.msra.mxu0 %v1377
      %1410 = vmatprep.subr.mxu0 0.0
      %1411 = vmatpush1.msra.mxu0 0.0
      %1412 = vmatprep.subr.mxu0 0.0
      %1413 = vmatpush1.msra.mxu0 0.0
      %1414 = vmatprep.subr.mxu0 0.0
      %1415 = vmatpush1.msra.mxu0 0.0
      %1416 = vmatprep.subr.mxu0 0.0
      %1417 = vmatpush1.msra.mxu0 0.0
      %1418 = vmatprep.subr.mxu0 0.0
      %1419 = vmatpush1.msra.mxu0 0.0
      %1420 = vmatprep.subr.mxu0 0.0
      %1421 = vmatpush1.msra.mxu0 0.0
      %1422 = vmatprep.subr.mxu0 0.0
      %1423 = vmatpush1.msra.mxu0 0.0
      %1424 = vmatprep.subr.mxu0 0.0
      %1425 = vmatpush1.msra.mxu0 0.0
      %1426 = vmatprep.subr.mxu0 0.0
      %1427 = vmatpush1.msra.mxu0 0.0
      %1428 = vmatprep.subr.mxu0 0.0
      %1429 = vmatpush1.msra.mxu0 0.0
      %1430 = vmatprep.subr.mxu0 0.0
      %1431 = vmatpush1.msra.mxu0 0.0
      %1432 = vmatprep.subr.mxu0 0.0
      %1433 = vmatpush1.msra.mxu0 0.0
      %1434 = vmatprep.subr.mxu0 0.0
      %1435 = vmatpush1.msra.mxu0 0.0
      %1436 = vmatprep.subr.mxu0 0.0
      %1437 = vmatpush1.msra.mxu0 0.0
      %1438 = vmatprep.subr.mxu0 0.0
      %1439 = vmatpush1.msra.mxu0 0.0
      %1440 = vmatprep.subr.mxu0 0.0
      %1441 = vmatpush1.msra.mxu0 0.0
      %1442 = vmatprep.mubr.f32.mxu0 0.0
      %1443 = vmatmul.mubr.f32.gmra.mrb[0].mxu0 %v491
      %v1444 = vpop.f32.mrb[0].mxu0
      %v1445 = vadd.f32 0.0, %v1444
      %v1446 = vpop.f32.mrb[0].mxu0
      %1447 = vmatprep.mubr.f32.mxu0 0.0
      %1448 = vmatmul.mubr.f32.gmra.mrb[0].mxu0 %v413
      %v1449 = vpop.f32.mrb[0].mxu0
      %v1450 = vadd.f32 0.0, %v1449
      %v1451 = vpop.f32.mrb[0].mxu0
      %1452 = vmatprep.mubr.f32.mxu0 0.0
      %1453 = vmatmul.mubr.f32.gmra.mrb[0].mxu0 %v492
      %v1454 = vpop.f32.mrb[0].mxu0
      %v1455 = vadd.f32 0.0, %v1454
      %v1456 = vpop.f32.mrb[0].mxu0
      %1457 = vmatprep.mubr.f32.mxu0 0.0
      %1458 = vmatmul.mubr.f32.gmra.mrb[0].mxu0 %v416
      %v1459 = vpop.f32.mrb[0].mxu0
      %v1460 = vadd.f32 0.0, %v1459
      %v1461 = vpop.f32.mrb[0].mxu0
      %1462 = vmatprep.mubr.f32.mxu0 0.0
      %1463 = vmatmul.mubr.f32.gmra.mrb[0].mxu0 %v493
      %v1464 = vpop.f32.mrb[0].mxu0
      %v1465 = vadd.f32 0.0, %v1464
      %v1466 = vpop.f32.mrb[0].mxu0
      %1467 = vmatprep.mubr.f32.mxu0 0.0
      %1468 = vmatmul.mubr.f32.gmra.mrb[0].mxu0 %v419
      %v1469 = vpop.f32.mrb[0].mxu0
      %v1470 = vadd.f32 0.0, %v1469
      %v1471 = vpop.f32.mrb[0].mxu0
      %1472 = vmatprep.mubr.f32.mxu0 0.0
      %1473 = vmatmul.mubr.f32.gmra.mrb[0].mxu0 %v494
      %v1474 = vpop.f32.mrb[0].mxu0
      %v1475 = vadd.f32 0.0, %v1474
      %v1476 = vpop.f32.mrb[0].mxu0
      %1477 = vmatprep.mubr.f32.mxu0 0.0
      %1478 = vmatmul.mubr.f32.gmra.mrb[0].mxu0 %v422
      %v1479 = vpop.f32.mrb[0].mxu0
      %v1480 = vadd.f32 0.0, %v1479
      %v1481 = vpop.f32.mrb[0].mxu0
      %1482 = vmatprep.mubr.f32.mxu0 0.0
      %1483 = vmatmul.mubr.f32.gmra.mrb[0].mxu0 %v495
      %v1484 = vpop.f32.mrb[0].mxu0
      %v1485 = vadd.f32 0.0, %v1484
      %v1486 = vpop.f32.mrb[0].mxu0
      %1487 = vmatprep.mubr.f32.mxu0 0.0
      %1488 = vmatmul.mubr.f32.gmra.mrb[0].mxu0 %v425
      %v1489 = vpop.f32.mrb[0].mxu0
      %v1490 = vadd.f32 0.0, %v1489
      %v1491 = vpop.f32.mrb[0].mxu0
      %1492 = vmatprep.mubr.f32.mxu0 0.0
      %1493 = vmatmul.mubr.f32.gmra.mrb[0].mxu0 %v496
      %v1494 = vpop.f32.mrb[0].mxu0
      %v1495 = vadd.f32 0.0, %v1494
      %v1496 = vpop.f32.mrb[0].mxu0
      %1497 = vmatprep.mubr.f32.mxu0 0.0
      %1498 = vmatmul.mubr.f32.gmra.mrb[0].mxu0 %v428
      %v1499 = vpop.f32.mrb[0].mxu0
      %v1500 = vadd.f32 0.0, %v1499
      %v1501 = vpop.f32.mrb[0].mxu0
      %1502 = vmatprep.mubr.f32.mxu0 0.0
      %1503 = vmatmul.mubr.f32.gmra.mrb[0].mxu0 %v497
      %v1504 = vpop.f32.mrb[0].mxu0
      %v1505 = vadd.f32 0.0, %v1504
      %v1506 = vpop.f32.mrb[0].mxu0
      %1507 = vmatprep.mubr.f32.mxu0 0.0
      %1508 = vmatmul.mubr.f32.gmra.mrb[0].mxu0 %v431
      %v1509 = vpop.f32.mrb[0].mxu0
      %v1510 = vadd.f32 0.0, %v1509
      %v1511 = vpop.f32.mrb[0].mxu0
      %1512 = vmatprep.mubr.f32.mxu0 0.0
      %1513 = vmatmul.mubr.f32.gmra.mrb[0].mxu0 %v498
      %v1514 = vpop.f32.mrb[0].mxu0
      %v1515 = vadd.f32 0.0, %v1514
      %v1516 = vpop.f32.mrb[0].mxu0
      %1517 = vmatprep.mubr.f32.mxu0 0.0
      %1518 = vmatmul.mubr.f32.gmra.mrb[0].mxu0 %v434
      %v1519 = vpop.f32.mrb[0].mxu0
      %v1520 = vadd.f32 0.0, %v1519
      %v1521 = vpop.f32.mrb[0].mxu0
      %1522 = vmatprep.mubr.f32.mxu0 0.0
      %1523 = vmatmul.mubr.f32.gmra.mrb[0].mxu0 %v499
      %v1524 = vpop.f32.mrb[0].mxu0
      %v1525 = vadd.f32 0.0, %v1524
      %v1526 = vpop.f32.mrb[0].mxu0
      %1527 = vmatprep.mubr.f32.mxu0 0.0
      %1528 = vmatmul.mubr.f32.gmra.mrb[0].mxu0 %v437
      %v1529 = vpop.f32.mrb[0].mxu0
      %v1530 = vadd.f32 0.0, %v1529
      %v1531 = vpop.f32.mrb[0].mxu0
      %1532 = vmatprep.mubr.f32.mxu0 0.0
      %1533 = vmatmul.mubr.f32.gmra.mrb[0].mxu0 %v500
      %v1534 = vpop.f32.mrb[0].mxu0
      %v1535 = vadd.f32 0.0, %v1534
      %v1536 = vpop.f32.mrb[0].mxu0
      %1537 = vmatprep.mubr.f32.mxu0 0.0
      %1538 = vmatmul.mubr.f32.gmra.mrb[0].mxu0 %v440
      %v1539 = vpop.f32.mrb[0].mxu0
      %v1540 = vadd.f32 0.0, %v1539
      %v1541 = vpop.f32.mrb[0].mxu0
      %1542 = vmatprep.mubr.f32.mxu0 0.0
      %1543 = vmatmul.mubr.f32.gmra.mrb[0].mxu0 %v501
      %v1544 = vpop.f32.mrb[0].mxu0
      %v1545 = vadd.f32 0.0, %v1544
      %v1546 = vpop.f32.mrb[0].mxu0
      %1547 = vmatprep.mubr.f32.mxu0 0.0
      %1548 = vmatmul.mubr.f32.gmra.mrb[0].mxu0 %v443
      %v1549 = vpop.f32.mrb[0].mxu0
      %v1550 = vadd.f32 0.0, %v1549
      %v1551 = vpop.f32.mrb[0].mxu0
      %1552 = vmatprep.mubr.f32.mxu0 0.0
      %1553 = vmatmul.mubr.f32.gmra.mrb[0].mxu0 %v502
      %v1554 = vpop.f32.mrb[0].mxu0
      %v1555 = vadd.f32 0.0, %v1554
      %v1556 = vpop.f32.mrb[0].mxu0
      %1557 = vmatprep.mubr.f32.mxu0 0.0
      %1558 = vmatmul.mubr.f32.gmra.mrb[0].mxu0 %v446
      %v1559 = vpop.f32.mrb[0].mxu0
      %v1560 = vadd.f32 0.0, %v1559
      %v1561 = vpop.f32.mrb[0].mxu0
      %1562 = vmatprep.mubr.f32.mxu0 0.0
      %1563 = vmatmul.mubr.f32.gmra.mrb[0].mxu0 %v503
      %v1564 = vpop.f32.mrb[0].mxu0
      %v1565 = vadd.f32 0.0, %v1564
      %v1566 = vpop.f32.mrb[0].mxu0
      %1567 = vmatprep.mubr.f32.mxu0 0.0
      %1568 = vmatmul.mubr.f32.gmra.mrb[0].mxu0 %v449
      %v1569 = vpop.f32.mrb[0].mxu0
      %v1570 = vadd.f32 0.0, %v1569
      %v1571 = vpop.f32.mrb[0].mxu0
      %1572 = vmatprep.mubr.f32.mxu0 0.0
      %1573 = vmatmul.mubr.f32.gmra.mrb[0].mxu0 %v504
      %v1574 = vpop.f32.mrb[0].mxu0
      %v1575 = vadd.f32 0.0, %v1574
      %v1576 = vpop.f32.mrb[0].mxu0
      %1577 = vmatprep.mubr.f32.mxu0 0.0
      %1578 = vmatmul.mubr.f32.gmra.mrb[0].mxu0 %v452
      %v1579 = vpop.f32.mrb[0].mxu0
      %v1580 = vadd.f32 0.0, %v1579
      %v1581 = vpop.f32.mrb[0].mxu0
      %1582 = vmatprep.mubr.f32.mxu0 0.0
      %1583 = vmatmul.mubr.f32.gmra.mrb[0].mxu0 %v505
      %v1584 = vpop.f32.mrb[0].mxu0
      %v1585 = vadd.f32 0.0, %v1584
      %v1586 = vpop.f32.mrb[0].mxu0
      %1587 = vmatprep.mubr.f32.mxu0 0.0
      %1588 = vmatmul.mubr.f32.gmra.mrb[0].mxu0 %v455
      %v1589 = vpop.f32.mrb[0].mxu0
      %v1590 = vadd.f32 0.0, %v1589
      %v1591 = vpop.f32.mrb[0].mxu0
      %1592 = vmatprep.mubr.f32.mxu0 0.0
      %1593 = vmatmul.mubr.f32.gmra.mrb[0].mxu0 %v506
      %v1594 = vpop.f32.mrb[0].mxu0
      %v1595 = vadd.f32 0.0, %v1594
      %v1596 = vpop.f32.mrb[0].mxu0
      %1597 = vmatprep.mubr.f32.mxu0 0.0
      %1598 = vmatmul.mubr.f32.gmra.mrb[0].mxu0 %v458
      %v1599 = vpop.f32.mrb[0].mxu0
      %v1600 = vadd.f32 0.0, %v1599
      %v1601 = vpop.f32.mrb[0].mxu0
      %1602 = vdwg.mxu0
      %v1603 = vadd.f32 %v1329, %v1445
      %v1604 = vadd.f32 %v1330, %v1450
      %v1605 = vadd.f32 %v1331, %v1455
      %v1606 = vadd.f32 %v1332, %v1460
      %v1607 = vadd.f32 %v1333, %v1465
      %v1608 = vadd.f32 %v1334, %v1470
      %v1609 = vadd.f32 %v1335, %v1475
      %v1610 = vadd.f32 %v1336, %v1480
      %v1611 = vadd.f32 %v1337, %v1485
      %v1612 = vadd.f32 %v1338, %v1490
      %v1613 = vadd.f32 %v1339, %v1495
      %v1614 = vadd.f32 %v1340, %v1500
      %v1615 = vadd.f32 %v1341, %v1505
      %v1616 = vadd.f32 %v1342, %v1510
      %v1617 = vadd.f32 %v1343, %v1515
      %v1618 = vadd.f32 %v1344, %v1520
      %v1619 = vadd.f32 %v1345, %v1525
      %v1620 = vadd.f32 %v1346, %v1530
      %v1621 = vadd.f32 %v1347, %v1535
      %v1622 = vadd.f32 %v1348, %v1540
      %v1623 = vadd.f32 %v1349, %v1545
      %v1624 = vadd.f32 %v1350, %v1550
      %v1625 = vadd.f32 %v1351, %v1555
      %v1626 = vadd.f32 %v1352, %v1560
      %v1627 = vadd.f32 %v1353, %v1565
      %v1628 = vadd.f32 %v1354, %v1570
      %v1629 = vadd.f32 %v1355, %v1575
      %v1630 = vadd.f32 %v1356, %v1580
      %v1631 = vadd.f32 %v1357, %v1585
      %v1632 = vadd.f32 %v1358, %v1590
      %v1633 = vadd.f32 %v1359, %v1595
      %v1634 = vadd.f32 %v1360, %v1600
      %s1635 = scalar_lea.vmem %s3, 512
      %v1636 = vld [vmem:[%s1635] sm:$0xff]
      %v1637 = vld [vmem:[%s1635 + $0x8] sm:$0xff]
      %v1638 = vld [vmem:[%s1635 + $0x10] sm:$0xff]
      %v1639 = vld [vmem:[%s1635 + $0x18] sm:$0xff]
      %v1640 = vld [vmem:[%s1635 + $0x20] sm:$0xff]
      %v1641 = vld [vmem:[%s1635 + $0x28] sm:$0xff]
      %v1642 = vld [vmem:[%s1635 + $0x30] sm:$0xff]
      %v1643 = vld [vmem:[%s1635 + $0x38] sm:$0xff]
      %v1644 = vld [vmem:[%s1635 + $0x40] sm:$0xff]
      %v1645 = vld [vmem:[%s1635 + $0x48] sm:$0xff]
      %v1646 = vld [vmem:[%s1635 + $0x50] sm:$0xff]
      %v1647 = vld [vmem:[%s1635 + $0x58] sm:$0xff]
      %v1648 = vld [vmem:[%s1635 + $0x60] sm:$0xff]
      %v1649 = vld [vmem:[%s1635 + $0x68] sm:$0xff]
      %v1650 = vld [vmem:[%s1635 + $0x70] sm:$0xff]
      %v1651 = vld [vmem:[%s1635 + $0x78] sm:$0xff]
      %1652 = vmatprep.subr.mxu0 0.0
      %1653 = vmatpush1.msra.mxu0 %v1636
      %1654 = vmatprep.subr.mxu0 0.0
      %1655 = vmatpush1.msra.mxu0 %v1637
      %1656 = vmatprep.subr.mxu0 0.0
      %1657 = vmatpush1.msra.mxu0 %v1638
      %1658 = vmatprep.subr.mxu0 0.0
      %1659 = vmatpush1.msra.mxu0 %v1639
      %1660 = vmatprep.subr.mxu0 0.0
      %1661 = vmatpush1.msra.mxu0 %v1640
      %1662 = vmatprep.subr.mxu0 0.0
      %1663 = vmatpush1.msra.mxu0 %v1641
      %1664 = vmatprep.subr.mxu0 0.0
      %1665 = vmatpush1.msra.mxu0 %v1642
      %1666 = vmatprep.subr.mxu0 0.0
      %1667 = vmatpush1.msra.mxu0 %v1643
      %1668 = vmatprep.subr.mxu0 0.0
      %1669 = vmatpush1.msra.mxu0 %v1644
      %1670 = vmatprep.subr.mxu0 0.0
      %1671 = vmatpush1.msra.mxu0 %v1645
      %1672 = vmatprep.subr.mxu0 0.0
      %1673 = vmatpush1.msra.mxu0 %v1646
      %1674 = vmatprep.subr.mxu0 0.0
      %1675 = vmatpush1.msra.mxu0 %v1647
      %1676 = vmatprep.subr.mxu0 0.0
      %1677 = vmatpush1.msra.mxu0 %v1648
      %1678 = vmatprep.subr.mxu0 0.0
      %1679 = vmatpush1.msra.mxu0 %v1649
      %1680 = vmatprep.subr.mxu0 0.0
      %1681 = vmatpush1.msra.mxu0 %v1650
      %1682 = vmatprep.subr.mxu0 0.0
      %1683 = vmatpush1.msra.mxu0 %v1651
      %1684 = vmatprep.subr.mxu0 0.0
      %1685 = vmatpush1.msra.mxu0 0.0
      %1686 = vmatprep.subr.mxu0 0.0
      %1687 = vmatpush1.msra.mxu0 0.0
      %1688 = vmatprep.subr.mxu0 0.0
      %1689 = vmatpush1.msra.mxu0 0.0
      %1690 = vmatprep.subr.mxu0 0.0
      %1691 = vmatpush1.msra.mxu0 0.0
      %1692 = vmatprep.subr.mxu0 0.0
      %1693 = vmatpush1.msra.mxu0 0.0
      %1694 = vmatprep.subr.mxu0 0.0
      %1695 = vmatpush1.msra.mxu0 0.0
      %1696 = vmatprep.subr.mxu0 0.0
      %1697 = vmatpush1.msra.mxu0 0.0
      %1698 = vmatprep.subr.mxu0 0.0
      %1699 = vmatpush1.msra.mxu0 0.0
      %1700 = vmatprep.subr.mxu0 0.0
      %1701 = vmatpush1.msra.mxu0 0.0
      %1702 = vmatprep.subr.mxu0 0.0
      %1703 = vmatpush1.msra.mxu0 0.0
      %1704 = vmatprep.subr.mxu0 0.0
      %1705 = vmatpush1.msra.mxu0 0.0
      %1706 = vmatprep.subr.mxu0 0.0
      %1707 = vmatpush1.msra.mxu0 0.0
      %1708 = vmatprep.subr.mxu0 0.0
      %1709 = vmatpush1.msra.mxu0 0.0
      %1710 = vmatprep.subr.mxu0 0.0
      %1711 = vmatpush1.msra.mxu0 0.0
      %1712 = vmatprep.subr.mxu0 0.0
      %1713 = vmatpush1.msra.mxu0 0.0
      %1714 = vmatprep.subr.mxu0 0.0
      %1715 = vmatpush1.msra.mxu0 0.0
      %1716 = vmatprep.mubr.f32.mxu0 0.0
      %1717 = vmatmul.mubr.f32.gmra.mrb[0].mxu0 %v346
      %v1718 = vpop.f32.mrb[0].mxu0
      %v1719 = vadd.f32 0.0, %v1718
      %v1720 = vpop.f32.mrb[0].mxu0
      %1721 = vmatprep.mubr.f32.mxu0 0.0
      %1722 = vmatmul.mubr.f32.gmra.mrb[0].mxu0 %v347
      %v1723 = vpop.f32.mrb[0].mxu0
      %v1724 = vadd.f32 0.0, %v1723
      %v1725 = vpop.f32.mrb[0].mxu0
      %1726 = vmatprep.mubr.f32.mxu0 0.0
      %1727 = vmatmul.mubr.f32.gmra.mrb[0].mxu0 %v348
      %v1728 = vpop.f32.mrb[0].mxu0
      %v1729 = vadd.f32 0.0, %v1728
      %v1730 = vpop.f32.mrb[0].mxu0
      %1731 = vmatprep.mubr.f32.mxu0 0.0
      %1732 = vmatmul.mubr.f32.gmra.mrb[0].mxu0 %v349
      %v1733 = vpop.f32.mrb[0].mxu0
      %v1734 = vadd.f32 0.0, %v1733
      %v1735 = vpop.f32.mrb[0].mxu0
      %1736 = vmatprep.mubr.f32.mxu0 0.0
      %1737 = vmatmul.mubr.f32.gmra.mrb[0].mxu0 %v350
      %v1738 = vpop.f32.mrb[0].mxu0
      %v1739 = vadd.f32 0.0, %v1738
      %v1740 = vpop.f32.mrb[0].mxu0
      %1741 = vmatprep.mubr.f32.mxu0 0.0
      %1742 = vmatmul.mubr.f32.gmra.mrb[0].mxu0 %v351
      %v1743 = vpop.f32.mrb[0].mxu0
      %v1744 = vadd.f32 0.0, %v1743
      %v1745 = vpop.f32.mrb[0].mxu0
      %1746 = vmatprep.mubr.f32.mxu0 0.0
      %1747 = vmatmul.mubr.f32.gmra.mrb[0].mxu0 %v352
      %v1748 = vpop.f32.mrb[0].mxu0
      %v1749 = vadd.f32 0.0, %v1748
      %v1750 = vpop.f32.mrb[0].mxu0
      %1751 = vmatprep.mubr.f32.mxu0 0.0
      %1752 = vmatmul.mubr.f32.gmra.mrb[0].mxu0 %v353
      %v1753 = vpop.f32.mrb[0].mxu0
      %v1754 = vadd.f32 0.0, %v1753
      %v1755 = vpop.f32.mrb[0].mxu0
      %1756 = vmatprep.mubr.f32.mxu0 0.0
      %1757 = vmatmul.mubr.f32.gmra.mrb[0].mxu0 %v354
      %v1758 = vpop.f32.mrb[0].mxu0
      %v1759 = vadd.f32 0.0, %v1758
      %v1760 = vpop.f32.mrb[0].mxu0
      %1761 = vmatprep.mubr.f32.mxu0 0.0
      %1762 = vmatmul.mubr.f32.gmra.mrb[0].mxu0 %v355
      %v1763 = vpop.f32.mrb[0].mxu0
      %v1764 = vadd.f32 0.0, %v1763
      %v1765 = vpop.f32.mrb[0].mxu0
      %1766 = vmatprep.mubr.f32.mxu0 0.0
      %1767 = vmatmul.mubr.f32.gmra.mrb[0].mxu0 %v356
      %v1768 = vpop.f32.mrb[0].mxu0
      %v1769 = vadd.f32 0.0, %v1768
      %v1770 = vpop.f32.mrb[0].mxu0
      %1771 = vmatprep.mubr.f32.mxu0 0.0
      %1772 = vmatmul.mubr.f32.gmra.mrb[0].mxu0 %v357
      %v1773 = vpop.f32.mrb[0].mxu0
      %v1774 = vadd.f32 0.0, %v1773
      %v1775 = vpop.f32.mrb[0].mxu0
      %1776 = vmatprep.mubr.f32.mxu0 0.0
      %1777 = vmatmul.mubr.f32.gmra.mrb[0].mxu0 %v358
      %v1778 = vpop.f32.mrb[0].mxu0
      %v1779 = vadd.f32 0.0, %v1778
      %v1780 = vpop.f32.mrb[0].mxu0
      %1781 = vmatprep.mubr.f32.mxu0 0.0
      %1782 = vmatmul.mubr.f32.gmra.mrb[0].mxu0 %v359
      %v1783 = vpop.f32.mrb[0].mxu0
      %v1784 = vadd.f32 0.0, %v1783
      %v1785 = vpop.f32.mrb[0].mxu0
      %1786 = vmatprep.mubr.f32.mxu0 0.0
      %1787 = vmatmul.mubr.f32.gmra.mrb[0].mxu0 %v360
      %v1788 = vpop.f32.mrb[0].mxu0
      %v1789 = vadd.f32 0.0, %v1788
      %v1790 = vpop.f32.mrb[0].mxu0
      %1791 = vmatprep.mubr.f32.mxu0 0.0
      %1792 = vmatmul.mubr.f32.gmra.mrb[0].mxu0 %v361
      %v1793 = vpop.f32.mrb[0].mxu0
      %v1794 = vadd.f32 0.0, %v1793
      %v1795 = vpop.f32.mrb[0].mxu0
      %1796 = vmatprep.mubr.f32.mxu0 0.0
      %1797 = vmatmul.mubr.f32.gmra.mrb[0].mxu0 %v362
      %v1798 = vpop.f32.mrb[0].mxu0
      %v1799 = vadd.f32 0.0, %v1798
      %v1800 = vpop.f32.mrb[0].mxu0
      %1801 = vmatprep.mubr.f32.mxu0 0.0
      %1802 = vmatmul.mubr.f32.gmra.mrb[0].mxu0 %v363
      %v1803 = vpop.f32.mrb[0].mxu0
      %v1804 = vadd.f32 0.0, %v1803
      %v1805 = vpop.f32.mrb[0].mxu0
      %1806 = vmatprep.mubr.f32.mxu0 0.0
      %1807 = vmatmul.mubr.f32.gmra.mrb[0].mxu0 %v364
      %v1808 = vpop.f32.mrb[0].mxu0
      %v1809 = vadd.f32 0.0, %v1808
      %v1810 = vpop.f32.mrb[0].mxu0
      %1811 = vmatprep.mubr.f32.mxu0 0.0
      %1812 = vmatmul.mubr.f32.gmra.mrb[0].mxu0 %v365
      %v1813 = vpop.f32.mrb[0].mxu0
      %v1814 = vadd.f32 0.0, %v1813
      %v1815 = vpop.f32.mrb[0].mxu0
      %1816 = vmatprep.mubr.f32.mxu0 0.0
      %1817 = vmatmul.mubr.f32.gmra.mrb[0].mxu0 %v366
      %v1818 = vpop.f32.mrb[0].mxu0
      %v1819 = vadd.f32 0.0, %v1818
      %v1820 = vpop.f32.mrb[0].mxu0
      %1821 = vmatprep.mubr.f32.mxu0 0.0
      %1822 = vmatmul.mubr.f32.gmra.mrb[0].mxu0 %v367
      %v1823 = vpop.f32.mrb[0].mxu0
      %v1824 = vadd.f32 0.0, %v1823
      %v1825 = vpop.f32.mrb[0].mxu0
      %1826 = vmatprep.mubr.f32.mxu0 0.0
      %1827 = vmatmul.mubr.f32.gmra.mrb[0].mxu0 %v368
      %v1828 = vpop.f32.mrb[0].mxu0
      %v1829 = vadd.f32 0.0, %v1828
      %v1830 = vpop.f32.mrb[0].mxu0
      %1831 = vmatprep.mubr.f32.mxu0 0.0
      %1832 = vmatmul.mubr.f32.gmra.mrb[0].mxu0 %v369
      %v1833 = vpop.f32.mrb[0].mxu0
      %v1834 = vadd.f32 0.0, %v1833
      %v1835 = vpop.f32.mrb[0].mxu0
      %1836 = vmatprep.mubr.f32.mxu0 0.0
      %1837 = vmatmul.mubr.f32.gmra.mrb[0].mxu0 %v370
      %v1838 = vpop.f32.mrb[0].mxu0
      %v1839 = vadd.f32 0.0, %v1838
      %v1840 = vpop.f32.mrb[0].mxu0
      %1841 = vmatprep.mubr.f32.mxu0 0.0
      %1842 = vmatmul.mubr.f32.gmra.mrb[0].mxu0 %v371
      %v1843 = vpop.f32.mrb[0].mxu0
      %v1844 = vadd.f32 0.0, %v1843
      %v1845 = vpop.f32.mrb[0].mxu0
      %1846 = vmatprep.mubr.f32.mxu0 0.0
      %1847 = vmatmul.mubr.f32.gmra.mrb[0].mxu0 %v372
      %v1848 = vpop.f32.mrb[0].mxu0
      %v1849 = vadd.f32 0.0, %v1848
      %v1850 = vpop.f32.mrb[0].mxu0
      %1851 = vmatprep.mubr.f32.mxu0 0.0
      %1852 = vmatmul.mubr.f32.gmra.mrb[0].mxu0 %v373
      %v1853 = vpop.f32.mrb[0].mxu0
      %v1854 = vadd.f32 0.0, %v1853
      %v1855 = vpop.f32.mrb[0].mxu0
      %1856 = vmatprep.mubr.f32.mxu0 0.0
      %1857 = vmatmul.mubr.f32.gmra.mrb[0].mxu0 %v374
      %v1858 = vpop.f32.mrb[0].mxu0
      %v1859 = vadd.f32 0.0, %v1858
      %v1860 = vpop.f32.mrb[0].mxu0
      %1861 = vmatprep.mubr.f32.mxu0 0.0
      %1862 = vmatmul.mubr.f32.gmra.mrb[0].mxu0 %v375
      %v1863 = vpop.f32.mrb[0].mxu0
      %v1864 = vadd.f32 0.0, %v1863
      %v1865 = vpop.f32.mrb[0].mxu0
      %1866 = vmatprep.mubr.f32.mxu0 0.0
      %1867 = vmatmul.mubr.f32.gmra.mrb[0].mxu0 %v376
      %v1868 = vpop.f32.mrb[0].mxu0
      %v1869 = vadd.f32 0.0, %v1868
      %v1870 = vpop.f32.mrb[0].mxu0
      %1871 = vmatprep.mubr.f32.mxu0 0.0
      %1872 = vmatmul.mubr.f32.gmra.mrb[0].mxu0 %v377
      %v1873 = vpop.f32.mrb[0].mxu0
      %v1874 = vadd.f32 0.0, %v1873
      %v1875 = vpop.f32.mrb[0].mxu0
      %1876 = vdwg.mxu0
      %v1877 = vadd.f32 %v1603, %v1719
      %v1878 = vadd.f32 %v1604, %v1724
      %v1879 = vadd.f32 %v1605, %v1729
      %v1880 = vadd.f32 %v1606, %v1734
      %v1881 = vadd.f32 %v1607, %v1739
      %v1882 = vadd.f32 %v1608, %v1744
      %v1883 = vadd.f32 %v1609, %v1749
      %v1884 = vadd.f32 %v1610, %v1754
      %v1885 = vadd.f32 %v1611, %v1759
      %v1886 = vadd.f32 %v1612, %v1764
      %v1887 = vadd.f32 %v1613, %v1769
      %v1888 = vadd.f32 %v1614, %v1774
      %v1889 = vadd.f32 %v1615, %v1779
      %v1890 = vadd.f32 %v1616, %v1784
      %v1891 = vadd.f32 %v1617, %v1789
      %v1892 = vadd.f32 %v1618, %v1794
      %v1893 = vadd.f32 %v1619, %v1799
      %v1894 = vadd.f32 %v1620, %v1804
      %v1895 = vadd.f32 %v1621, %v1809
      %v1896 = vadd.f32 %v1622, %v1814
      %v1897 = vadd.f32 %v1623, %v1819
      %v1898 = vadd.f32 %v1624, %v1824
      %v1899 = vadd.f32 %v1625, %v1829
      %v1900 = vadd.f32 %v1626, %v1834
      %v1901 = vadd.f32 %v1627, %v1839
      %v1902 = vadd.f32 %v1628, %v1844
      %v1903 = vadd.f32 %v1629, %v1849
      %v1904 = vadd.f32 %v1630, %v1854
      %v1905 = vadd.f32 %v1631, %v1859
      %v1906 = vadd.f32 %v1632, %v1864
      %v1907 = vadd.f32 %v1633, %v1869
      %v1908 = vadd.f32 %v1634, %v1874
      %s1909 = scalar_lea.vmem %s3, 640
      %v1910 = vld [vmem:[%s1909] sm:$0xff]
      %v1911 = vld [vmem:[%s1909 + $0x8] sm:$0xff]
      %v1912 = vld [vmem:[%s1909 + $0x10] sm:$0xff]
      %v1913 = vld [vmem:[%s1909 + $0x18] sm:$0xff]
      %v1914 = vld [vmem:[%s1909 + $0x20] sm:$0xff]
      %v1915 = vld [vmem:[%s1909 + $0x28] sm:$0xff]
      %v1916 = vld [vmem:[%s1909 + $0x30] sm:$0xff]
      %v1917 = vld [vmem:[%s1909 + $0x38] sm:$0xff]
      %v1918 = vld [vmem:[%s1909 + $0x40] sm:$0xff]
      %v1919 = vld [vmem:[%s1909 + $0x48] sm:$0xff]
      %v1920 = vld [vmem:[%s1909 + $0x50] sm:$0xff]
      %v1921 = vld [vmem:[%s1909 + $0x58] sm:$0xff]
      %v1922 = vld [vmem:[%s1909 + $0x60] sm:$0xff]
      %v1923 = vld [vmem:[%s1909 + $0x68] sm:$0xff]
      %v1924 = vld [vmem:[%s1909 + $0x70] sm:$0xff]
      %v1925 = vld [vmem:[%s1909 + $0x78] sm:$0xff]
      %1926 = vmatprep.subr.mxu0 0.0
      %1927 = vmatpush1.msra.mxu0 %v1910
      %1928 = vmatprep.subr.mxu0 0.0
      %1929 = vmatpush1.msra.mxu0 %v1911
      %1930 = vmatprep.subr.mxu0 0.0
      %1931 = vmatpush1.msra.mxu0 %v1912
      %1932 = vmatprep.subr.mxu0 0.0
      %1933 = vmatpush1.msra.mxu0 %v1913
      %1934 = vmatprep.subr.mxu0 0.0
      %1935 = vmatpush1.msra.mxu0 %v1914
      %1936 = vmatprep.subr.mxu0 0.0
      %1937 = vmatpush1.msra.mxu0 %v1915
      %1938 = vmatprep.subr.mxu0 0.0
      %1939 = vmatpush1.msra.mxu0 %v1916
      %1940 = vmatprep.subr.mxu0 0.0
      %1941 = vmatpush1.msra.mxu0 %v1917
      %1942 = vmatprep.subr.mxu0 0.0
      %1943 = vmatpush1.msra.mxu0 %v1918
      %1944 = vmatprep.subr.mxu0 0.0
      %1945 = vmatpush1.msra.mxu0 %v1919
      %1946 = vmatprep.subr.mxu0 0.0
      %1947 = vmatpush1.msra.mxu0 %v1920
      %1948 = vmatprep.subr.mxu0 0.0
      %1949 = vmatpush1.msra.mxu0 %v1921
      %1950 = vmatprep.subr.mxu0 0.0
      %1951 = vmatpush1.msra.mxu0 %v1922
      %1952 = vmatprep.subr.mxu0 0.0
      %1953 = vmatpush1.msra.mxu0 %v1923
      %1954 = vmatprep.subr.mxu0 0.0
      %1955 = vmatpush1.msra.mxu0 %v1924
      %1956 = vmatprep.subr.mxu0 0.0
      %1957 = vmatpush1.msra.mxu0 %v1925
      %1958 = vmatprep.subr.mxu0 0.0
      %1959 = vmatpush1.msra.mxu0 0.0
      %1960 = vmatprep.subr.mxu0 0.0
      %1961 = vmatpush1.msra.mxu0 0.0
      %1962 = vmatprep.subr.mxu0 0.0
      %1963 = vmatpush1.msra.mxu0 0.0
      %1964 = vmatprep.subr.mxu0 0.0
      %1965 = vmatpush1.msra.mxu0 0.0
      %1966 = vmatprep.subr.mxu0 0.0
      %1967 = vmatpush1.msra.mxu0 0.0
      %1968 = vmatprep.subr.mxu0 0.0
      %1969 = vmatpush1.msra.mxu0 0.0
      %1970 = vmatprep.subr.mxu0 0.0
      %1971 = vmatpush1.msra.mxu0 0.0
      %1972 = vmatprep.subr.mxu0 0.0
      %1973 = vmatpush1.msra.mxu0 0.0
      %1974 = vmatprep.subr.mxu0 0.0
      %1975 = vmatpush1.msra.mxu0 0.0
      %1976 = vmatprep.subr.mxu0 0.0
      %1977 = vmatpush1.msra.mxu0 0.0
      %1978 = vmatprep.subr.mxu0 0.0
      %1979 = vmatpush1.msra.mxu0 0.0
      %1980 = vmatprep.subr.mxu0 0.0
      %1981 = vmatpush1.msra.mxu0 0.0
      %1982 = vmatprep.subr.mxu0 0.0
      %1983 = vmatpush1.msra.mxu0 0.0
      %1984 = vmatprep.subr.mxu0 0.0
      %1985 = vmatpush1.msra.mxu0 0.0
      %1986 = vmatprep.subr.mxu0 0.0
      %1987 = vmatpush1.msra.mxu0 0.0
      %1988 = vmatprep.subr.mxu0 0.0
      %1989 = vmatpush1.msra.mxu0 0.0
      %1990 = vmatprep.mubr.f32.mxu0 0.0
      %1991 = vmatmul.mubr.f32.gmra.mrb[0].mxu0 %v510
      %v1992 = vpop.f32.mrb[0].mxu0
      %v1993 = vadd.f32 0.0, %v1992
      %v1994 = vpop.f32.mrb[0].mxu0
      %1995 = vmatprep.mubr.f32.mxu0 0.0
      %1996 = vmatmul.mubr.f32.gmra.mrb[0].mxu0 %v588
      %v1997 = vpop.f32.mrb[0].mxu0
      %v1998 = vadd.f32 0.0, %v1997
      %v1999 = vpop.f32.mrb[0].mxu0
      %2000 = vmatprep.mubr.f32.mxu0 0.0
      %2001 = vmatmul.mubr.f32.gmra.mrb[0].mxu0 %v513
      %v2002 = vpop.f32.mrb[0].mxu0
      %v2003 = vadd.f32 0.0, %v2002
      %v2004 = vpop.f32.mrb[0].mxu0
      %2005 = vmatprep.mubr.f32.mxu0 0.0
      %2006 = vmatmul.mubr.f32.gmra.mrb[0].mxu0 %v589
      %v2007 = vpop.f32.mrb[0].mxu0
      %v2008 = vadd.f32 0.0, %v2007
      %v2009 = vpop.f32.mrb[0].mxu0
      %2010 = vmatprep.mubr.f32.mxu0 0.0
      %2011 = vmatmul.mubr.f32.gmra.mrb[0].mxu0 %v516
      %v2012 = vpop.f32.mrb[0].mxu0
      %v2013 = vadd.f32 0.0, %v2012
      %v2014 = vpop.f32.mrb[0].mxu0
      %2015 = vmatprep.mubr.f32.mxu0 0.0
      %2016 = vmatmul.mubr.f32.gmra.mrb[0].mxu0 %v590
      %v2017 = vpop.f32.mrb[0].mxu0
      %v2018 = vadd.f32 0.0, %v2017
      %v2019 = vpop.f32.mrb[0].mxu0
      %2020 = vmatprep.mubr.f32.mxu0 0.0
      %2021 = vmatmul.mubr.f32.gmra.mrb[0].mxu0 %v519
      %v2022 = vpop.f32.mrb[0].mxu0
      %v2023 = vadd.f32 0.0, %v2022
      %v2024 = vpop.f32.mrb[0].mxu0
      %2025 = vmatprep.mubr.f32.mxu0 0.0
      %2026 = vmatmul.mubr.f32.gmra.mrb[0].mxu0 %v591
      %v2027 = vpop.f32.mrb[0].mxu0
      %v2028 = vadd.f32 0.0, %v2027
      %v2029 = vpop.f32.mrb[0].mxu0
      %2030 = vmatprep.mubr.f32.mxu0 0.0
      %2031 = vmatmul.mubr.f32.gmra.mrb[0].mxu0 %v522
      %v2032 = vpop.f32.mrb[0].mxu0
      %v2033 = vadd.f32 0.0, %v2032
      %v2034 = vpop.f32.mrb[0].mxu0
      %2035 = vmatprep.mubr.f32.mxu0 0.0
      %2036 = vmatmul.mubr.f32.gmra.mrb[0].mxu0 %v592
      %v2037 = vpop.f32.mrb[0].mxu0
      %v2038 = vadd.f32 0.0, %v2037
      %v2039 = vpop.f32.mrb[0].mxu0
      %2040 = vmatprep.mubr.f32.mxu0 0.0
      %2041 = vmatmul.mubr.f32.gmra.mrb[0].mxu0 %v525
      %v2042 = vpop.f32.mrb[0].mxu0
      %v2043 = vadd.f32 0.0, %v2042
      %v2044 = vpop.f32.mrb[0].mxu0
      %2045 = vmatprep.mubr.f32.mxu0 0.0
      %2046 = vmatmul.mubr.f32.gmra.mrb[0].mxu0 %v593
      %v2047 = vpop.f32.mrb[0].mxu0
      %v2048 = vadd.f32 0.0, %v2047
      %v2049 = vpop.f32.mrb[0].mxu0
      %2050 = vmatprep.mubr.f32.mxu0 0.0
      %2051 = vmatmul.mubr.f32.gmra.mrb[0].mxu0 %v528
      %v2052 = vpop.f32.mrb[0].mxu0
      %v2053 = vadd.f32 0.0, %v2052
      %v2054 = vpop.f32.mrb[0].mxu0
      %2055 = vmatprep.mubr.f32.mxu0 0.0
      %2056 = vmatmul.mubr.f32.gmra.mrb[0].mxu0 %v594
      %v2057 = vpop.f32.mrb[0].mxu0
      %v2058 = vadd.f32 0.0, %v2057
      %v2059 = vpop.f32.mrb[0].mxu0
      %2060 = vmatprep.mubr.f32.mxu0 0.0
      %2061 = vmatmul.mubr.f32.gmra.mrb[0].mxu0 %v531
      %v2062 = vpop.f32.mrb[0].mxu0
      %v2063 = vadd.f32 0.0, %v2062
      %v2064 = vpop.f32.mrb[0].mxu0
      %2065 = vmatprep.mubr.f32.mxu0 0.0
      %2066 = vmatmul.mubr.f32.gmra.mrb[0].mxu0 %v595
      %v2067 = vpop.f32.mrb[0].mxu0
      %v2068 = vadd.f32 0.0, %v2067
      %v2069 = vpop.f32.mrb[0].mxu0
      %2070 = vmatprep.mubr.f32.mxu0 0.0
      %2071 = vmatmul.mubr.f32.gmra.mrb[0].mxu0 %v534
      %v2072 = vpop.f32.mrb[0].mxu0
      %v2073 = vadd.f32 0.0, %v2072
      %v2074 = vpop.f32.mrb[0].mxu0
      %2075 = vmatprep.mubr.f32.mxu0 0.0
      %2076 = vmatmul.mubr.f32.gmra.mrb[0].mxu0 %v596
      %v2077 = vpop.f32.mrb[0].mxu0
      %v2078 = vadd.f32 0.0, %v2077
      %v2079 = vpop.f32.mrb[0].mxu0
      %2080 = vmatprep.mubr.f32.mxu0 0.0
      %2081 = vmatmul.mubr.f32.gmra.mrb[0].mxu0 %v537
      %v2082 = vpop.f32.mrb[0].mxu0
      %v2083 = vadd.f32 0.0, %v2082
      %v2084 = vpop.f32.mrb[0].mxu0
      %2085 = vmatprep.mubr.f32.mxu0 0.0
      %2086 = vmatmul.mubr.f32.gmra.mrb[0].mxu0 %v597
      %v2087 = vpop.f32.mrb[0].mxu0
      %v2088 = vadd.f32 0.0, %v2087
      %v2089 = vpop.f32.mrb[0].mxu0
      %2090 = vmatprep.mubr.f32.mxu0 0.0
      %2091 = vmatmul.mubr.f32.gmra.mrb[0].mxu0 %v540
      %v2092 = vpop.f32.mrb[0].mxu0
      %v2093 = vadd.f32 0.0, %v2092
      %v2094 = vpop.f32.mrb[0].mxu0
      %2095 = vmatprep.mubr.f32.mxu0 0.0
      %2096 = vmatmul.mubr.f32.gmra.mrb[0].mxu0 %v598
      %v2097 = vpop.f32.mrb[0].mxu0
      %v2098 = vadd.f32 0.0, %v2097
      %v2099 = vpop.f32.mrb[0].mxu0
      %2100 = vmatprep.mubr.f32.mxu0 0.0
      %2101 = vmatmul.mubr.f32.gmra.mrb[0].mxu0 %v543
      %v2102 = vpop.f32.mrb[0].mxu0
      %v2103 = vadd.f32 0.0, %v2102
      %v2104 = vpop.f32.mrb[0].mxu0
      %2105 = vmatprep.mubr.f32.mxu0 0.0
      %2106 = vmatmul.mubr.f32.gmra.mrb[0].mxu0 %v599
      %v2107 = vpop.f32.mrb[0].mxu0
      %v2108 = vadd.f32 0.0, %v2107
      %v2109 = vpop.f32.mrb[0].mxu0
      %2110 = vmatprep.mubr.f32.mxu0 0.0
      %2111 = vmatmul.mubr.f32.gmra.mrb[0].mxu0 %v546
      %v2112 = vpop.f32.mrb[0].mxu0
      %v2113 = vadd.f32 0.0, %v2112
      %v2114 = vpop.f32.mrb[0].mxu0
      %2115 = vmatprep.mubr.f32.mxu0 0.0
      %2116 = vmatmul.mubr.f32.gmra.mrb[0].mxu0 %v600
      %v2117 = vpop.f32.mrb[0].mxu0
      %v2118 = vadd.f32 0.0, %v2117
      %v2119 = vpop.f32.mrb[0].mxu0
      %2120 = vmatprep.mubr.f32.mxu0 0.0
      %2121 = vmatmul.mubr.f32.gmra.mrb[0].mxu0 %v549
      %v2122 = vpop.f32.mrb[0].mxu0
      %v2123 = vadd.f32 0.0, %v2122
      %v2124 = vpop.f32.mrb[0].mxu0
      %2125 = vmatprep.mubr.f32.mxu0 0.0
      %2126 = vmatmul.mubr.f32.gmra.mrb[0].mxu0 %v601
      %v2127 = vpop.f32.mrb[0].mxu0
      %v2128 = vadd.f32 0.0, %v2127
      %v2129 = vpop.f32.mrb[0].mxu0
      %2130 = vmatprep.mubr.f32.mxu0 0.0
      %2131 = vmatmul.mubr.f32.gmra.mrb[0].mxu0 %v552
      %v2132 = vpop.f32.mrb[0].mxu0
      %v2133 = vadd.f32 0.0, %v2132
      %v2134 = vpop.f32.mrb[0].mxu0
      %2135 = vmatprep.mubr.f32.mxu0 0.0
      %2136 = vmatmul.mubr.f32.gmra.mrb[0].mxu0 %v602
      %v2137 = vpop.f32.mrb[0].mxu0
      %v2138 = vadd.f32 0.0, %v2137
      %v2139 = vpop.f32.mrb[0].mxu0
      %2140 = vmatprep.mubr.f32.mxu0 0.0
      %2141 = vmatmul.mubr.f32.gmra.mrb[0].mxu0 %v555
      %v2142 = vpop.f32.mrb[0].mxu0
      %v2143 = vadd.f32 0.0, %v2142
      %v2144 = vpop.f32.mrb[0].mxu0
      %2145 = vmatprep.mubr.f32.mxu0 0.0
      %2146 = vmatmul.mubr.f32.gmra.mrb[0].mxu0 %v603
      %v2147 = vpop.f32.mrb[0].mxu0
      %v2148 = vadd.f32 0.0, %v2147
      %v2149 = vpop.f32.mrb[0].mxu0
      %2150 = vdwg.mxu0
      %v2151 = vadd.f32 %v1877, %v1993
      %v2152 = vadd.f32 %v1878, %v1998
      %v2153 = vadd.f32 %v1879, %v2003
      %v2154 = vadd.f32 %v1880, %v2008
      %v2155 = vadd.f32 %v1881, %v2013
      %v2156 = vadd.f32 %v1882, %v2018
      %v2157 = vadd.f32 %v1883, %v2023
      %v2158 = vadd.f32 %v1884, %v2028
      %v2159 = vadd.f32 %v1885, %v2033
      %v2160 = vadd.f32 %v1886, %v2038
      %v2161 = vadd.f32 %v1887, %v2043
      %v2162 = vadd.f32 %v1888, %v2048
      %v2163 = vadd.f32 %v1889, %v2053
      %v2164 = vadd.f32 %v1890, %v2058
      %v2165 = vadd.f32 %v1891, %v2063
      %v2166 = vadd.f32 %v1892, %v2068
      %v2167 = vadd.f32 %v1893, %v2073
      %v2168 = vadd.f32 %v1894, %v2078
      %v2169 = vadd.f32 %v1895, %v2083
      %v2170 = vadd.f32 %v1896, %v2088
      %v2171 = vadd.f32 %v1897, %v2093
      %v2172 = vadd.f32 %v1898, %v2098
      %v2173 = vadd.f32 %v1899, %v2103
      %v2174 = vadd.f32 %v1900, %v2108
      %v2175 = vadd.f32 %v1901, %v2113
      %v2176 = vadd.f32 %v1902, %v2118
      %v2177 = vadd.f32 %v1903, %v2123
      %v2178 = vadd.f32 %v1904, %v2128
      %v2179 = vadd.f32 %v1905, %v2133
      %v2180 = vadd.f32 %v1906, %v2138
      %v2181 = vadd.f32 %v1907, %v2143
      %v2182 = vadd.f32 %v1908, %v2148
      %s2183 = scalar_lea.vmem %s3, 768
      %v2184 = vld [vmem:[%s2183] sm:$0xff]
      %v2185 = vld [vmem:[%s2183 + $0x8] sm:$0xff]
      %v2186 = vld [vmem:[%s2183 + $0x10] sm:$0xff]
      %v2187 = vld [vmem:[%s2183 + $0x18] sm:$0xff]
      %v2188 = vld [vmem:[%s2183 + $0x20] sm:$0xff]
      %v2189 = vld [vmem:[%s2183 + $0x28] sm:$0xff]
      %v2190 = vld [vmem:[%s2183 + $0x30] sm:$0xff]
      %v2191 = vld [vmem:[%s2183 + $0x38] sm:$0xff]
      %v2192 = vld [vmem:[%s2183 + $0x40] sm:$0xff]
      %v2193 = vld [vmem:[%s2183 + $0x48] sm:$0xff]
      %v2194 = vld [vmem:[%s2183 + $0x50] sm:$0xff]
      %v2195 = vld [vmem:[%s2183 + $0x58] sm:$0xff]
      %v2196 = vld [vmem:[%s2183 + $0x60] sm:$0xff]
      %v2197 = vld [vmem:[%s2183 + $0x68] sm:$0xff]
      %v2198 = vld [vmem:[%s2183 + $0x70] sm:$0xff]
      %v2199 = vld [vmem:[%s2183 + $0x78] sm:$0xff]
      %2200 = vmatprep.subr.mxu0 0.0
      %2201 = vmatpush1.msra.mxu0 %v2184
      %2202 = vmatprep.subr.mxu0 0.0
      %2203 = vmatpush1.msra.mxu0 %v2185
      %2204 = vmatprep.subr.mxu0 0.0
      %2205 = vmatpush1.msra.mxu0 %v2186
      %2206 = vmatprep.subr.mxu0 0.0
      %2207 = vmatpush1.msra.mxu0 %v2187
      %2208 = vmatprep.subr.mxu0 0.0
      %2209 = vmatpush1.msra.mxu0 %v2188
      %2210 = vmatprep.subr.mxu0 0.0
      %2211 = vmatpush1.msra.mxu0 %v2189
      %2212 = vmatprep.subr.mxu0 0.0
      %2213 = vmatpush1.msra.mxu0 %v2190
      %2214 = vmatprep.subr.mxu0 0.0
      %2215 = vmatpush1.msra.mxu0 %v2191
      %2216 = vmatprep.subr.mxu0 0.0
      %2217 = vmatpush1.msra.mxu0 %v2192
      %2218 = vmatprep.subr.mxu0 0.0
      %2219 = vmatpush1.msra.mxu0 %v2193
      %2220 = vmatprep.subr.mxu0 0.0
      %2221 = vmatpush1.msra.mxu0 %v2194
      %2222 = vmatprep.subr.mxu0 0.0
      %2223 = vmatpush1.msra.mxu0 %v2195
      %2224 = vmatprep.subr.mxu0 0.0
      %2225 = vmatpush1.msra.mxu0 %v2196
      %2226 = vmatprep.subr.mxu0 0.0
      %2227 = vmatpush1.msra.mxu0 %v2197
      %2228 = vmatprep.subr.mxu0 0.0
      %2229 = vmatpush1.msra.mxu0 %v2198
      %2230 = vmatprep.subr.mxu0 0.0
      %2231 = vmatpush1.msra.mxu0 %v2199
      %2232 = vmatprep.subr.mxu0 0.0
      %2233 = vmatpush1.msra.mxu0 0.0
      %2234 = vmatprep.subr.mxu0 0.0
      %2235 = vmatpush1.msra.mxu0 0.0
      %2236 = vmatprep.subr.mxu0 0.0
      %2237 = vmatpush1.msra.mxu0 0.0
      %2238 = vmatprep.subr.mxu0 0.0
      %2239 = vmatpush1.msra.mxu0 0.0
      %2240 = vmatprep.subr.mxu0 0.0
      %2241 = vmatpush1.msra.mxu0 0.0
      %2242 = vmatprep.subr.mxu0 0.0
      %2243 = vmatpush1.msra.mxu0 0.0
      %2244 = vmatprep.subr.mxu0 0.0
      %2245 = vmatpush1.msra.mxu0 0.0
      %2246 = vmatprep.subr.mxu0 0.0
      %2247 = vmatpush1.msra.mxu0 0.0
      %2248 = vmatprep.subr.mxu0 0.0
      %2249 = vmatpush1.msra.mxu0 0.0
      %2250 = vmatprep.subr.mxu0 0.0
      %2251 = vmatpush1.msra.mxu0 0.0
      %2252 = vmatprep.subr.mxu0 0.0
      %2253 = vmatpush1.msra.mxu0 0.0
      %2254 = vmatprep.subr.mxu0 0.0
      %2255 = vmatpush1.msra.mxu0 0.0
      %2256 = vmatprep.subr.mxu0 0.0
      %2257 = vmatpush1.msra.mxu0 0.0
      %2258 = vmatprep.subr.mxu0 0.0
      %2259 = vmatpush1.msra.mxu0 0.0
      %2260 = vmatprep.subr.mxu0 0.0
      %2261 = vmatpush1.msra.mxu0 0.0
      %2262 = vmatprep.subr.mxu0 0.0
      %2263 = vmatpush1.msra.mxu0 0.0
      %2264 = vmatprep.mubr.f32.mxu0 0.0
      %2265 = vmatmul.mubr.f32.gmra.mrb[0].mxu0 %v492
      %v2266 = vpop.f32.mrb[0].mxu0
      %v2267 = vadd.f32 0.0, %v2266
      %v2268 = vpop.f32.mrb[0].mxu0
      %2269 = vmatprep.mubr.f32.mxu0 0.0
      %2270 = vmatmul.mubr.f32.gmra.mrb[0].mxu0 %v416
      %v2271 = vpop.f32.mrb[0].mxu0
      %v2272 = vadd.f32 0.0, %v2271
      %v2273 = vpop.f32.mrb[0].mxu0
      %2274 = vmatprep.mubr.f32.mxu0 0.0
      %2275 = vmatmul.mubr.f32.gmra.mrb[0].mxu0 %v493
      %v2276 = vpop.f32.mrb[0].mxu0
      %v2277 = vadd.f32 0.0, %v2276
      %v2278 = vpop.f32.mrb[0].mxu0
      %2279 = vmatprep.mubr.f32.mxu0 0.0
      %2280 = vmatmul.mubr.f32.gmra.mrb[0].mxu0 %v419
      %v2281 = vpop.f32.mrb[0].mxu0
      %v2282 = vadd.f32 0.0, %v2281
      %v2283 = vpop.f32.mrb[0].mxu0
      %2284 = vmatprep.mubr.f32.mxu0 0.0
      %2285 = vmatmul.mubr.f32.gmra.mrb[0].mxu0 %v494
      %v2286 = vpop.f32.mrb[0].mxu0
      %v2287 = vadd.f32 0.0, %v2286
      %v2288 = vpop.f32.mrb[0].mxu0
      %2289 = vmatprep.mubr.f32.mxu0 0.0
      %2290 = vmatmul.mubr.f32.gmra.mrb[0].mxu0 %v422
      %v2291 = vpop.f32.mrb[0].mxu0
      %v2292 = vadd.f32 0.0, %v2291
      %v2293 = vpop.f32.mrb[0].mxu0
      %2294 = vmatprep.mubr.f32.mxu0 0.0
      %2295 = vmatmul.mubr.f32.gmra.mrb[0].mxu0 %v495
      %v2296 = vpop.f32.mrb[0].mxu0
      %v2297 = vadd.f32 0.0, %v2296
      %v2298 = vpop.f32.mrb[0].mxu0
      %2299 = vmatprep.mubr.f32.mxu0 0.0
      %2300 = vmatmul.mubr.f32.gmra.mrb[0].mxu0 %v425
      %v2301 = vpop.f32.mrb[0].mxu0
      %v2302 = vadd.f32 0.0, %v2301
      %v2303 = vpop.f32.mrb[0].mxu0
      %2304 = vmatprep.mubr.f32.mxu0 0.0
      %2305 = vmatmul.mubr.f32.gmra.mrb[0].mxu0 %v496
      %v2306 = vpop.f32.mrb[0].mxu0
      %v2307 = vadd.f32 0.0, %v2306
      %v2308 = vpop.f32.mrb[0].mxu0
      %2309 = vmatprep.mubr.f32.mxu0 0.0
      %2310 = vmatmul.mubr.f32.gmra.mrb[0].mxu0 %v428
      %v2311 = vpop.f32.mrb[0].mxu0
      %v2312 = vadd.f32 0.0, %v2311
      %v2313 = vpop.f32.mrb[0].mxu0
      %2314 = vmatprep.mubr.f32.mxu0 0.0
      %2315 = vmatmul.mubr.f32.gmra.mrb[0].mxu0 %v497
      %v2316 = vpop.f32.mrb[0].mxu0
      %v2317 = vadd.f32 0.0, %v2316
      %v2318 = vpop.f32.mrb[0].mxu0
      %2319 = vmatprep.mubr.f32.mxu0 0.0
      %2320 = vmatmul.mubr.f32.gmra.mrb[0].mxu0 %v431
      %v2321 = vpop.f32.mrb[0].mxu0
      %v2322 = vadd.f32 0.0, %v2321
      %v2323 = vpop.f32.mrb[0].mxu0
      %2324 = vmatprep.mubr.f32.mxu0 0.0
      %2325 = vmatmul.mubr.f32.gmra.mrb[0].mxu0 %v498
      %v2326 = vpop.f32.mrb[0].mxu0
      %v2327 = vadd.f32 0.0, %v2326
      %v2328 = vpop.f32.mrb[0].mxu0
      %2329 = vmatprep.mubr.f32.mxu0 0.0
      %2330 = vmatmul.mubr.f32.gmra.mrb[0].mxu0 %v434
      %v2331 = vpop.f32.mrb[0].mxu0
      %v2332 = vadd.f32 0.0, %v2331
      %v2333 = vpop.f32.mrb[0].mxu0
      %2334 = vmatprep.mubr.f32.mxu0 0.0
      %2335 = vmatmul.mubr.f32.gmra.mrb[0].mxu0 %v499
      %v2336 = vpop.f32.mrb[0].mxu0
      %v2337 = vadd.f32 0.0, %v2336
      %v2338 = vpop.f32.mrb[0].mxu0
      %2339 = vmatprep.mubr.f32.mxu0 0.0
      %2340 = vmatmul.mubr.f32.gmra.mrb[0].mxu0 %v437
      %v2341 = vpop.f32.mrb[0].mxu0
      %v2342 = vadd.f32 0.0, %v2341
      %v2343 = vpop.f32.mrb[0].mxu0
      %2344 = vmatprep.mubr.f32.mxu0 0.0
      %2345 = vmatmul.mubr.f32.gmra.mrb[0].mxu0 %v500
      %v2346 = vpop.f32.mrb[0].mxu0
      %v2347 = vadd.f32 0.0, %v2346
      %v2348 = vpop.f32.mrb[0].mxu0
      %2349 = vmatprep.mubr.f32.mxu0 0.0
      %2350 = vmatmul.mubr.f32.gmra.mrb[0].mxu0 %v440
      %v2351 = vpop.f32.mrb[0].mxu0
      %v2352 = vadd.f32 0.0, %v2351
      %v2353 = vpop.f32.mrb[0].mxu0
      %2354 = vmatprep.mubr.f32.mxu0 0.0
      %2355 = vmatmul.mubr.f32.gmra.mrb[0].mxu0 %v501
      %v2356 = vpop.f32.mrb[0].mxu0
      %v2357 = vadd.f32 0.0, %v2356
      %v2358 = vpop.f32.mrb[0].mxu0
      %2359 = vmatprep.mubr.f32.mxu0 0.0
      %2360 = vmatmul.mubr.f32.gmra.mrb[0].mxu0 %v443
      %v2361 = vpop.f32.mrb[0].mxu0
      %v2362 = vadd.f32 0.0, %v2361
      %v2363 = vpop.f32.mrb[0].mxu0
      %2364 = vmatprep.mubr.f32.mxu0 0.0
      %2365 = vmatmul.mubr.f32.gmra.mrb[0].mxu0 %v502
      %v2366 = vpop.f32.mrb[0].mxu0
      %v2367 = vadd.f32 0.0, %v2366
      %v2368 = vpop.f32.mrb[0].mxu0
      %2369 = vmatprep.mubr.f32.mxu0 0.0
      %2370 = vmatmul.mubr.f32.gmra.mrb[0].mxu0 %v446
      %v2371 = vpop.f32.mrb[0].mxu0
      %v2372 = vadd.f32 0.0, %v2371
      %v2373 = vpop.f32.mrb[0].mxu0
      %2374 = vmatprep.mubr.f32.mxu0 0.0
      %2375 = vmatmul.mubr.f32.gmra.mrb[0].mxu0 %v503
      %v2376 = vpop.f32.mrb[0].mxu0
      %v2377 = vadd.f32 0.0, %v2376
      %v2378 = vpop.f32.mrb[0].mxu0
      %2379 = vmatprep.mubr.f32.mxu0 0.0
      %2380 = vmatmul.mubr.f32.gmra.mrb[0].mxu0 %v449
      %v2381 = vpop.f32.mrb[0].mxu0
      %v2382 = vadd.f32 0.0, %v2381
      %v2383 = vpop.f32.mrb[0].mxu0
      %2384 = vmatprep.mubr.f32.mxu0 0.0
      %2385 = vmatmul.mubr.f32.gmra.mrb[0].mxu0 %v504
      %v2386 = vpop.f32.mrb[0].mxu0
      %v2387 = vadd.f32 0.0, %v2386
      %v2388 = vpop.f32.mrb[0].mxu0
      %2389 = vmatprep.mubr.f32.mxu0 0.0
      %2390 = vmatmul.mubr.f32.gmra.mrb[0].mxu0 %v452
      %v2391 = vpop.f32.mrb[0].mxu0
      %v2392 = vadd.f32 0.0, %v2391
      %v2393 = vpop.f32.mrb[0].mxu0
      %2394 = vmatprep.mubr.f32.mxu0 0.0
      %2395 = vmatmul.mubr.f32.gmra.mrb[0].mxu0 %v505
      %v2396 = vpop.f32.mrb[0].mxu0
      %v2397 = vadd.f32 0.0, %v2396
      %v2398 = vpop.f32.mrb[0].mxu0
      %2399 = vmatprep.mubr.f32.mxu0 0.0
      %2400 = vmatmul.mubr.f32.gmra.mrb[0].mxu0 %v455
      %v2401 = vpop.f32.mrb[0].mxu0
      %v2402 = vadd.f32 0.0, %v2401
      %v2403 = vpop.f32.mrb[0].mxu0
      %2404 = vmatprep.mubr.f32.mxu0 0.0
      %2405 = vmatmul.mubr.f32.gmra.mrb[0].mxu0 %v506
      %v2406 = vpop.f32.mrb[0].mxu0
      %v2407 = vadd.f32 0.0, %v2406
      %v2408 = vpop.f32.mrb[0].mxu0
      %2409 = vmatprep.mubr.f32.mxu0 0.0
      %2410 = vmatmul.mubr.f32.gmra.mrb[0].mxu0 %v458
      %v2411 = vpop.f32.mrb[0].mxu0
      %v2412 = vadd.f32 0.0, %v2411
      %v2413 = vpop.f32.mrb[0].mxu0
      %2414 = vmatprep.mubr.f32.mxu0 0.0
      %2415 = vmatmul.mubr.f32.gmra.mrb[0].mxu0 0.0
      %v2416 = vpop.f32.mrb[0].mxu0
      %v2417 = vadd.f32 0.0, %v2416
      %v2418 = vpop.f32.mrb[0].mxu0
      %2419 = vmatprep.mubr.f32.mxu0 0.0
      %2420 = vmatmul.mubr.f32.gmra.mrb[0].mxu0 0.0
      %v2421 = vpop.f32.mrb[0].mxu0
      %v2422 = vadd.f32 0.0, %v2421
      %v2423 = vpop.f32.mrb[0].mxu0
      %2424 = vdwg.mxu0
      %v2425 = vadd.f32 %v2151, %v2267
      %v2426 = vadd.f32 %v2152, %v2272
      %v2427 = vadd.f32 %v2153, %v2277
      %v2428 = vadd.f32 %v2154, %v2282
      %v2429 = vadd.f32 %v2155, %v2287
      %v2430 = vadd.f32 %v2156, %v2292
      %v2431 = vadd.f32 %v2157, %v2297
      %v2432 = vadd.f32 %v2158, %v2302
      %v2433 = vadd.f32 %v2159, %v2307
      %v2434 = vadd.f32 %v2160, %v2312
      %v2435 = vadd.f32 %v2161, %v2317
      %v2436 = vadd.f32 %v2162, %v2322
      %v2437 = vadd.f32 %v2163, %v2327
      %v2438 = vadd.f32 %v2164, %v2332
      %v2439 = vadd.f32 %v2165, %v2337
      %v2440 = vadd.f32 %v2166, %v2342
      %v2441 = vadd.f32 %v2167, %v2347
      %v2442 = vadd.f32 %v2168, %v2352
      %v2443 = vadd.f32 %v2169, %v2357
      %v2444 = vadd.f32 %v2170, %v2362
      %v2445 = vadd.f32 %v2171, %v2367
      %v2446 = vadd.f32 %v2172, %v2372
      %v2447 = vadd.f32 %v2173, %v2377
      %v2448 = vadd.f32 %v2174, %v2382
      %v2449 = vadd.f32 %v2175, %v2387
      %v2450 = vadd.f32 %v2176, %v2392
      %v2451 = vadd.f32 %v2177, %v2397
      %v2452 = vadd.f32 %v2178, %v2402
      %v2453 = vadd.f32 %v2179, %v2407
      %v2454 = vadd.f32 %v2180, %v2412
      %v2455 = vadd.f32 %v2181, %v2417
      %v2456 = vadd.f32 %v2182, %v2422
      %s2457 = scalar_lea.vmem %s3, 896
      %v2458 = vld [vmem:[%s2457] sm:$0xff]
      %v2459 = vld [vmem:[%s2457 + $0x8] sm:$0xff]
      %v2460 = vld [vmem:[%s2457 + $0x10] sm:$0xff]
      %v2461 = vld [vmem:[%s2457 + $0x18] sm:$0xff]
      %v2462 = vld [vmem:[%s2457 + $0x20] sm:$0xff]
      %v2463 = vld [vmem:[%s2457 + $0x28] sm:$0xff]
      %v2464 = vld [vmem:[%s2457 + $0x30] sm:$0xff]
      %v2465 = vld [vmem:[%s2457 + $0x38] sm:$0xff]
      %v2466 = vld [vmem:[%s2457 + $0x40] sm:$0xff]
      %v2467 = vld [vmem:[%s2457 + $0x48] sm:$0xff]
      %v2468 = vld [vmem:[%s2457 + $0x50] sm:$0xff]
      %v2469 = vld [vmem:[%s2457 + $0x58] sm:$0xff]
      %v2470 = vld [vmem:[%s2457 + $0x60] sm:$0xff]
      %v2471 = vld [vmem:[%s2457 + $0x68] sm:$0xff]
      %v2472 = vld [vmem:[%s2457 + $0x70] sm:$0xff]
      %v2473 = vld [vmem:[%s2457 + $0x78] sm:$0xff]
      %2474 = vmatprep.subr.mxu0 0.0
      %2475 = vmatpush1.msra.mxu0 %v2458
      %2476 = vmatprep.subr.mxu0 0.0
      %2477 = vmatpush1.msra.mxu0 %v2459
      %2478 = vmatprep.subr.mxu0 0.0
      %2479 = vmatpush1.msra.mxu0 %v2460
      %2480 = vmatprep.subr.mxu0 0.0
      %2481 = vmatpush1.msra.mxu0 %v2461
      %2482 = vmatprep.subr.mxu0 0.0
      %2483 = vmatpush1.msra.mxu0 %v2462
      %2484 = vmatprep.subr.mxu0 0.0
      %2485 = vmatpush1.msra.mxu0 %v2463
      %2486 = vmatprep.subr.mxu0 0.0
      %2487 = vmatpush1.msra.mxu0 %v2464
      %2488 = vmatprep.subr.mxu0 0.0
      %2489 = vmatpush1.msra.mxu0 %v2465
      %2490 = vmatprep.subr.mxu0 0.0
      %2491 = vmatpush1.msra.mxu0 %v2466
      %2492 = vmatprep.subr.mxu0 0.0
      %2493 = vmatpush1.msra.mxu0 %v2467
      %2494 = vmatprep.subr.mxu0 0.0
      %2495 = vmatpush1.msra.mxu0 %v2468
      %2496 = vmatprep.subr.mxu0 0.0
      %2497 = vmatpush1.msra.mxu0 %v2469
      %2498 = vmatprep.subr.mxu0 0.0
      %2499 = vmatpush1.msra.mxu0 %v2470
      %2500 = vmatprep.subr.mxu0 0.0
      %2501 = vmatpush1.msra.mxu0 %v2471
      %2502 = vmatprep.subr.mxu0 0.0
      %2503 = vmatpush1.msra.mxu0 %v2472
      %2504 = vmatprep.subr.mxu0 0.0
      %2505 = vmatpush1.msra.mxu0 %v2473
      %2506 = vmatprep.subr.mxu0 0.0
      %2507 = vmatpush1.msra.mxu0 0.0
      %2508 = vmatprep.subr.mxu0 0.0
      %2509 = vmatpush1.msra.mxu0 0.0
      %2510 = vmatprep.subr.mxu0 0.0
      %2511 = vmatpush1.msra.mxu0 0.0
      %2512 = vmatprep.subr.mxu0 0.0
      %2513 = vmatpush1.msra.mxu0 0.0
      %2514 = vmatprep.subr.mxu0 0.0
      %2515 = vmatpush1.msra.mxu0 0.0
      %2516 = vmatprep.subr.mxu0 0.0
      %2517 = vmatpush1.msra.mxu0 0.0
      %2518 = vmatprep.subr.mxu0 0.0
      %2519 = vmatpush1.msra.mxu0 0.0
      %2520 = vmatprep.subr.mxu0 0.0
      %2521 = vmatpush1.msra.mxu0 0.0
      %2522 = vmatprep.subr.mxu0 0.0
      %2523 = vmatpush1.msra.mxu0 0.0
      %2524 = vmatprep.subr.mxu0 0.0
      %2525 = vmatpush1.msra.mxu0 0.0
      %2526 = vmatprep.subr.mxu0 0.0
      %2527 = vmatpush1.msra.mxu0 0.0
      %2528 = vmatprep.subr.mxu0 0.0
      %2529 = vmatpush1.msra.mxu0 0.0
      %2530 = vmatprep.subr.mxu0 0.0
      %2531 = vmatpush1.msra.mxu0 0.0
      %2532 = vmatprep.subr.mxu0 0.0
      %2533 = vmatpush1.msra.mxu0 0.0
      %2534 = vmatprep.subr.mxu0 0.0
      %2535 = vmatpush1.msra.mxu0 0.0
      %2536 = vmatprep.subr.mxu0 0.0
      %2537 = vmatpush1.msra.mxu0 0.0
      %2538 = vmatprep.mubr.f32.mxu0 0.0
      %2539 = vmatmul.mubr.f32.gmra.mrb[0].mxu0 %v348
      %v2540 = vpop.f32.mrb[0].mxu0
      %v2541 = vadd.f32 0.0, %v2540
      %v2542 = vpop.f32.mrb[0].mxu0
      %2543 = vmatprep.mubr.f32.mxu0 0.0
      %2544 = vmatmul.mubr.f32.gmra.mrb[0].mxu0 %v349
      %v2545 = vpop.f32.mrb[0].mxu0
      %v2546 = vadd.f32 0.0, %v2545
      %v2547 = vpop.f32.mrb[0].mxu0
      %2548 = vmatprep.mubr.f32.mxu0 0.0
      %2549 = vmatmul.mubr.f32.gmra.mrb[0].mxu0 %v350
      %v2550 = vpop.f32.mrb[0].mxu0
      %v2551 = vadd.f32 0.0, %v2550
      %v2552 = vpop.f32.mrb[0].mxu0
      %2553 = vmatprep.mubr.f32.mxu0 0.0
      %2554 = vmatmul.mubr.f32.gmra.mrb[0].mxu0 %v351
      %v2555 = vpop.f32.mrb[0].mxu0
      %v2556 = vadd.f32 0.0, %v2555
      %v2557 = vpop.f32.mrb[0].mxu0
      %2558 = vmatprep.mubr.f32.mxu0 0.0
      %2559 = vmatmul.mubr.f32.gmra.mrb[0].mxu0 %v352
      %v2560 = vpop.f32.mrb[0].mxu0
      %v2561 = vadd.f32 0.0, %v2560
      %v2562 = vpop.f32.mrb[0].mxu0
      %2563 = vmatprep.mubr.f32.mxu0 0.0
      %2564 = vmatmul.mubr.f32.gmra.mrb[0].mxu0 %v353
      %v2565 = vpop.f32.mrb[0].mxu0
      %v2566 = vadd.f32 0.0, %v2565
      %v2567 = vpop.f32.mrb[0].mxu0
      %2568 = vmatprep.mubr.f32.mxu0 0.0
      %2569 = vmatmul.mubr.f32.gmra.mrb[0].mxu0 %v354
      %v2570 = vpop.f32.mrb[0].mxu0
      %v2571 = vadd.f32 0.0, %v2570
      %v2572 = vpop.f32.mrb[0].mxu0
      %2573 = vmatprep.mubr.f32.mxu0 0.0
      %2574 = vmatmul.mubr.f32.gmra.mrb[0].mxu0 %v355
      %v2575 = vpop.f32.mrb[0].mxu0
      %v2576 = vadd.f32 0.0, %v2575
      %v2577 = vpop.f32.mrb[0].mxu0
      %2578 = vmatprep.mubr.f32.mxu0 0.0
      %2579 = vmatmul.mubr.f32.gmra.mrb[0].mxu0 %v356
      %v2580 = vpop.f32.mrb[0].mxu0
      %v2581 = vadd.f32 0.0, %v2580
      %v2582 = vpop.f32.mrb[0].mxu0
      %2583 = vmatprep.mubr.f32.mxu0 0.0
      %2584 = vmatmul.mubr.f32.gmra.mrb[0].mxu0 %v357
      %v2585 = vpop.f32.mrb[0].mxu0
      %v2586 = vadd.f32 0.0, %v2585
      %v2587 = vpop.f32.mrb[0].mxu0
      %2588 = vmatprep.mubr.f32.mxu0 0.0
      %2589 = vmatmul.mubr.f32.gmra.mrb[0].mxu0 %v358
      %v2590 = vpop.f32.mrb[0].mxu0
      %v2591 = vadd.f32 0.0, %v2590
      %v2592 = vpop.f32.mrb[0].mxu0
      %2593 = vmatprep.mubr.f32.mxu0 0.0
      %2594 = vmatmul.mubr.f32.gmra.mrb[0].mxu0 %v359
      %v2595 = vpop.f32.mrb[0].mxu0
      %v2596 = vadd.f32 0.0, %v2595
      %v2597 = vpop.f32.mrb[0].mxu0
      %2598 = vmatprep.mubr.f32.mxu0 0.0
      %2599 = vmatmul.mubr.f32.gmra.mrb[0].mxu0 %v360
      %v2600 = vpop.f32.mrb[0].mxu0
      %v2601 = vadd.f32 0.0, %v2600
      %v2602 = vpop.f32.mrb[0].mxu0
      %2603 = vmatprep.mubr.f32.mxu0 0.0
      %2604 = vmatmul.mubr.f32.gmra.mrb[0].mxu0 %v361
      %v2605 = vpop.f32.mrb[0].mxu0
      %v2606 = vadd.f32 0.0, %v2605
      %v2607 = vpop.f32.mrb[0].mxu0
      %2608 = vmatprep.mubr.f32.mxu0 0.0
      %2609 = vmatmul.mubr.f32.gmra.mrb[0].mxu0 %v362
      %v2610 = vpop.f32.mrb[0].mxu0
      %v2611 = vadd.f32 0.0, %v2610
      %v2612 = vpop.f32.mrb[0].mxu0
      %2613 = vmatprep.mubr.f32.mxu0 0.0
      %2614 = vmatmul.mubr.f32.gmra.mrb[0].mxu0 %v363
      %v2615 = vpop.f32.mrb[0].mxu0
      %v2616 = vadd.f32 0.0, %v2615
      %v2617 = vpop.f32.mrb[0].mxu0
      %2618 = vmatprep.mubr.f32.mxu0 0.0
      %2619 = vmatmul.mubr.f32.gmra.mrb[0].mxu0 %v364
      %v2620 = vpop.f32.mrb[0].mxu0
      %v2621 = vadd.f32 0.0, %v2620
      %v2622 = vpop.f32.mrb[0].mxu0
      %2623 = vmatprep.mubr.f32.mxu0 0.0
      %2624 = vmatmul.mubr.f32.gmra.mrb[0].mxu0 %v365
      %v2625 = vpop.f32.mrb[0].mxu0
      %v2626 = vadd.f32 0.0, %v2625
      %v2627 = vpop.f32.mrb[0].mxu0
      %2628 = vmatprep.mubr.f32.mxu0 0.0
      %2629 = vmatmul.mubr.f32.gmra.mrb[0].mxu0 %v366
      %v2630 = vpop.f32.mrb[0].mxu0
      %v2631 = vadd.f32 0.0, %v2630
      %v2632 = vpop.f32.mrb[0].mxu0
      %2633 = vmatprep.mubr.f32.mxu0 0.0
      %2634 = vmatmul.mubr.f32.gmra.mrb[0].mxu0 %v367
      %v2635 = vpop.f32.mrb[0].mxu0
      %v2636 = vadd.f32 0.0, %v2635
      %v2637 = vpop.f32.mrb[0].mxu0
      %2638 = vmatprep.mubr.f32.mxu0 0.0
      %2639 = vmatmul.mubr.f32.gmra.mrb[0].mxu0 %v368
      %v2640 = vpop.f32.mrb[0].mxu0
      %v2641 = vadd.f32 0.0, %v2640
      %v2642 = vpop.f32.mrb[0].mxu0
      %2643 = vmatprep.mubr.f32.mxu0 0.0
      %2644 = vmatmul.mubr.f32.gmra.mrb[0].mxu0 %v369
      %v2645 = vpop.f32.mrb[0].mxu0
      %v2646 = vadd.f32 0.0, %v2645
      %v2647 = vpop.f32.mrb[0].mxu0
      %2648 = vmatprep.mubr.f32.mxu0 0.0
      %2649 = vmatmul.mubr.f32.gmra.mrb[0].mxu0 %v370
      %v2650 = vpop.f32.mrb[0].mxu0
      %v2651 = vadd.f32 0.0, %v2650
      %v2652 = vpop.f32.mrb[0].mxu0
      %2653 = vmatprep.mubr.f32.mxu0 0.0
      %2654 = vmatmul.mubr.f32.gmra.mrb[0].mxu0 %v371
      %v2655 = vpop.f32.mrb[0].mxu0
      %v2656 = vadd.f32 0.0, %v2655
      %v2657 = vpop.f32.mrb[0].mxu0
      %2658 = vmatprep.mubr.f32.mxu0 0.0
      %2659 = vmatmul.mubr.f32.gmra.mrb[0].mxu0 %v372
      %v2660 = vpop.f32.mrb[0].mxu0
      %v2661 = vadd.f32 0.0, %v2660
      %v2662 = vpop.f32.mrb[0].mxu0
      %2663 = vmatprep.mubr.f32.mxu0 0.0
      %2664 = vmatmul.mubr.f32.gmra.mrb[0].mxu0 %v373
      %v2665 = vpop.f32.mrb[0].mxu0
      %v2666 = vadd.f32 0.0, %v2665
      %v2667 = vpop.f32.mrb[0].mxu0
      %2668 = vmatprep.mubr.f32.mxu0 0.0
      %2669 = vmatmul.mubr.f32.gmra.mrb[0].mxu0 %v374
      %v2670 = vpop.f32.mrb[0].mxu0
      %v2671 = vadd.f32 0.0, %v2670
      %v2672 = vpop.f32.mrb[0].mxu0
      %2673 = vmatprep.mubr.f32.mxu0 0.0
      %2674 = vmatmul.mubr.f32.gmra.mrb[0].mxu0 %v375
      %v2675 = vpop.f32.mrb[0].mxu0
      %v2676 = vadd.f32 0.0, %v2675
      %v2677 = vpop.f32.mrb[0].mxu0
      %2678 = vmatprep.mubr.f32.mxu0 0.0
      %2679 = vmatmul.mubr.f32.gmra.mrb[0].mxu0 %v376
      %v2680 = vpop.f32.mrb[0].mxu0
      %v2681 = vadd.f32 0.0, %v2680
      %v2682 = vpop.f32.mrb[0].mxu0
      %2683 = vmatprep.mubr.f32.mxu0 0.0
      %2684 = vmatmul.mubr.f32.gmra.mrb[0].mxu0 %v377
      %v2685 = vpop.f32.mrb[0].mxu0
      %v2686 = vadd.f32 0.0, %v2685
      %v2687 = vpop.f32.mrb[0].mxu0
      %2688 = vmatprep.mubr.f32.mxu0 0.0
      %2689 = vmatmul.mubr.f32.gmra.mrb[0].mxu0 0.0
      %v2690 = vpop.f32.mrb[0].mxu0
      %v2691 = vadd.f32 0.0, %v2690
      %v2692 = vpop.f32.mrb[0].mxu0
      %2693 = vmatprep.mubr.f32.mxu0 0.0
      %2694 = vmatmul.mubr.f32.gmra.mrb[0].mxu0 0.0
      %v2695 = vpop.f32.mrb[0].mxu0
      %v2696 = vadd.f32 0.0, %v2695
      %v2697 = vpop.f32.mrb[0].mxu0
      %2698 = vdwg.mxu0
      %v2699 = vadd.f32 %v2425, %v2541
      %v2700 = vadd.f32 %v2426, %v2546
      %v2701 = vadd.f32 %v2427, %v2551
      %v2702 = vadd.f32 %v2428, %v2556
      %v2703 = vadd.f32 %v2429, %v2561
      %v2704 = vadd.f32 %v2430, %v2566
      %v2705 = vadd.f32 %v2431, %v2571
      %v2706 = vadd.f32 %v2432, %v2576
      %v2707 = vadd.f32 %v2433, %v2581
      %v2708 = vadd.f32 %v2434, %v2586
      %v2709 = vadd.f32 %v2435, %v2591
      %v2710 = vadd.f32 %v2436, %v2596
      %v2711 = vadd.f32 %v2437, %v2601
      %v2712 = vadd.f32 %v2438, %v2606
      %v2713 = vadd.f32 %v2439, %v2611
      %v2714 = vadd.f32 %v2440, %v2616
      %v2715 = vadd.f32 %v2441, %v2621
      %v2716 = vadd.f32 %v2442, %v2626
      %v2717 = vadd.f32 %v2443, %v2631
      %v2718 = vadd.f32 %v2444, %v2636
      %v2719 = vadd.f32 %v2445, %v2641
      %v2720 = vadd.f32 %v2446, %v2646
      %v2721 = vadd.f32 %v2447, %v2651
      %v2722 = vadd.f32 %v2448, %v2656
      %v2723 = vadd.f32 %v2449, %v2661
      %v2724 = vadd.f32 %v2450, %v2666
      %v2725 = vadd.f32 %v2451, %v2671
      %v2726 = vadd.f32 %v2452, %v2676
      %v2727 = vadd.f32 %v2453, %v2681
      %v2728 = vadd.f32 %v2454, %v2686
      %v2729 = vadd.f32 %v2455, %v2691
      %v2730 = vadd.f32 %v2456, %v2696
      %s2731 = scalar_lea.vmem %s3, 1024
      %v2732 = vld [vmem:[%s2731] sm:$0xff]
      %v2733 = vld [vmem:[%s2731 + $0x8] sm:$0xff]
      %v2734 = vld [vmem:[%s2731 + $0x10] sm:$0xff]
      %v2735 = vld [vmem:[%s2731 + $0x18] sm:$0xff]
      %v2736 = vld [vmem:[%s2731 + $0x20] sm:$0xff]
      %v2737 = vld [vmem:[%s2731 + $0x28] sm:$0xff]
      %v2738 = vld [vmem:[%s2731 + $0x30] sm:$0xff]
      %v2739 = vld [vmem:[%s2731 + $0x38] sm:$0xff]
      %v2740 = vld [vmem:[%s2731 + $0x40] sm:$0xff]
      %v2741 = vld [vmem:[%s2731 + $0x48] sm:$0xff]
      %v2742 = vld [vmem:[%s2731 + $0x50] sm:$0xff]
      %v2743 = vld [vmem:[%s2731 + $0x58] sm:$0xff]
      %v2744 = vld [vmem:[%s2731 + $0x60] sm:$0xff]
      %v2745 = vld [vmem:[%s2731 + $0x68] sm:$0xff]
      %v2746 = vld [vmem:[%s2731 + $0x70] sm:$0xff]
      %v2747 = vld [vmem:[%s2731 + $0x78] sm:$0xff]
      %2748 = vmatprep.subr.mxu0 0.0
      %2749 = vmatpush1.msra.mxu0 %v2732
      %2750 = vmatprep.subr.mxu0 0.0
      %2751 = vmatpush1.msra.mxu0 %v2733
      %2752 = vmatprep.subr.mxu0 0.0
      %2753 = vmatpush1.msra.mxu0 %v2734
      %2754 = vmatprep.subr.mxu0 0.0
      %2755 = vmatpush1.msra.mxu0 %v2735
      %2756 = vmatprep.subr.mxu0 0.0
      %2757 = vmatpush1.msra.mxu0 %v2736
      %2758 = vmatprep.subr.mxu0 0.0
      %2759 = vmatpush1.msra.mxu0 %v2737
      %2760 = vmatprep.subr.mxu0 0.0
      %2761 = vmatpush1.msra.mxu0 %v2738
      %2762 = vmatprep.subr.mxu0 0.0
      %2763 = vmatpush1.msra.mxu0 %v2739
      %2764 = vmatprep.subr.mxu0 0.0
      %2765 = vmatpush1.msra.mxu0 %v2740
      %2766 = vmatprep.subr.mxu0 0.0
      %2767 = vmatpush1.msra.mxu0 %v2741
      %2768 = vmatprep.subr.mxu0 0.0
      %2769 = vmatpush1.msra.mxu0 %v2742
      %2770 = vmatprep.subr.mxu0 0.0
      %2771 = vmatpush1.msra.mxu0 %v2743
      %2772 = vmatprep.subr.mxu0 0.0
      %2773 = vmatpush1.msra.mxu0 %v2744
      %2774 = vmatprep.subr.mxu0 0.0
      %2775 = vmatpush1.msra.mxu0 %v2745
      %2776 = vmatprep.subr.mxu0 0.0
      %2777 = vmatpush1.msra.mxu0 %v2746
      %2778 = vmatprep.subr.mxu0 0.0
      %2779 = vmatpush1.msra.mxu0 %v2747
      %2780 = vmatprep.subr.mxu0 0.0
      %2781 = vmatpush1.msra.mxu0 0.0
      %2782 = vmatprep.subr.mxu0 0.0
      %2783 = vmatpush1.msra.mxu0 0.0
      %2784 = vmatprep.subr.mxu0 0.0
      %2785 = vmatpush1.msra.mxu0 0.0
      %2786 = vmatprep.subr.mxu0 0.0
      %2787 = vmatpush1.msra.mxu0 0.0
      %2788 = vmatprep.subr.mxu0 0.0
      %2789 = vmatpush1.msra.mxu0 0.0
      %2790 = vmatprep.subr.mxu0 0.0
      %2791 = vmatpush1.msra.mxu0 0.0
      %2792 = vmatprep.subr.mxu0 0.0
      %2793 = vmatpush1.msra.mxu0 0.0
      %2794 = vmatprep.subr.mxu0 0.0
      %2795 = vmatpush1.msra.mxu0 0.0
      %2796 = vmatprep.subr.mxu0 0.0
      %2797 = vmatpush1.msra.mxu0 0.0
      %2798 = vmatprep.subr.mxu0 0.0
      %2799 = vmatpush1.msra.mxu0 0.0
      %2800 = vmatprep.subr.mxu0 0.0
      %2801 = vmatpush1.msra.mxu0 0.0
      %2802 = vmatprep.subr.mxu0 0.0
      %2803 = vmatpush1.msra.mxu0 0.0
      %2804 = vmatprep.subr.mxu0 0.0
      %2805 = vmatpush1.msra.mxu0 0.0
      %2806 = vmatprep.subr.mxu0 0.0
      %2807 = vmatpush1.msra.mxu0 0.0
      %2808 = vmatprep.subr.mxu0 0.0
      %2809 = vmatpush1.msra.mxu0 0.0
      %2810 = vmatprep.subr.mxu0 0.0
      %2811 = vmatpush1.msra.mxu0 0.0
      %2812 = vmatprep.mubr.f32.mxu0 0.0
      %2813 = vmatmul.mubr.f32.gmra.mrb[0].mxu0 %v513
      %v2814 = vpop.f32.mrb[0].mxu0
      %v2815 = vadd.f32 0.0, %v2814
      %v2816 = vpop.f32.mrb[0].mxu0
      %2817 = vmatprep.mubr.f32.mxu0 0.0
      %2818 = vmatmul.mubr.f32.gmra.mrb[0].mxu0 %v589
      %v2819 = vpop.f32.mrb[0].mxu0
      %v2820 = vadd.f32 0.0, %v2819
      %v2821 = vpop.f32.mrb[0].mxu0
      %2822 = vmatprep.mubr.f32.mxu0 0.0
      %2823 = vmatmul.mubr.f32.gmra.mrb[0].mxu0 %v516
      %v2824 = vpop.f32.mrb[0].mxu0
      %v2825 = vadd.f32 0.0, %v2824
      %v2826 = vpop.f32.mrb[0].mxu0
      %2827 = vmatprep.mubr.f32.mxu0 0.0
      %2828 = vmatmul.mubr.f32.gmra.mrb[0].mxu0 %v590
      %v2829 = vpop.f32.mrb[0].mxu0
      %v2830 = vadd.f32 0.0, %v2829
      %v2831 = vpop.f32.mrb[0].mxu0
      %2832 = vmatprep.mubr.f32.mxu0 0.0
      %2833 = vmatmul.mubr.f32.gmra.mrb[0].mxu0 %v519
      %v2834 = vpop.f32.mrb[0].mxu0
      %v2835 = vadd.f32 0.0, %v2834
      %v2836 = vpop.f32.mrb[0].mxu0
      %2837 = vmatprep.mubr.f32.mxu0 0.0
      %2838 = vmatmul.mubr.f32.gmra.mrb[0].mxu0 %v591
      %v2839 = vpop.f32.mrb[0].mxu0
      %v2840 = vadd.f32 0.0, %v2839
      %v2841 = vpop.f32.mrb[0].mxu0
      %2842 = vmatprep.mubr.f32.mxu0 0.0
      %2843 = vmatmul.mubr.f32.gmra.mrb[0].mxu0 %v522
      %v2844 = vpop.f32.mrb[0].mxu0
      %v2845 = vadd.f32 0.0, %v2844
      %v2846 = vpop.f32.mrb[0].mxu0
      %2847 = vmatprep.mubr.f32.mxu0 0.0
      %2848 = vmatmul.mubr.f32.gmra.mrb[0].mxu0 %v592
      %v2849 = vpop.f32.mrb[0].mxu0
      %v2850 = vadd.f32 0.0, %v2849
      %v2851 = vpop.f32.mrb[0].mxu0
      %2852 = vmatprep.mubr.f32.mxu0 0.0
      %2853 = vmatmul.mubr.f32.gmra.mrb[0].mxu0 %v525
      %v2854 = vpop.f32.mrb[0].mxu0
      %v2855 = vadd.f32 0.0, %v2854
      %v2856 = vpop.f32.mrb[0].mxu0
      %2857 = vmatprep.mubr.f32.mxu0 0.0
      %2858 = vmatmul.mubr.f32.gmra.mrb[0].mxu0 %v593
      %v2859 = vpop.f32.mrb[0].mxu0
      %v2860 = vadd.f32 0.0, %v2859
      %v2861 = vpop.f32.mrb[0].mxu0
      %2862 = vmatprep.mubr.f32.mxu0 0.0
      %2863 = vmatmul.mubr.f32.gmra.mrb[0].mxu0 %v528
      %v2864 = vpop.f32.mrb[0].mxu0
      %v2865 = vadd.f32 0.0, %v2864
      %v2866 = vpop.f32.mrb[0].mxu0
      %2867 = vmatprep.mubr.f32.mxu0 0.0
      %2868 = vmatmul.mubr.f32.gmra.mrb[0].mxu0 %v594
      %v2869 = vpop.f32.mrb[0].mxu0
      %v2870 = vadd.f32 0.0, %v2869
      %v2871 = vpop.f32.mrb[0].mxu0
      %2872 = vmatprep.mubr.f32.mxu0 0.0
      %2873 = vmatmul.mubr.f32.gmra.mrb[0].mxu0 %v531
      %v2874 = vpop.f32.mrb[0].mxu0
      %v2875 = vadd.f32 0.0, %v2874
      %v2876 = vpop.f32.mrb[0].mxu0
      %2877 = vmatprep.mubr.f32.mxu0 0.0
      %2878 = vmatmul.mubr.f32.gmra.mrb[0].mxu0 %v595
      %v2879 = vpop.f32.mrb[0].mxu0
      %v2880 = vadd.f32 0.0, %v2879
      %v2881 = vpop.f32.mrb[0].mxu0
      %2882 = vmatprep.mubr.f32.mxu0 0.0
      %2883 = vmatmul.mubr.f32.gmra.mrb[0].mxu0 %v534
      %v2884 = vpop.f32.mrb[0].mxu0
      %v2885 = vadd.f32 0.0, %v2884
      %v2886 = vpop.f32.mrb[0].mxu0
      %2887 = vmatprep.mubr.f32.mxu0 0.0
      %2888 = vmatmul.mubr.f32.gmra.mrb[0].mxu0 %v596
      %v2889 = vpop.f32.mrb[0].mxu0
      %v2890 = vadd.f32 0.0, %v2889
      %v2891 = vpop.f32.mrb[0].mxu0
      %2892 = vmatprep.mubr.f32.mxu0 0.0
      %2893 = vmatmul.mubr.f32.gmra.mrb[0].mxu0 %v537
      %v2894 = vpop.f32.mrb[0].mxu0
      %v2895 = vadd.f32 0.0, %v2894
      %v2896 = vpop.f32.mrb[0].mxu0
      %2897 = vmatprep.mubr.f32.mxu0 0.0
      %2898 = vmatmul.mubr.f32.gmra.mrb[0].mxu0 %v597
      %v2899 = vpop.f32.mrb[0].mxu0
      %v2900 = vadd.f32 0.0, %v2899
      %v2901 = vpop.f32.mrb[0].mxu0
      %2902 = vmatprep.mubr.f32.mxu0 0.0
      %2903 = vmatmul.mubr.f32.gmra.mrb[0].mxu0 %v540
      %v2904 = vpop.f32.mrb[0].mxu0
      %v2905 = vadd.f32 0.0, %v2904
      %v2906 = vpop.f32.mrb[0].mxu0
      %2907 = vmatprep.mubr.f32.mxu0 0.0
      %2908 = vmatmul.mubr.f32.gmra.mrb[0].mxu0 %v598
      %v2909 = vpop.f32.mrb[0].mxu0
      %v2910 = vadd.f32 0.0, %v2909
      %v2911 = vpop.f32.mrb[0].mxu0
      %2912 = vmatprep.mubr.f32.mxu0 0.0
      %2913 = vmatmul.mubr.f32.gmra.mrb[0].mxu0 %v543
      %v2914 = vpop.f32.mrb[0].mxu0
      %v2915 = vadd.f32 0.0, %v2914
      %v2916 = vpop.f32.mrb[0].mxu0
      %2917 = vmatprep.mubr.f32.mxu0 0.0
      %2918 = vmatmul.mubr.f32.gmra.mrb[0].mxu0 %v599
      %v2919 = vpop.f32.mrb[0].mxu0
      %v2920 = vadd.f32 0.0, %v2919
      %v2921 = vpop.f32.mrb[0].mxu0
      %2922 = vmatprep.mubr.f32.mxu0 0.0
      %2923 = vmatmul.mubr.f32.gmra.mrb[0].mxu0 %v546
      %v2924 = vpop.f32.mrb[0].mxu0
      %v2925 = vadd.f32 0.0, %v2924
      %v2926 = vpop.f32.mrb[0].mxu0
      %2927 = vmatprep.mubr.f32.mxu0 0.0
      %2928 = vmatmul.mubr.f32.gmra.mrb[0].mxu0 %v600
      %v2929 = vpop.f32.mrb[0].mxu0
      %v2930 = vadd.f32 0.0, %v2929
      %v2931 = vpop.f32.mrb[0].mxu0
      %2932 = vmatprep.mubr.f32.mxu0 0.0
      %2933 = vmatmul.mubr.f32.gmra.mrb[0].mxu0 %v549
      %v2934 = vpop.f32.mrb[0].mxu0
      %v2935 = vadd.f32 0.0, %v2934
      %v2936 = vpop.f32.mrb[0].mxu0
      %2937 = vmatprep.mubr.f32.mxu0 0.0
      %2938 = vmatmul.mubr.f32.gmra.mrb[0].mxu0 %v601
      %v2939 = vpop.f32.mrb[0].mxu0
      %v2940 = vadd.f32 0.0, %v2939
      %v2941 = vpop.f32.mrb[0].mxu0
      %2942 = vmatprep.mubr.f32.mxu0 0.0
      %2943 = vmatmul.mubr.f32.gmra.mrb[0].mxu0 %v552
      %v2944 = vpop.f32.mrb[0].mxu0
      %v2945 = vadd.f32 0.0, %v2944
      %v2946 = vpop.f32.mrb[0].mxu0
      %2947 = vmatprep.mubr.f32.mxu0 0.0
      %2948 = vmatmul.mubr.f32.gmra.mrb[0].mxu0 %v602
      %v2949 = vpop.f32.mrb[0].mxu0
      %v2950 = vadd.f32 0.0, %v2949
      %v2951 = vpop.f32.mrb[0].mxu0
      %2952 = vmatprep.mubr.f32.mxu0 0.0
      %2953 = vmatmul.mubr.f32.gmra.mrb[0].mxu0 %v555
      %v2954 = vpop.f32.mrb[0].mxu0
      %v2955 = vadd.f32 0.0, %v2954
      %v2956 = vpop.f32.mrb[0].mxu0
      %2957 = vmatprep.mubr.f32.mxu0 0.0
      %2958 = vmatmul.mubr.f32.gmra.mrb[0].mxu0 %v603
      %v2959 = vpop.f32.mrb[0].mxu0
      %v2960 = vadd.f32 0.0, %v2959
      %v2961 = vpop.f32.mrb[0].mxu0
      %2962 = vmatprep.mubr.f32.mxu0 0.0
      %2963 = vmatmul.mubr.f32.gmra.mrb[0].mxu0 0.0
      %v2964 = vpop.f32.mrb[0].mxu0
      %v2965 = vadd.f32 0.0, %v2964
      %v2966 = vpop.f32.mrb[0].mxu0
      %2967 = vmatprep.mubr.f32.mxu0 0.0
      %2968 = vmatmul.mubr.f32.gmra.mrb[0].mxu0 0.0
      %v2969 = vpop.f32.mrb[0].mxu0
      %v2970 = vadd.f32 0.0, %v2969
      %v2971 = vpop.f32.mrb[0].mxu0
      %2972 = vdwg.mxu0
      %v2973 = vadd.f32 %v2699, %v2815
      %v2974 = vadd.f32 %v2700, %v2820
      %v2975 = vadd.f32 %v2701, %v2825
      %v2976 = vadd.f32 %v2702, %v2830
      %v2977 = vadd.f32 %v2703, %v2835
      %v2978 = vadd.f32 %v2704, %v2840
      %v2979 = vadd.f32 %v2705, %v2845
      %v2980 = vadd.f32 %v2706, %v2850
      %v2981 = vadd.f32 %v2707, %v2855
      %v2982 = vadd.f32 %v2708, %v2860
      %v2983 = vadd.f32 %v2709, %v2865
      %v2984 = vadd.f32 %v2710, %v2870
      %v2985 = vadd.f32 %v2711, %v2875
      %v2986 = vadd.f32 %v2712, %v2880
      %v2987 = vadd.f32 %v2713, %v2885
      %v2988 = vadd.f32 %v2714, %v2890
      %v2989 = vadd.f32 %v2715, %v2895
      %v2990 = vadd.f32 %v2716, %v2900
      %v2991 = vadd.f32 %v2717, %v2905
      %v2992 = vadd.f32 %v2718, %v2910
      %v2993 = vadd.f32 %v2719, %v2915
      %v2994 = vadd.f32 %v2720, %v2920
      %v2995 = vadd.f32 %v2721, %v2925
      %v2996 = vadd.f32 %v2722, %v2930
      %v2997 = vadd.f32 %v2723, %v2935
      %v2998 = vadd.f32 %v2724, %v2940
      %v2999 = vadd.f32 %v2725, %v2945
      %v3000 = vadd.f32 %v2726, %v2950
      %v3001 = vadd.f32 %v2727, %v2955
      %v3002 = vadd.f32 %v2728, %v2960
      %v3003 = vadd.f32 %v2729, %v2965
      %v3004 = vadd.f32 %v2730, %v2970
      %3005 = vst [vmem:[%s231] sm:$0xff] %v2973
      %3006 = vst [vmem:[%s231 + $0x8] sm:$0xff] %v2974
      %3007 = vst [vmem:[%s231 + $0x10] sm:$0xff] %v2975
      %3008 = vst [vmem:[%s231 + $0x18] sm:$0xff] %v2976
      %3009 = vst [vmem:[%s231 + $0x20] sm:$0xff] %v2977
      %3010 = vst [vmem:[%s231 + $0x28] sm:$0xff] %v2978
      %3011 = vst [vmem:[%s231 + $0x30] sm:$0xff] %v2979
      %3012 = vst [vmem:[%s231 + $0x38] sm:$0xff] %v2980
      %3013 = vst [vmem:[%s231 + $0x40] sm:$0xff] %v2981
      %3014 = vst [vmem:[%s231 + $0x48] sm:$0xff] %v2982
      %3015 = vst [vmem:[%s231 + $0x50] sm:$0xff] %v2983
      %3016 = vst [vmem:[%s231 + $0x58] sm:$0xff] %v2984
      %3017 = vst [vmem:[%s231 + $0x60] sm:$0xff] %v2985
      %3018 = vst [vmem:[%s231 + $0x68] sm:$0xff] %v2986
      %3019 = vst [vmem:[%s231 + $0x70] sm:$0xff] %v2987
      %3020 = vst [vmem:[%s231 + $0x78] sm:$0xff] %v2988
      %3021 = vst [vmem:[%s231 + $0x80] sm:$0xff] %v2989
      %3022 = vst [vmem:[%s231 + $0x88] sm:$0xff] %v2990
      %3023 = vst [vmem:[%s231 + $0x90] sm:$0xff] %v2991
      %3024 = vst [vmem:[%s231 + $0x98] sm:$0xff] %v2992
      %3025 = vst [vmem:[%s231 + $0xa0] sm:$0xff] %v2993
      %3026 = vst [vmem:[%s231 + $0xa8] sm:$0xff] %v2994
      %3027 = vst [vmem:[%s231 + $0xb0] sm:$0xff] %v2995
      %3028 = vst [vmem:[%s231 + $0xb8] sm:$0xff] %v2996
      %3029 = vst [vmem:[%s231 + $0xc0] sm:$0xff] %v2997
      %3030 = vst [vmem:[%s231 + $0xc8] sm:$0xff] %v2998
      %3031 = vst [vmem:[%s231 + $0xd0] sm:$0xff] %v2999
      %3032 = vst [vmem:[%s231 + $0xd8] sm:$0xff] %v3000
      %3033 = vst [vmem:[%s231 + $0xe0] sm:$0xff] %v3001
      %3034 = vst [vmem:[%s231 + $0xe8] sm:$0xff] %v3002
      %3035 = vst [vmem:[%s231 + $0xf0] sm:$0xff] %v3003
      %3036 = vst [vmem:[%s231 + $0xf8] sm:$0xff] %v3004
      %v3037 = vadd.f32 %v2973, %v2974
      %v3038 = vadd.f32 %v3037, %v2975
      %v3039 = vadd.f32 %v3038, %v2976
      %v3040 = vadd.f32 %v3039, %v2977
      %v3041 = vadd.f32 %v3040, %v2978
      %v3042 = vadd.f32 %v3041, %v2979
      %v3043 = vadd.f32 %v3042, %v2980
      %v3044 = vadd.f32 %v3043, %v2981
      %v3045 = vadd.f32 %v3044, %v2982
      %v3046 = vadd.f32 %v3045, %v2983
      %v3047 = vadd.f32 %v3046, %v2984
      %v3048 = vadd.f32 %v3047, %v2985
      %v3049 = vadd.f32 %v3048, %v2986
      %v3050 = vadd.f32 %v3049, %v2987
      %v3051 = vadd.f32 %v3050, %v2988
      %v3052 = vadd.f32 %v3051, %v2989
      %v3053 = vadd.f32 %v3052, %v2990
      %v3054 = vadd.f32 %v3053, %v2991
      %v3055 = vadd.f32 %v3054, %v2992
      %v3056 = vadd.f32 %v3055, %v2993
      %v3057 = vadd.f32 %v3056, %v2994
      %v3058 = vadd.f32 %v3057, %v2995
      %v3059 = vadd.f32 %v3058, %v2996
      %v3060 = vadd.f32 %v3059, %v2997
      %v3061 = vadd.f32 %v3060, %v2998
      %v3062 = vadd.f32 %v3061, %v2999
      %v3063 = vadd.f32 %v3062, %v3000
      %v3064 = vadd.f32 %v3063, %v3001
      %v3065 = vadd.f32 %v3064, %v3002
      %v3066 = vadd.f32 %v3065, %v3003
      %v3067 = vadd.f32 %v3066, %v3004
      %v3068 = vrot.slane %v3067, 4
      %v3069 = vadd.f32 %v3067, %v3068
      %v3070 = vrot.slane %v3069, 2
      %v3071 = vadd.f32 %v3069, %v3070
      %v3072 = vrot.slane %v3071, 1
      %v3073 = vadd.f32 %v3071, %v3072
      %v3074 = vmul.f32 %v2973, %v2973
      %v3075 = vmul.f32 %v2974, %v2974
      %v3076 = vmul.f32 %v2975, %v2975
      %v3077 = vmul.f32 %v2976, %v2976
      %v3078 = vmul.f32 %v2977, %v2977
      %v3079 = vmul.f32 %v2978, %v2978
      %v3080 = vmul.f32 %v2979, %v2979
      %v3081 = vmul.f32 %v2980, %v2980
      %v3082 = vmul.f32 %v2981, %v2981
      %v3083 = vmul.f32 %v2982, %v2982
      %v3084 = vmul.f32 %v2983, %v2983
      %v3085 = vmul.f32 %v2984, %v2984
      %v3086 = vmul.f32 %v2985, %v2985
      %v3087 = vmul.f32 %v2986, %v2986
      %v3088 = vmul.f32 %v2987, %v2987
      %v3089 = vmul.f32 %v2988, %v2988
      %v3090 = vmul.f32 %v2989, %v2989
      %v3091 = vmul.f32 %v2990, %v2990
      %v3092 = vmul.f32 %v2991, %v2991
      %v3093 = vmul.f32 %v2992, %v2992
      %v3094 = vmul.f32 %v2993, %v2993
      %v3095 = vmul.f32 %v2994, %v2994
      %v3096 = vmul.f32 %v2995, %v2995
      %v3097 = vmul.f32 %v2996, %v2996
      %v3098 = vmul.f32 %v2997, %v2997
      %v3099 = vmul.f32 %v2998, %v2998
      %v3100 = vmul.f32 %v2999, %v2999
      %v3101 = vmul.f32 %v3000, %v3000
      %v3102 = vmul.f32 %v3001, %v3001
      %v3103 = vmul.f32 %v3002, %v3002
      %v3104 = vmul.f32 %v3003, %v3003
      %v3105 = vmul.f32 %v3004, %v3004
      %v3106 = vadd.f32 %v3074, %v3075
      %v3107 = vadd.f32 %v3106, %v3076
      %v3108 = vadd.f32 %v3107, %v3077
      %v3109 = vadd.f32 %v3108, %v3078
      %v3110 = vadd.f32 %v3109, %v3079
      %v3111 = vadd.f32 %v3110, %v3080
      %v3112 = vadd.f32 %v3111, %v3081
      %v3113 = vadd.f32 %v3112, %v3082
      %v3114 = vadd.f32 %v3113, %v3083
      %v3115 = vadd.f32 %v3114, %v3084
      %v3116 = vadd.f32 %v3115, %v3085
      %v3117 = vadd.f32 %v3116, %v3086
      %v3118 = vadd.f32 %v3117, %v3087
      %v3119 = vadd.f32 %v3118, %v3088
      %v3120 = vadd.f32 %v3119, %v3089
      %v3121 = vadd.f32 %v3120, %v3090
      %v3122 = vadd.f32 %v3121, %v3091
      %v3123 = vadd.f32 %v3122, %v3092
      %v3124 = vadd.f32 %v3123, %v3093
      %v3125 = vadd.f32 %v3124, %v3094
      %v3126 = vadd.f32 %v3125, %v3095
      %v3127 = vadd.f32 %v3126, %v3096
      %v3128 = vadd.f32 %v3127, %v3097
      %v3129 = vadd.f32 %v3128, %v3098
      %v3130 = vadd.f32 %v3129, %v3099
      %v3131 = vadd.f32 %v3130, %v3100
      %v3132 = vadd.f32 %v3131, %v3101
      %v3133 = vadd.f32 %v3132, %v3102
      %v3134 = vadd.f32 %v3133, %v3103
      %v3135 = vadd.f32 %v3134, %v3104
      %v3136 = vadd.f32 %v3135, %v3105
      %v3137 = vrot.slane %v3136, 4
      %v3138 = vadd.f32 %v3136, %v3137
      %v3139 = vrot.slane %v3138, 2
      %v3140 = vadd.f32 %v3138, %v3139
      %v3141 = vrot.slane %v3140, 1
      %v3142 = vadd.f32 %v3140, %v3141
      %v3143 = vsel %vm410, %v3073, %v3142
      %3144 = vst [vmem:[%s235] sm:$0x3] %v3143
      %p3145 = scmp.lt.s32.totalorder %s17, 1
      %s3146 = scalar_select %p3145, %s17, 1
      %s3147 = smul.addr %s3146, 32
      %s3148 = smul.addr %s3147, 8
      %s3149 = scalar_lea.vmem %s4, %s3148
      %p3150 = scmp.lt.s32.totalorder %s17, 1
      %s3151 = scalar_select %p3150, %s17, 1
      %s3152 = smul.addr %s3151, 2
      %s3153 = scalar_lea.vmem %s5, %s3152
      // Predicated region
      $region37: #{_lambda_.5} parent=35 // pred_check
        %p3154 = pneg %p124
      $region38: #{_lambda_.5} parent=35 // pred_check_branch
        %3156 = sbr.rel (%p3154) target = $region40
      $region39: #{_lambda_.5} parent=35 // pred_region
        _
      $region40: #{_lambda_.5} parent=35 // pred_fallthru
        _
      // Predicated region
      $region41: #{_lambda_.5} parent=35 // pred_check
        %p3157 = pneg %p150
      $region42: #{_lambda_.5} parent=35 // pred_check_branch
        %3159 = sbr.rel (%p3157) target = $region44
      $region43: #{_lambda_.5} parent=35 // pred_region
        _
      $region44: #{_lambda_.5} parent=35 // pred_fallthru
        _
    $region36: #{_lambda_.5} parent=5 // pred_fallthru
      _
    %p3160 = scmp.le.s32.totalorder 2, %s12
    // Predicated region
    $region45: #{_lambda_.5} parent=5 // pred_check
      %p3161 = pneg %p3160
    $region46: #{_lambda_.5} parent=5 // pred_check_branch
      %3163 = sbr.rel (%p3161) target = $region48
    $region47: #{_lambda_.5} parent=5 // pred_region
      %s3164 = ssub.s32 %s12, 2
      // Predicated region
      $region49: #{_lambda_.5} parent=47 // pred_check
        %p3165 = pneg %p130
      $region50: #{_lambda_.5} parent=47 // pred_check_branch
        %3167 = sbr.rel (%p3165) target = $region52
      $region51: #{_lambda_.5} parent=47 // pred_region
        %p3168 = scmp.lt.s32.totalorder %s18, 1
        %s3169 = scalar_select %p3168, %s18, 1
        %s3170 = smul.addr %s3169, 32
        %s3171 = smul.addr %s3170, 8
        %s3172 = scalar_lea.vmem %s4, %s3171
      $region52: #{_lambda_.5} parent=47 // pred_fallthru
        _
      // Predicated region
      $region53: #{_lambda_.5} parent=47 // pred_check
        %p3173 = pneg %p156
      $region54: #{_lambda_.5} parent=47 // pred_check_branch
        %3175 = sbr.rel (%p3173) target = $region56
      $region55: #{_lambda_.5} parent=47 // pred_region
        %p3176 = scmp.lt.s32.totalorder %s18, 1
        %s3177 = scalar_select %p3176, %s18, 1
        %s3178 = smul.addr %s3177, 2
        %s3179 = scalar_lea.vmem %s5, %s3178
      $region56: #{_lambda_.5} parent=47 // pred_fallthru
        _
    $region48: #{_lambda_.5} parent=5 // pred_fallthru
      _
  $region6: #{_lambda_.5} parent=0 // loop_footer
    %s16 = sadd.s32 1, %s12
  $region7: #{_lambda_.5} parent=0 // loop_footer_branch
    %11 = sbr.rel target = $region3
  $region8: #{_lambda_.5} parent=0 // loop_exit
    _

</llo_original>
